<compile_context>
chip_gen: v7x
topology: tpu7x:2x2x1
jax: 0.10.0
libtpu: 0.0.40
codegen_flags: <defaults>
</compile_context>

<pallas_src>
import functools

import jax
import jax.numpy as jnp
from jax.experimental import pallas as pl
from jax.experimental.pallas import tpu as pltpu


# --------------------- Kernel 1: fused 3-layer propagation ------------------ #
def _gcn_fused_kernel(aui_ref, aiu_ref, eu_ref, ei_ref, di_ref, dj_ref,
                      out_u_ref, out_i_ref):
    """Feature-major LR-GCCF propagation, fully VMEM-resident.

    aui_ref : (I, U) bf16  = user_item_matrix.T
    aiu_ref : (U, I) bf16  = item_user_matrix.T
    eu_ref  : (F, U) f32   = embed_user.T
    ei_ref  : (F, I) f32   = embed_item.T
    di_ref  : (1, U) f32,  dj_ref : (1, I) f32
    out_u_ref : (4F, U) f32 = [e_u | g1_u | g2_u | g3_u] stacked on sublanes
    out_i_ref : (4F, I) f32
    """
    aui = aui_ref[...]
    aiu = aiu_ref[...]
    eu = eu_ref[...]
    ei = ei_ref[...]
    di = di_ref[...]
    dj = dj_ref[...]

    def prop(other_t, self_t, adj_t, d_row):
        # g^T = other^T @ adj^T + self^T * d  (lane-dense over users/items)
        return jnp.dot(other_t.astype(jnp.bfloat16), adj_t,
                       preferred_element_type=jnp.float32) + self_t * d_row

    g1u = prop(ei, eu, aui, di)
    g1i = prop(eu, ei, aiu, dj)
    g2u = prop(g1i, g1u, aui, di)
    g2i = prop(g1u, g1i, aiu, dj)
    g3u = prop(g2i, g2u, aui, di)
    g3i = prop(g2u, g2i, aiu, dj)

    f = eu.shape[0]
    # concat == four plain sublane-offset, lane-dense stores per side
    out_u_ref[0 * f:1 * f, :] = eu
    out_u_ref[1 * f:2 * f, :] = g1u
    out_u_ref[2 * f:3 * f, :] = g2u
    out_u_ref[3 * f:4 * f, :] = g3u
    out_i_ref[0 * f:1 * f, :] = ei
    out_i_ref[1 * f:2 * f, :] = g1i
    out_i_ref[2 * f:3 * f, :] = g2i
    out_i_ref[3 * f:4 * f, :] = g3i


def run_gcn(user_item_matrix, item_user_matrix, users_emb, items_emb, d_i, d_j):
    """3 propagation layers + concat; returns feature-major (4F, U), (4F, I)."""
    num_users, factor_num = users_emb.shape
    num_items = items_emb.shape[0]

    # feature-major / transposed operands (cheap one-time layout work in XLA)
    aui_t = user_item_matrix.T.astype(jnp.bfloat16)   # (I, U)
    aiu_t = item_user_matrix.T.astype(jnp.bfloat16)   # (U, I)
    eu_t = users_emb.T                                 # (F, U)
    ei_t = items_emb.T                                 # (F, I)
    di_row = d_i.reshape(1, num_users)                 # (1, U)
    dj_row = d_j.reshape(1, num_items)                 # (1, I)

    return pl.pallas_call(
        _gcn_fused_kernel,
        out_shape=(
            jax.ShapeDtypeStruct((4 * factor_num, num_users), jnp.float32),
            jax.ShapeDtypeStruct((4 * factor_num, num_items), jnp.float32),
        ),
        # whole arrays resident in VMEM (~3 MiB here); deliberate, modest
        # budget that is safe on v5e/v6e/v7x.
        compiler_params=pltpu.CompilerParams(vmem_limit_bytes=16 * 1024 * 1024),
    )(aui_t, aiu_t, eu_t, ei_t, di_row, dj_row)


# --------------------------- Kernel 2: BPR loss ------------------------------ #
def _batch_tile(b):
    for t in (512, 256, 128):
        if b > t and b % t == 0:
            return t
    return b


def _bpr_kernel(u_ref, vi_ref, vj_ref,
                pi_ref, pj_ref, loss_ref, loss2_ref,
                log_acc, l2_acc, *, batch):
    b = pl.program_id(0)

    @pl.when(b == 0)
    def _():
        log_acc[...] = jnp.zeros_like(log_acc)
        l2_acc[...] = jnp.zeros_like(l2_acc)

    u = u_ref[...]            # (4F, tB)  batch on lanes
    vi = vi_ref[...]
    vj = vj_ref[...]

    pi = jnp.sum(u * vi, axis=0, keepdims=True)                     # (1, tB)
    pj = jnp.sum(u * vj, axis=0, keepdims=True)                     # (1, tB)
    l2 = 0.01 * jnp.sum(u * u + vi * vi + vj * vj, axis=0, keepdims=True)

    diff = pi - pj
    # numerically stable log-sigmoid: min(x,0) - log(1 + exp(-|x|))
    log_sig = jnp.minimum(diff, 0.0) - jnp.log(1.0 + jnp.exp(-jnp.abs(diff)))

    pi_ref[...] = pi
    pj_ref[...] = pj
    log_acc[...] += log_sig
    l2_acc[...] += l2

    @pl.when(b == pl.num_programs(0) - 1)
    def _():
        s_log = jnp.sum(log_acc[...], axis=-1, keepdims=True)       # (1, 1)
        s_l2 = jnp.sum(l2_acc[...], axis=-1, keepdims=True)         # (1, 1)
        loss2 = -s_log / batch
        loss2_ref[...] = loss2
        loss_ref[...] = loss2 + s_l2 / batch


def run_bpr(user_vec_t, item_i_vec_t, item_j_vec_t):
    """Inputs are already batch-on-lanes (4F, B) — no transposes needed."""
    d4, batch = user_vec_t.shape
    tb = _batch_tile(batch)
    grid = (batch // tb,)

    kernel = functools.partial(_bpr_kernel, batch=float(batch))
    pi, pj, loss, loss2 = pl.pallas_call(
        kernel,
        out_shape=(
            jax.ShapeDtypeStruct((1, batch), jnp.float32),
            jax.ShapeDtypeStruct((1, batch), jnp.float32),
            jax.ShapeDtypeStruct((1, 1), jnp.float32),
            jax.ShapeDtypeStruct((1, 1), jnp.float32),
        ),
        grid=grid,
        in_specs=[
            pl.BlockSpec((d4, tb), lambda b: (0, b)),
            pl.BlockSpec((d4, tb), lambda b: (0, b)),
            pl.BlockSpec((d4, tb), lambda b: (0, b)),
        ],
        out_specs=(
            pl.BlockSpec((1, tb), lambda b: (0, b)),
            pl.BlockSpec((1, tb), lambda b: (0, b)),
            pl.BlockSpec((1, 1), lambda b: (0, 0)),
            pl.BlockSpec((1, 1), lambda b: (0, 0)),
        ),
        scratch_shapes=[pltpu.VMEM((1, tb), jnp.float32),
                        pltpu.VMEM((1, tb), jnp.float32)],
        compiler_params=pltpu.CompilerParams(
            dimension_semantics=("arbitrary",)),
    )(user_vec_t, item_i_vec_t, item_j_vec_t)
    return pi[0], pj[0], loss[0, 0], loss2[0, 0]


# ------------------------------- BPR forward --------------------------------- #
@jax.jit
def bpr_forward(params, user, item_i, item_j):
    gcn_users_t, gcn_items_t = run_gcn(
        params["user_item_matrix"],
        params["item_user_matrix"],
        params["embed_user"],
        params["embed_item"],
        params["d_i_train"],
        params["d_j_train"],
    )
    # TODO(synk): plain-JAX column gather glue (feature-major tables make this
    # land directly in the batch-on-lanes layout run_bpr wants).
    u_vec = jnp.take(gcn_users_t, user, axis=1)     # (4F, B)
    i_vec = jnp.take(gcn_items_t, item_i, axis=1)   # (4F, B)
    j_vec = jnp.take(gcn_items_t, item_j, axis=1)   # (4F, B)
    return run_bpr(u_vec, i_vec, j_vec)


# ---------------------------------- demo ------------------------------------- #
def _reference(params, user, item_i, item_j):
    ue, ie = params["embed_user"], params["embed_item"]
    ui, iu = params["user_item_matrix"], params["item_user_matrix"]
    di, dj = params["d_i_train"], params["d_j_train"]
    g1u = ui @ ie + ue * di
    g1i = iu @ ue + ie * dj
    g2u = ui @ g1i + g1u * di
    g2i = iu @ g1u + g1i * dj
    g3u = ui @ g2i + g2u * di
    g3i = iu @ g2u + g2i * dj
    gu = jnp.concatenate([ue, g1u, g2u, g3u], axis=-1)
    gi = jnp.concatenate([ie, g1i, g2i, g3i], axis=-1)
    u, vi, vj = gu[user], gi[item_i], gi[item_j]
    pi = jnp.sum(u * vi, axis=-1)
    pj = jnp.sum(u * vj, axis=-1)
    l2 = 0.01 * jnp.sum(u ** 2 + vi ** 2 + vj ** 2, axis=-1)
    loss2 = -jnp.mean(jax.nn.log_sigmoid(pi - pj))
    loss = loss2 + jnp.mean(l2)
    return pi, pj, loss, loss2


if __name__ == "__main__":
    key = jax.random.PRNGKey(0)
    user_num, item_num, factor_num = 512, 768, 32
    batch = 128

    k1, k2, k3, k4, k5, k6, k7, k8 = jax.random.split(key, 8)

    # nn.init.normal_(std=0.01)
    embed_user = 0.01 * jax.random.normal(k1, (user_num, factor_num), jnp.float32)
    embed_item = 0.01 * jax.random.normal(k2, (item_num, factor_num), jnp.float32)

    # dense stand-in for the sparse (normalized) interaction matrices
    ui_mask = (jax.random.uniform(k3, (user_num, item_num)) < 0.05).astype(jnp.float32)
    user_item_matrix = ui_mask / (jnp.sum(ui_mask, axis=1, keepdims=True) + 1.0)
    item_user_matrix = ui_mask.T / (jnp.sum(ui_mask.T, axis=1, keepdims=True) + 1.0)

    # d_i_train / d_j_train kept as (N, 1) columns; broadcast happens in-kernel.
    d_i_train = jax.random.uniform(k4, (user_num, 1), jnp.float32, 0.1, 1.0)
    d_j_train = jax.random.uniform(k5, (item_num, 1), jnp.float32, 0.1, 1.0)

    params = {
        "embed_user": embed_user,
        "embed_item": embed_item,
        "user_item_matrix": user_item_matrix,
        "item_user_matrix": item_user_matrix,
        "d_i_train": d_i_train,
        "d_j_train": d_j_train,
    }

    user = jax.random.randint(k6, (batch,), 0, user_num)
    item_i = jax.random.randint(k7, (batch,), 0, item_num)
    item_j = jax.random.randint(k8, (batch,), 0, item_num)

    pred_i, pred_j, loss, loss2 = jax.block_until_ready(
        bpr_forward(params, user, item_i, item_j)
    )

    assert pred_i.shape == (batch,) and pred_j.shape == (batch,)
    assert bool(jnp.isfinite(pred_i).all())
    assert bool(jnp.isfinite(pred_j).all())
    assert bool(jnp.isfinite(loss)) and bool(jnp.isfinite(loss2))

    # sanity check vs. plain f32 JAX reference (loose tol: bf16 matmul operands)
    ref_pi, ref_pj, ref_loss, ref_loss2 = _reference(params, user, item_i, item_j)
    assert bool(jnp.allclose(pred_i, ref_pi, rtol=5e-2, atol=2e-3))
    assert bool(jnp.allclose(pred_j, ref_pj, rtol=5e-2, atol=2e-3))
    assert bool(jnp.allclose(loss, ref_loss, rtol=5e-2, atol=1e-3))
    assert bool(jnp.allclose(loss2, ref_loss2, rtol=5e-2, atol=1e-3))

    print("KERNEL_OK")
</pallas_src>

<mosaic_0001>
module attributes {stable_mosaic.version = 11 : i64} {
  func.func @_gcn_fused_kernel(%arg0: memref<768x512xbf16, #tpu.memory_space<vmem>>, %arg1: memref<512x768xbf16, #tpu.memory_space<vmem>>, %arg2: memref<32x512xf32, #tpu.memory_space<vmem>>, %arg3: memref<32x768xf32, #tpu.memory_space<vmem>>, %arg4: memref<1x512xf32, #tpu.memory_space<vmem>>, %arg5: memref<1x768xf32, #tpu.memory_space<vmem>>, %arg6: memref<128x512xf32, #tpu.memory_space<vmem>>, %arg7: memref<128x768xf32, #tpu.memory_space<vmem>>) attributes {dimension_semantics = [], scalar_prefetch = 0 : i64, scratch_operands = 0 : i64, tpu.core_type = #tpu.core_type<tc>} {
    %c0 = arith.constant 0 : index
    %c0_0 = arith.constant 0 : index
    %0 = vector.load %arg0[%c0, %c0_0] : memref<768x512xbf16, #tpu.memory_space<vmem>>, vector<768x512xbf16>
    %c0_1 = arith.constant 0 : index
    %c0_2 = arith.constant 0 : index
    %1 = vector.load %arg1[%c0_1, %c0_2] : memref<512x768xbf16, #tpu.memory_space<vmem>>, vector<512x768xbf16>
    %c0_3 = arith.constant 0 : index
    %c0_4 = arith.constant 0 : index
    %2 = vector.load %arg2[%c0_3, %c0_4] : memref<32x512xf32, #tpu.memory_space<vmem>>, vector<32x512xf32>
    %c0_5 = arith.constant 0 : index
    %c0_6 = arith.constant 0 : index
    %3 = vector.load %arg3[%c0_5, %c0_6] : memref<32x768xf32, #tpu.memory_space<vmem>>, vector<32x768xf32>
    %c0_7 = arith.constant 0 : index
    %c0_8 = arith.constant 0 : index
    %4 = vector.load %arg4[%c0_7, %c0_8] : memref<1x512xf32, #tpu.memory_space<vmem>>, vector<1x512xf32>
    %c0_9 = arith.constant 0 : index
    %c0_10 = arith.constant 0 : index
    %5 = vector.load %arg5[%c0_9, %c0_10] : memref<1x768xf32, #tpu.memory_space<vmem>>, vector<1x768xf32>
    %6 = arith.truncf %3 : vector<32x768xf32> to vector<32x768xbf16>
    %cst = arith.constant dense<0.000000e+00> : vector<32x512xf32>
    %7 = tpu.matmul %6, %0, %cst {dimension_numbers = #tpu.dot_dimension_numbers<[1], [0], [0], [1], [0, 0, 1, 1], [], []>} : vector<32x768xbf16>, vector<768x512xbf16>, vector<32x512xf32> -> vector<32x512xf32>
    %8 = vector.broadcast %4 : vector<1x512xf32> to vector<32x512xf32>
    %9 = arith.mulf %2, %8 : vector<32x512xf32>
    %10 = arith.addf %7, %9 : vector<32x512xf32>
    %11 = arith.truncf %2 : vector<32x512xf32> to vector<32x512xbf16>
    %cst_11 = arith.constant dense<0.000000e+00> : vector<32x768xf32>
    %12 = tpu.matmul %11, %1, %cst_11 {dimension_numbers = #tpu.dot_dimension_numbers<[1], [0], [0], [1], [0, 0, 1, 1], [], []>} : vector<32x512xbf16>, vector<512x768xbf16>, vector<32x768xf32> -> vector<32x768xf32>
    %13 = vector.broadcast %5 : vector<1x768xf32> to vector<32x768xf32>
    %14 = arith.mulf %3, %13 : vector<32x768xf32>
    %15 = arith.addf %12, %14 : vector<32x768xf32>
    %16 = arith.truncf %15 : vector<32x768xf32> to vector<32x768xbf16>
    %cst_12 = arith.constant dense<0.000000e+00> : vector<32x512xf32>
    %17 = tpu.matmul %16, %0, %cst_12 {dimension_numbers = #tpu.dot_dimension_numbers<[1], [0], [0], [1], [0, 0, 1, 1], [], []>} : vector<32x768xbf16>, vector<768x512xbf16>, vector<32x512xf32> -> vector<32x512xf32>
    %18 = vector.broadcast %4 : vector<1x512xf32> to vector<32x512xf32>
    %19 = arith.mulf %10, %18 : vector<32x512xf32>
    %20 = arith.addf %17, %19 : vector<32x512xf32>
    %21 = arith.truncf %10 : vector<32x512xf32> to vector<32x512xbf16>
    %cst_13 = arith.constant dense<0.000000e+00> : vector<32x768xf32>
    %22 = tpu.matmul %21, %1, %cst_13 {dimension_numbers = #tpu.dot_dimension_numbers<[1], [0], [0], [1], [0, 0, 1, 1], [], []>} : vector<32x512xbf16>, vector<512x768xbf16>, vector<32x768xf32> -> vector<32x768xf32>
    %23 = vector.broadcast %5 : vector<1x768xf32> to vector<32x768xf32>
    %24 = arith.mulf %15, %23 : vector<32x768xf32>
    %25 = arith.addf %22, %24 : vector<32x768xf32>
    %26 = arith.truncf %25 : vector<32x768xf32> to vector<32x768xbf16>
    %cst_14 = arith.constant dense<0.000000e+00> : vector<32x512xf32>
    %27 = tpu.matmul %26, %0, %cst_14 {dimension_numbers = #tpu.dot_dimension_numbers<[1], [0], [0], [1], [0, 0, 1, 1], [], []>} : vector<32x768xbf16>, vector<768x512xbf16>, vector<32x512xf32> -> vector<32x512xf32>
    %28 = vector.broadcast %4 : vector<1x512xf32> to vector<32x512xf32>
    %29 = arith.mulf %20, %28 : vector<32x512xf32>
    %30 = arith.addf %27, %29 : vector<32x512xf32>
    %31 = arith.truncf %20 : vector<32x512xf32> to vector<32x512xbf16>
    %cst_15 = arith.constant dense<0.000000e+00> : vector<32x768xf32>
    %32 = tpu.matmul %31, %1, %cst_15 {dimension_numbers = #tpu.dot_dimension_numbers<[1], [0], [0], [1], [0, 0, 1, 1], [], []>} : vector<32x512xbf16>, vector<512x768xbf16>, vector<32x768xf32> -> vector<32x768xf32>
    %33 = vector.broadcast %5 : vector<1x768xf32> to vector<32x768xf32>
    %34 = arith.mulf %25, %33 : vector<32x768xf32>
    %35 = arith.addf %32, %34 : vector<32x768xf32>
    %c0_16 = arith.constant 0 : index
    %c0_17 = arith.constant 0 : index
    %36 = vector.load %arg6[%c0_16, %c0_17] : memref<128x512xf32, #tpu.memory_space<vmem>>, vector<32x512xf32>
    tpu.vector_store %arg6[%c0_16, %c0_17], %2 {strides = array<i32>} : memref<128x512xf32, #tpu.memory_space<vmem>>, vector<32x512xf32>,
    %c32 = arith.constant 32 : index
    %c0_18 = arith.constant 0 : index
    %37 = vector.load %arg6[%c32, %c0_18] : memref<128x512xf32, #tpu.memory_space<vmem>>, vector<32x512xf32>
    tpu.vector_store %arg6[%c32, %c0_18], %10 {strides = array<i32>} : memref<128x512xf32, #tpu.memory_space<vmem>>, vector<32x512xf32>,
    %c64 = arith.constant 64 : index
    %c0_19 = arith.constant 0 : index
    %38 = vector.load %arg6[%c64, %c0_19] : memref<128x512xf32, #tpu.memory_space<vmem>>, vector<32x512xf32>
    tpu.vector_store %arg6[%c64, %c0_19], %20 {strides = array<i32>} : memref<128x512xf32, #tpu.memory_space<vmem>>, vector<32x512xf32>,
    %c96 = arith.constant 96 : index
    %c0_20 = arith.constant 0 : index
    %39 = vector.load %arg6[%c96, %c0_20] : memref<128x512xf32, #tpu.memory_space<vmem>>, vector<32x512xf32>
    tpu.vector_store %arg6[%c96, %c0_20], %30 {strides = array<i32>} : memref<128x512xf32, #tpu.memory_space<vmem>>, vector<32x512xf32>,
    %c0_21 = arith.constant 0 : index
    %c0_22 = arith.constant 0 : index
    %40 = vector.load %arg7[%c0_21, %c0_22] : memref<128x768xf32, #tpu.memory_space<vmem>>, vector<32x768xf32>
    tpu.vector_store %arg7[%c0_21, %c0_22], %3 {strides = array<i32>} : memref<128x768xf32, #tpu.memory_space<vmem>>, vector<32x768xf32>,
    %c32_23 = arith.constant 32 : index
    %c0_24 = arith.constant 0 : index
    %41 = vector.load %arg7[%c32_23, %c0_24] : memref<128x768xf32, #tpu.memory_space<vmem>>, vector<32x768xf32>
    tpu.vector_store %arg7[%c32_23, %c0_24], %15 {strides = array<i32>} : memref<128x768xf32, #tpu.memory_space<vmem>>, vector<32x768xf32>,
    %c64_25 = arith.constant 64 : index
    %c0_26 = arith.constant 0 : index
    %42 = vector.load %arg7[%c64_25, %c0_26] : memref<128x768xf32, #tpu.memory_space<vmem>>, vector<32x768xf32>
    tpu.vector_store %arg7[%c64_25, %c0_26], %25 {strides = array<i32>} : memref<128x768xf32, #tpu.memory_space<vmem>>, vector<32x768xf32>,
    %c96_27 = arith.constant 96 : index
    %c0_28 = arith.constant 0 : index
    %43 = vector.load %arg7[%c96_27, %c0_28] : memref<128x768xf32, #tpu.memory_space<vmem>>, vector<32x768xf32>
    tpu.vector_store %arg7[%c96_27, %c0_28], %35 {strides = array<i32>} : memref<128x768xf32, #tpu.memory_space<vmem>>, vector<32x768xf32>,
    return
  }
}

module attributes {stable_mosaic.version = 11 : i64} {
  func.func @_bpr_kernel(%arg0: i32, %arg1: memref<128x128xf32, #tpu.memory_space<vmem>>, %arg2: memref<128x128xf32, #tpu.memory_space<vmem>>, %arg3: memref<128x128xf32, #tpu.memory_space<vmem>>, %arg4: memref<1x128xf32, #tpu.memory_space<vmem>>, %arg5: memref<1x128xf32, #tpu.memory_space<vmem>>, %arg6: memref<1x1xf32, #tpu.memory_space<vmem>>, %arg7: memref<1x1xf32, #tpu.memory_space<vmem>>, %arg8: memref<1x128xf32, #tpu.memory_space<vmem>>, %arg9: memref<1x128xf32, #tpu.memory_space<vmem>>) attributes {dimension_semantics = [#tpu.dimension_semantics<arbitrary>], iteration_bounds = array<i64: 1>, scalar_prefetch = 0 : i64, scratch_operands = 2 : i64, tpu.core_type = #tpu.core_type<tc>, window_params = [{transform_indices = @transform_0, window_bounds = array<i64: 128, 128>}, {transform_indices = @transform_1, window_bounds = array<i64: 128, 128>}, {transform_indices = @transform_2, window_bounds = array<i64: 128, 128>}, {transform_indices = @transform_3, window_bounds = array<i64: 1, 128>}, {transform_indices = @transform_4, window_bounds = array<i64: 1, 128>}, {pipeline_mode = #tpu.pipeline_mode<synchronous>, transform_indices = @transform_5, window_bounds = array<i64: 1, 1>}, {pipeline_mode = #tpu.pipeline_mode<synchronous>, transform_indices = @transform_6, window_bounds = array<i64: 1, 1>}]} {
    %c0_i32 = arith.constant 0 : i32
    %0 = arith.cmpi eq, %arg0, %c0_i32 : i32
    %1 = arith.extui %0 : i1 to i32
    %c0_i32_0 = arith.constant 0 : i32
    %2 = arith.cmpi ne, %1, %c0_i32_0 : i32
    scf.if %2 {
      %cst_26 = arith.constant 0.000000e+00 : f32
      %43 = vector.broadcast %cst_26 : f32 to vector<1x128xf32>
      %c0_27 = arith.constant 0 : index
      %c0_28 = arith.constant 0 : index
      %44 = vector.load %arg8[%c0_27, %c0_28] : memref<1x128xf32, #tpu.memory_space<vmem>>, vector<1x128xf32>
      tpu.vector_store %arg8[%c0_27, %c0_28], %43 {strides = array<i32>} : memref<1x128xf32, #tpu.memory_space<vmem>>, vector<1x128xf32>,
      %cst_29 = arith.constant 0.000000e+00 : f32
      %45 = vector.broadcast %cst_29 : f32 to vector<1x128xf32>
      %c0_30 = arith.constant 0 : index
      %c0_31 = arith.constant 0 : index
      %46 = vector.load %arg9[%c0_30, %c0_31] : memref<1x128xf32, #tpu.memory_space<vmem>>, vector<1x128xf32>
      tpu.vector_store %arg9[%c0_30, %c0_31], %45 {strides = array<i32>} : memref<1x128xf32, #tpu.memory_space<vmem>>, vector<1x128xf32>,
    } else {
    }
    %c0 = arith.constant 0 : index
    %c0_1 = arith.constant 0 : index
    %3 = vector.load %arg1[%c0, %c0_1] : memref<128x128xf32, #tpu.memory_space<vmem>>, vector<128x128xf32>
    %c0_2 = arith.constant 0 : index
    %c0_3 = arith.constant 0 : index
    %4 = vector.load %arg2[%c0_2, %c0_3] : memref<128x128xf32, #tpu.memory_space<vmem>>, vector<128x128xf32>
    %c0_4 = arith.constant 0 : index
    %c0_5 = arith.constant 0 : index
    %5 = vector.load %arg3[%c0_4, %c0_5] : memref<128x128xf32, #tpu.memory_space<vmem>>, vector<128x128xf32>
    %6 = arith.mulf %3, %4 : vector<128x128xf32>
    %cst = arith.constant dense<0.000000e+00> : vector<128xf32>
    %7 = vector.multi_reduction <add>, %6, %cst [0] : vector<128x128xf32> to vector<128xf32>
    %8 = vector.shape_cast %7 : vector<128xf32> to vector<1x128xf32>
    %9 = arith.mulf %3, %5 : vector<128x128xf32>
    %cst_6 = arith.constant dense<0.000000e+00> : vector<128xf32>
    %10 = vector.multi_reduction <add>, %9, %cst_6 [0] : vector<128x128xf32> to vector<128xf32>
    %11 = vector.shape_cast %10 : vector<128xf32> to vector<1x128xf32>
    %12 = arith.mulf %3, %3 : vector<128x128xf32>
    %13 = arith.mulf %4, %4 : vector<128x128xf32>
    %14 = arith.addf %12, %13 : vector<128x128xf32>
    %15 = arith.mulf %5, %5 : vector<128x128xf32>
    %16 = arith.addf %14, %15 : vector<128x128xf32>
    %cst_7 = arith.constant dense<0.000000e+00> : vector<128xf32>
    %17 = vector.multi_reduction <add>, %16, %cst_7 [0] : vector<128x128xf32> to vector<128xf32>
    %18 = vector.shape_cast %17 : vector<128xf32> to vector<1x128xf32>
    %cst_8 = arith.constant 0.00999999977 : f32
    %19 = vector.broadcast %cst_8 : f32 to vector<1x128xf32>
    %20 = arith.mulf %19, %18 : vector<1x128xf32>
    %21 = arith.subf %8, %11 : vector<1x128xf32>
    %cst_9 = arith.constant 0.000000e+00 : f32
    %22 = vector.broadcast %cst_9 : f32 to vector<1x128xf32>
    %23 = arith.minimumf %21, %22 : vector<1x128xf32>
    %24 = math.absf %21 : vector<1x128xf32>
    %cst_10 = arith.constant 0.000000e+00 : f32
    %25 = vector.broadcast %cst_10 : f32 to vector<1x128xf32>
    %26 = arith.subf %25, %24 : vector<1x128xf32>
    %27 = math.exp %26 : vector<1x128xf32>
    %cst_11 = arith.constant 1.000000e+00 : f32
    %28 = vector.broadcast %cst_11 : f32 to vector<1x128xf32>
    %29 = arith.addf %28, %27 : vector<1x128xf32>
    %30 = math.log %29 : vector<1x128xf32>
    %31 = arith.subf %23, %30 : vector<1x128xf32>
    %c0_12 = arith.constant 0 : index
    %c0_13 = arith.constant 0 : index
    %32 = vector.load %arg4[%c0_12, %c0_13] : memref<1x128xf32, #tpu.memory_space<vmem>>, vector<1x128xf32>
    tpu.vector_store %arg4[%c0_12, %c0_13], %8 {strides = array<i32>} : memref<1x128xf32, #tpu.memory_space<vmem>>, vector<1x128xf32>,
    %c0_14 = arith.constant 0 : index
    %c0_15 = arith.constant 0 : index
    %33 = vector.load %arg5[%c0_14, %c0_15] : memref<1x128xf32, #tpu.memory_space<vmem>>, vector<1x128xf32>
    tpu.vector_store %arg5[%c0_14, %c0_15], %11 {strides = array<i32>} : memref<1x128xf32, #tpu.memory_space<vmem>>, vector<1x128xf32>,
    %c0_16 = arith.constant 0 : index
    %c0_17 = arith.constant 0 : index
    %34 = vector.load %arg8[%c0_16, %c0_17] : memref<1x128xf32, #tpu.memory_space<vmem>>, vector<1x128xf32>
    %35 = arith.addf %34, %31 : vector<1x128xf32>
    %c0_18 = arith.constant 0 : index
    %c0_19 = arith.constant 0 : index
    %36 = vector.load %arg8[%c0_18, %c0_19] : memref<1x128xf32, #tpu.memory_space<vmem>>, vector<1x128xf32>
    tpu.vector_store %arg8[%c0_18, %c0_19], %35 {strides = array<i32>} : memref<1x128xf32, #tpu.memory_space<vmem>>, vector<1x128xf32>,
    %c0_20 = arith.constant 0 : index
    %c0_21 = arith.constant 0 : index
    %37 = vector.load %arg9[%c0_20, %c0_21] : memref<1x128xf32, #tpu.memory_space<vmem>>, vector<1x128xf32>
    %38 = arith.addf %37, %20 : vector<1x128xf32>
    %c0_22 = arith.constant 0 : index
    %c0_23 = arith.constant 0 : index
    %39 = vector.load %arg9[%c0_22, %c0_23] : memref<1x128xf32, #tpu.memory_space<vmem>>, vector<1x128xf32>
    tpu.vector_store %arg9[%c0_22, %c0_23], %38 {strides = array<i32>} : memref<1x128xf32, #tpu.memory_space<vmem>>, vector<1x128xf32>,
    %c0_i32_24 = arith.constant 0 : i32
    %40 = arith.cmpi eq, %arg0, %c0_i32_24 : i32
    %41 = arith.extui %40 : i1 to i32
    %c0_i32_25 = arith.constant 0 : i32
    %42 = arith.cmpi ne, %41, %c0_i32_25 : i32
    scf.if %42 {
      %c0_26 = arith.constant 0 : index
      %c0_27 = arith.constant 0 : index
      %43 = vector.load %arg8[%c0_26, %c0_27] : memref<1x128xf32, #tpu.memory_space<vmem>>, vector<1x128xf32>
      %cst_28 = arith.constant dense<0.000000e+00> : vector<1xf32>
      %44 = vector.multi_reduction <add>, %43, %cst_28 [1] : vector<1x128xf32> to vector<1xf32>
      %45 = vector.shape_cast %44 : vector<1xf32> to vector<1x1xf32>
      %c0_29 = arith.constant 0 : index
      %c0_30 = arith.constant 0 : index
      %46 = vector.load %arg9[%c0_29, %c0_30] : memref<1x128xf32, #tpu.memory_space<vmem>>, vector<1x128xf32>
      %cst_31 = arith.constant dense<0.000000e+00> : vector<1xf32>
      %47 = vector.multi_reduction <add>, %46, %cst_31 [1] : vector<1x128xf32> to vector<1xf32>
      %48 = vector.shape_cast %47 : vector<1xf32> to vector<1x1xf32>
      %cst_32 = arith.constant 0.000000e+00 : f32
      %49 = vector.broadcast %cst_32 : f32 to vector<1x1xf32>
      %50 = arith.subf %49, %45 : vector<1x1xf32>
      %cst_33 = arith.constant 1.280000e+02 : f32
      %51 = vector.broadcast %cst_33 : f32 to vector<1x1xf32>
      %52 = arith.divf %50, %51 : vector<1x1xf32>
      %c0_34 = arith.constant 0 : index
      %c0_35 = arith.constant 0 : index
      %53 = vector.load %arg7[%c0_34, %c0_35] : memref<1x1xf32, #tpu.memory_space<vmem>>, vector<1x1xf32>
      tpu.vector_store %arg7[%c0_34, %c0_35], %52 {strides = array<i32>} : memref<1x1xf32, #tpu.memory_space<vmem>>, vector<1x1xf32>,
      %cst_36 = arith.constant 1.280000e+02 : f32
      %54 = vector.broadcast %cst_36 : f32 to vector<1x1xf32>
      %55 = arith.divf %48, %54 : vector<1x1xf32>
      %56 = arith.addf %52, %55 : vector<1x1xf32>
      %c0_37 = arith.constant 0 : index
      %c0_38 = arith.constant 0 : index
      %57 = vector.load %arg6[%c0_37, %c0_38] : memref<1x1xf32, #tpu.memory_space<vmem>>, vector<1x1xf32>
      tpu.vector_store %arg6[%c0_37, %c0_38], %56 {strides = array<i32>} : memref<1x1xf32, #tpu.memory_space<vmem>>, vector<1x1xf32>,
    } else {
    }
    return
  }
  func.func @transform_0(%arg0: i32) -> (i32, i32) {
    %c0_i32 = arith.constant 0 : i32
    %c0_i32_0 = arith.constant 0 : i32
    return %c0_i32, %arg0 : i32, i32
  }
  func.func @transform_1(%arg0: i32) -> (i32, i32) {
    %c0_i32 = arith.constant 0 : i32
    %c0_i32_0 = arith.constant 0 : i32
    return %c0_i32, %arg0 : i32, i32
  }
  func.func @transform_2(%arg0: i32) -> (i32, i32) {
    %c0_i32 = arith.constant 0 : i32
    %c0_i32_0 = arith.constant 0 : i32
    return %c0_i32, %arg0 : i32, i32
  }
  func.func @transform_3(%arg0: i32) -> (i32, i32) {
    %c0_i32 = arith.constant 0 : i32
    %c0_i32_0 = arith.constant 0 : i32
    return %c0_i32, %arg0 : i32, i32
  }
  func.func @transform_4(%arg0: i32) -> (i32, i32) {
    %c0_i32 = arith.constant 0 : i32
    %c0_i32_0 = arith.constant 0 : i32
    return %c0_i32, %arg0 : i32, i32
  }
  func.func @transform_5(%arg0: i32) -> (i32, i32) {
    %c0_i32 = arith.constant 0 : i32
    %c0_i32_0 = arith.constant 0 : i32
    %c0_i32_1 = arith.constant 0 : i32
    return %c0_i32, %c0_i32_0 : i32, i32
  }
  func.func @transform_6(%arg0: i32) -> (i32, i32) {
    %c0_i32 = arith.constant 0 : i32
    %c0_i32_0 = arith.constant 0 : i32
    %c0_i32_1 = arith.constant 0 : i32
    return %c0_i32, %c0_i32_0 : i32, i32
  }
}

</mosaic_0001>

<llo_original>
// kernel: bpr_forward.3
$region0: #{bpr_forward.3}
  #allocation0 [shape = 'u32[]', space=smem, size = 0x4, offset = 0x4, fixed_abs, tag = 'smem constant byte address 0x4 - core index']
  #allocation1 [shape = 'u32[144,128]{1,0:T(1,128)}', space=vmem, size = 0x12000, scoped, tag = 'internal scratch']
  #allocation2 [shape = 'f32[1,128]{1,0:T(1,128)}', space=vmem, size = 0x200, scoped, tag = 'scratch operand']
  #allocation3 [shape = 'f32[1,128]{1,0:T(1,128)}', space=vmem, size = 0x200, scoped, tag = 'scratch operand']
  %s0 = inlined_call_operand.vmem [shape: f32[128,128], index: 0, kind: input, shape index: {}]
  %s1 = inlined_call_operand.vmem [shape: f32[128,128], index: 1, kind: input, shape index: {}]
  %s2 = inlined_call_operand.vmem [shape: f32[128,128], index: 2, kind: input, shape index: {}]
  %s3 = inlined_call_operand.hbm [shape: f32[1,128], index: 3, kind: output, shape index: {0}]
  %s4 = inlined_call_operand.hbm [shape: f32[1,128], index: 4, kind: output, shape index: {1}]
  %s5 = inlined_call_operand.hbm [shape: f32[1,1], index: 5, kind: output, shape index: {2}]
  %s6 = inlined_call_operand.hbm [shape: f32[1,1], index: 6, kind: output, shape index: {3}]
  %7 = xla_tuple %s3, %s4, %s5, %s6
  %s8 = sld [smem:[#allocation0]]
  $region54: #{bpr_forward.3} parent=0
    _
  %s10 = ssub.s32 1, %s8
  %s11 = scalar_select 0, %s10, %s8
  $region1: #{bpr_forward.3} parent=0
    #allocation4 [shape = 'u8[512]{0}', space=vmem, size = 0x400, scoped, tag = 'output window, operand 0, single buffered']
    #allocation5 [shape = 's32[1]{0}', space=sflag, size = 0x4, scoped, tag = 'scoped memory for bpr_forward.3']
    #allocation6 [shape = 'u8[512]{0}', space=vmem, size = 0x400, scoped, tag = 'output window, operand 1, single buffered']
    #allocation7 [shape = 's32[1]{0}', space=sflag, size = 0x4, scoped, tag = 'scoped memory for bpr_forward.3']
    #allocation8 [shape = 'u8[512]{0}', space=vmem, size = 0x400, scoped, tag = 'output window, operand 2, single buffered']
    #allocation9 [shape = 'u8[512]{0}', space=vmem, size = 0x400, scoped, tag = 'output window, operand 3, single buffered']
    #allocation10 [shape = 's32[1]{0}', space=sflag, size = 0x4, scoped, tag = 'scoped memory for bpr_forward.3']
    %12 = vsyncpa [#allocation5], 0
    %13 = vsyncpa [#allocation7], 0
    %14 = vsyncpa [#allocation10], 0
    // Predicated region
    $region2: #{bpr_forward.3} parent=1 // pred_check
      _
    $region3: #{bpr_forward.3} parent=1 // pred_check_branch
      %16 = sbr.rel (0) target = $region5
    $region4: #{bpr_forward.3} parent=1 // pred_region
      _
    $region5: #{bpr_forward.3} parent=1 // pred_fallthru
      _
    // Predicated region
    $region6: #{bpr_forward.3} parent=1 // pred_check
      _
    $region7: #{bpr_forward.3} parent=1 // pred_check_branch
      %18 = sbr.rel (0) target = $region9
    $region8: #{bpr_forward.3} parent=1 // pred_region
      _
    $region9: #{bpr_forward.3} parent=1 // pred_fallthru
      _
    // Predicated region
    $region10: #{bpr_forward.3} parent=1 // pred_check
      _
    $region11: #{bpr_forward.3} parent=1 // pred_check_branch
      %20 = sbr.rel (0) target = $region13
    $region12: #{bpr_forward.3} parent=1 // pred_region
      _
    $region13: #{bpr_forward.3} parent=1 // pred_fallthru
      _
    %p21 = scmp.eq.s32.totalorder 0, 0
    // Predicated region
    $region14: #{bpr_forward.3} parent=1 // pred_check
      %p22 = pneg %p21
    $region15: #{bpr_forward.3} parent=1 // pred_check_branch
      %24 = sbr.rel (%p22) target = $region17
    $region16: #{bpr_forward.3} parent=1 // pred_region
      %25 = vst [vmem:[#allocation2] sm:$0x1] 0.0
      %26 = vst [vmem:[#allocation3] sm:$0x1] 0.0
    $region17: #{bpr_forward.3} parent=1 // pred_fallthru
      _
    %v27 = vld [vmem:[%s0] sm:$0xff]
    %v28 = vld [vmem:[%s0 + $0x8] sm:$0xff]
    %v29 = vld [vmem:[%s0 + $0x10] sm:$0xff]
    %v30 = vld [vmem:[%s0 + $0x18] sm:$0xff]
    %v31 = vld [vmem:[%s0 + $0x20] sm:$0xff]
    %v32 = vld [vmem:[%s0 + $0x28] sm:$0xff]
    %v33 = vld [vmem:[%s0 + $0x30] sm:$0xff]
    %v34 = vld [vmem:[%s0 + $0x38] sm:$0xff]
    %v35 = vld [vmem:[%s0 + $0x40] sm:$0xff]
    %v36 = vld [vmem:[%s0 + $0x48] sm:$0xff]
    %v37 = vld [vmem:[%s0 + $0x50] sm:$0xff]
    %v38 = vld [vmem:[%s0 + $0x58] sm:$0xff]
    %v39 = vld [vmem:[%s0 + $0x60] sm:$0xff]
    %v40 = vld [vmem:[%s0 + $0x68] sm:$0xff]
    %v41 = vld [vmem:[%s0 + $0x70] sm:$0xff]
    %v42 = vld [vmem:[%s0 + $0x78] sm:$0xff]
    %v43 = vld [vmem:[%s1] sm:$0xff]
    %v44 = vld [vmem:[%s1 + $0x8] sm:$0xff]
    %v45 = vld [vmem:[%s1 + $0x10] sm:$0xff]
    %v46 = vld [vmem:[%s1 + $0x18] sm:$0xff]
    %v47 = vld [vmem:[%s1 + $0x20] sm:$0xff]
    %v48 = vld [vmem:[%s1 + $0x28] sm:$0xff]
    %v49 = vld [vmem:[%s1 + $0x30] sm:$0xff]
    %v50 = vld [vmem:[%s1 + $0x38] sm:$0xff]
    %v51 = vld [vmem:[%s1 + $0x40] sm:$0xff]
    %v52 = vld [vmem:[%s1 + $0x48] sm:$0xff]
    %v53 = vld [vmem:[%s1 + $0x50] sm:$0xff]
    %v54 = vld [vmem:[%s1 + $0x58] sm:$0xff]
    %v55 = vld [vmem:[%s1 + $0x60] sm:$0xff]
    %v56 = vld [vmem:[%s1 + $0x68] sm:$0xff]
    %v57 = vld [vmem:[%s1 + $0x70] sm:$0xff]
    %v58 = vld [vmem:[%s1 + $0x78] sm:$0xff]
    %v59 = vld [vmem:[%s2] sm:$0xff]
    %v60 = vld [vmem:[%s2 + $0x8] sm:$0xff]
    %v61 = vld [vmem:[%s2 + $0x10] sm:$0xff]
    %v62 = vld [vmem:[%s2 + $0x18] sm:$0xff]
    %v63 = vld [vmem:[%s2 + $0x20] sm:$0xff]
    %v64 = vld [vmem:[%s2 + $0x28] sm:$0xff]
    %v65 = vld [vmem:[%s2 + $0x30] sm:$0xff]
    %v66 = vld [vmem:[%s2 + $0x38] sm:$0xff]
    %v67 = vld [vmem:[%s2 + $0x40] sm:$0xff]
    %v68 = vld [vmem:[%s2 + $0x48] sm:$0xff]
    %v69 = vld [vmem:[%s2 + $0x50] sm:$0xff]
    %v70 = vld [vmem:[%s2 + $0x58] sm:$0xff]
    %v71 = vld [vmem:[%s2 + $0x60] sm:$0xff]
    %v72 = vld [vmem:[%s2 + $0x68] sm:$0xff]
    %v73 = vld [vmem:[%s2 + $0x70] sm:$0xff]
    %v74 = vld [vmem:[%s2 + $0x78] sm:$0xff]
    %v75 = vmul.f32 %v27, %v43
    %v76 = vmul.f32 %v28, %v44
    %v77 = vmul.f32 %v29, %v45
    %v78 = vmul.f32 %v30, %v46
    %v79 = vmul.f32 %v31, %v47
    %v80 = vmul.f32 %v32, %v48
    %v81 = vmul.f32 %v33, %v49
    %v82 = vmul.f32 %v34, %v50
    %v83 = vmul.f32 %v35, %v51
    %v84 = vmul.f32 %v36, %v52
    %v85 = vmul.f32 %v37, %v53
    %v86 = vmul.f32 %v38, %v54
    %v87 = vmul.f32 %v39, %v55
    %v88 = vmul.f32 %v40, %v56
    %v89 = vmul.f32 %v41, %v57
    %v90 = vmul.f32 %v42, %v58
    %v91 = vadd.f32 %v75, %v76
    %v92 = vadd.f32 %v91, %v77
    %v93 = vadd.f32 %v92, %v78
    %v94 = vadd.f32 %v93, %v79
    %v95 = vadd.f32 %v94, %v80
    %v96 = vadd.f32 %v95, %v81
    %v97 = vadd.f32 %v96, %v82
    %v98 = vadd.f32 %v97, %v83
    %v99 = vadd.f32 %v98, %v84
    %v100 = vadd.f32 %v99, %v85
    %v101 = vadd.f32 %v100, %v86
    %v102 = vadd.f32 %v101, %v87
    %v103 = vadd.f32 %v102, %v88
    %v104 = vadd.f32 %v103, %v89
    %v105 = vadd.f32 %v104, %v90
    %v106 = vrot.slane %v105, 4
    %v107 = vadd.f32 %v105, %v106
    %v108 = vrot.slane %v107, 2
    %v109 = vadd.f32 %v107, %v108
    %v110 = vrot.slane %v109, 1
    %v111 = vadd.f32 %v109, %v110
    %v112 = vmul.f32 %v27, %v59
    %v113 = vmul.f32 %v28, %v60
    %v114 = vmul.f32 %v29, %v61
    %v115 = vmul.f32 %v30, %v62
    %v116 = vmul.f32 %v31, %v63
    %v117 = vmul.f32 %v32, %v64
    %v118 = vmul.f32 %v33, %v65
    %v119 = vmul.f32 %v34, %v66
    %v120 = vmul.f32 %v35, %v67
    %v121 = vmul.f32 %v36, %v68
    %v122 = vmul.f32 %v37, %v69
    %v123 = vmul.f32 %v38, %v70
    %v124 = vmul.f32 %v39, %v71
    %v125 = vmul.f32 %v40, %v72
    %v126 = vmul.f32 %v41, %v73
    %v127 = vmul.f32 %v42, %v74
    %v128 = vadd.f32 %v112, %v113
    %v129 = vadd.f32 %v128, %v114
    %v130 = vadd.f32 %v129, %v115
    %v131 = vadd.f32 %v130, %v116
    %v132 = vadd.f32 %v131, %v117
    %v133 = vadd.f32 %v132, %v118
    %v134 = vadd.f32 %v133, %v119
    %v135 = vadd.f32 %v134, %v120
    %v136 = vadd.f32 %v135, %v121
    %v137 = vadd.f32 %v136, %v122
    %v138 = vadd.f32 %v137, %v123
    %v139 = vadd.f32 %v138, %v124
    %v140 = vadd.f32 %v139, %v125
    %v141 = vadd.f32 %v140, %v126
    %v142 = vadd.f32 %v141, %v127
    %v143 = vrot.slane %v142, 4
    %v144 = vadd.f32 %v142, %v143
    %v145 = vrot.slane %v144, 2
    %v146 = vadd.f32 %v144, %v145
    %v147 = vrot.slane %v146, 1
    %v148 = vadd.f32 %v146, %v147
    %v149 = vmul.f32 %v27, %v27
    %v150 = vmul.f32 %v28, %v28
    %v151 = vmul.f32 %v29, %v29
    %v152 = vmul.f32 %v30, %v30
    %v153 = vmul.f32 %v31, %v31
    %v154 = vmul.f32 %v32, %v32
    %v155 = vmul.f32 %v33, %v33
    %v156 = vmul.f32 %v34, %v34
    %v157 = vmul.f32 %v35, %v35
    %v158 = vmul.f32 %v36, %v36
    %v159 = vmul.f32 %v37, %v37
    %v160 = vmul.f32 %v38, %v38
    %v161 = vmul.f32 %v39, %v39
    %v162 = vmul.f32 %v40, %v40
    %v163 = vmul.f32 %v41, %v41
    %v164 = vmul.f32 %v42, %v42
    %v165 = vmul.f32 %v43, %v43
    %v166 = vmul.f32 %v44, %v44
    %v167 = vmul.f32 %v45, %v45
    %v168 = vmul.f32 %v46, %v46
    %v169 = vmul.f32 %v47, %v47
    %v170 = vmul.f32 %v48, %v48
    %v171 = vmul.f32 %v49, %v49
    %v172 = vmul.f32 %v50, %v50
    %v173 = vmul.f32 %v51, %v51
    %v174 = vmul.f32 %v52, %v52
    %v175 = vmul.f32 %v53, %v53
    %v176 = vmul.f32 %v54, %v54
    %v177 = vmul.f32 %v55, %v55
    %v178 = vmul.f32 %v56, %v56
    %v179 = vmul.f32 %v57, %v57
    %v180 = vmul.f32 %v58, %v58
    %v181 = vadd.f32 %v149, %v165
    %v182 = vadd.f32 %v150, %v166
    %v183 = vadd.f32 %v151, %v167
    %v184 = vadd.f32 %v152, %v168
    %v185 = vadd.f32 %v153, %v169
    %v186 = vadd.f32 %v154, %v170
    %v187 = vadd.f32 %v155, %v171
    %v188 = vadd.f32 %v156, %v172
    %v189 = vadd.f32 %v157, %v173
    %v190 = vadd.f32 %v158, %v174
    %v191 = vadd.f32 %v159, %v175
    %v192 = vadd.f32 %v160, %v176
    %v193 = vadd.f32 %v161, %v177
    %v194 = vadd.f32 %v162, %v178
    %v195 = vadd.f32 %v163, %v179
    %v196 = vadd.f32 %v164, %v180
    %v197 = vmul.f32 %v59, %v59
    %v198 = vmul.f32 %v60, %v60
    %v199 = vmul.f32 %v61, %v61
    %v200 = vmul.f32 %v62, %v62
    %v201 = vmul.f32 %v63, %v63
    %v202 = vmul.f32 %v64, %v64
    %v203 = vmul.f32 %v65, %v65
    %v204 = vmul.f32 %v66, %v66
    %v205 = vmul.f32 %v67, %v67
    %v206 = vmul.f32 %v68, %v68
    %v207 = vmul.f32 %v69, %v69
    %v208 = vmul.f32 %v70, %v70
    %v209 = vmul.f32 %v71, %v71
    %v210 = vmul.f32 %v72, %v72
    %v211 = vmul.f32 %v73, %v73
    %v212 = vmul.f32 %v74, %v74
    %v213 = vadd.f32 %v181, %v197
    %v214 = vadd.f32 %v182, %v198
    %v215 = vadd.f32 %v183, %v199
    %v216 = vadd.f32 %v184, %v200
    %v217 = vadd.f32 %v185, %v201
    %v218 = vadd.f32 %v186, %v202
    %v219 = vadd.f32 %v187, %v203
    %v220 = vadd.f32 %v188, %v204
    %v221 = vadd.f32 %v189, %v205
    %v222 = vadd.f32 %v190, %v206
    %v223 = vadd.f32 %v191, %v207
    %v224 = vadd.f32 %v192, %v208
    %v225 = vadd.f32 %v193, %v209
    %v226 = vadd.f32 %v194, %v210
    %v227 = vadd.f32 %v195, %v211
    %v228 = vadd.f32 %v196, %v212
    %v229 = vadd.f32 %v213, %v214
    %v230 = vadd.f32 %v229, %v215
    %v231 = vadd.f32 %v230, %v216
    %v232 = vadd.f32 %v231, %v217
    %v233 = vadd.f32 %v232, %v218
    %v234 = vadd.f32 %v233, %v219
    %v235 = vadd.f32 %v234, %v220
    %v236 = vadd.f32 %v235, %v221
    %v237 = vadd.f32 %v236, %v222
    %v238 = vadd.f32 %v237, %v223
    %v239 = vadd.f32 %v238, %v224
    %v240 = vadd.f32 %v239, %v225
    %v241 = vadd.f32 %v240, %v226
    %v242 = vadd.f32 %v241, %v227
    %v243 = vadd.f32 %v242, %v228
    %v244 = vrot.slane %v243, 4
    %v245 = vadd.f32 %v243, %v244
    %v246 = vrot.slane %v245, 2
    %v247 = vadd.f32 %v245, %v246
    %v248 = vrot.slane %v247, 1
    %v249 = vadd.f32 %v247, %v248
    %v250 = vmul.f32 %v249, 0.01
    %v251 = vsub.f32 %v111, %v148
    %v252 = vmin.f32 %v251, 0.0
    %v253 = vand.u32 2147483647, %v251
    %v254 = vsub.f32 0.0, %v253
    %v255 = vmul.f32 %v254, 1.442695
    %v256 = vpow.pop %v255
    %v257 = vadd.f32 %v256, 1.0
    %v258 = vlog2.pop %v257
    %v259 = vmul.f32 %v258, 0.6931472
    %v260 = vsub.f32 %v252, %v259
    %261 = vst [vmem:[#allocation4] sm:$0x1] %v111
    %262 = vst [vmem:[#allocation6] sm:$0x1] %v148
    %v263 = vld [vmem:[#allocation2] sm:$0x1]
    %v264 = vadd.f32 %v263, %v260
    %265 = vst [vmem:[#allocation2] sm:$0x1] %v264
    %v266 = vld [vmem:[#allocation3] sm:$0x1]
    %v267 = vadd.f32 %v266, %v250
    %268 = vst [vmem:[#allocation3] sm:$0x1] %v267
    // Predicated region
    $region18: #{bpr_forward.3} parent=1 // pred_check
      %p269 = pneg %p21
    $region19: #{bpr_forward.3} parent=1 // pred_check_branch
      %271 = sbr.rel (%p269) target = $region21
    $region20: #{bpr_forward.3} parent=1 // pred_region
      %v272 = vld [vmem:[#allocation2] sm:$0x1]
      %vm273 = vcmask 1040384
      %v274 = vsel %vm273, %v272, 0.0
      %275 = vadd.xlane.f32.xlu0 %v274
      %v276 = vpop.xlane.xlu0 %275
      %v277 = vld [vmem:[#allocation3] sm:$0x1]
      %v278 = vsel %vm273, %v277, 0.0
      %279 = vadd.xlane.f32.xlu0 %v278
      %v280 = vpop.xlane.xlu0 %279
      %v281 = vsub.f32 0.0, %v276
      %v282 = vrcp.pop 128.0
      %v283 = vmul.f32 %v281, %v282
      %vm284 = vcmask 0
      %285 = vst.msk [vmem:[#allocation9] sm:$0x1] %vm284, %v283
      %v286 = vmul.f32 %v280, %v282
      %v287 = vadd.f32 %v283, %v286
      %288 = vst.msk [vmem:[#allocation8] sm:$0x1] %vm284, %v287
    $region21: #{bpr_forward.3} parent=1 // pred_fallthru
      _
    // Predicated region
    $region22: #{bpr_forward.3} parent=1 // pred_check
      _
    $region23: #{bpr_forward.3} parent=1 // pred_check_branch
      %290 = sbr.rel (0) target = $region25
    $region24: #{bpr_forward.3} parent=1 // pred_region
      %s292 = ssub.s32 16, 16
      %293 = vsyncadd [#allocation5], %s292
      %s295 = sshll.u32 [#allocation4], 4
      %s296 = int_to_ptr.vmem [resolvable:$true] %s295
      %298 = dma.vmem_to_hbm [thread:$0]  %s296, 16, %s3, [#allocation5]
    $region25: #{bpr_forward.3} parent=1 // pred_fallthru
      _
    // Predicated region
    $region26: #{bpr_forward.3} parent=1 // pred_check
      _
    $region27: #{bpr_forward.3} parent=1 // pred_check_branch
      %300 = sbr.rel (0) target = $region29
    $region28: #{bpr_forward.3} parent=1 // pred_region
      %s302 = ssub.s32 16, 16
      %303 = vsyncadd [#allocation7], %s302
      %s305 = sshll.u32 [#allocation6], 4
      %s306 = int_to_ptr.vmem [resolvable:$true] %s305
      %308 = dma.vmem_to_hbm [thread:$0]  %s306, 16, %s4, [#allocation7]
    $region29: #{bpr_forward.3} parent=1 // pred_fallthru
      _
    // Predicated region
    $region30: #{bpr_forward.3} parent=1 // pred_check
      _
    $region31: #{bpr_forward.3} parent=1 // pred_check_branch
      %310 = sbr.rel (0) target = $region33
    $region32: #{bpr_forward.3} parent=1 // pred_region
      %s312 = ssub.s32 16, 16
      %313 = vsyncadd [#allocation7], %s312
      %s315 = sshll.u32 [#allocation8], 4
      %s316 = int_to_ptr.vmem [resolvable:$true] %s315
      %318 = dma.vmem_to_hbm [thread:$0]  %s316, 16, %s5, [#allocation7]
    $region33: #{bpr_forward.3} parent=1 // pred_fallthru
      _
    // Predicated region
    $region34: #{bpr_forward.3} parent=1 // pred_check
      _
    $region35: #{bpr_forward.3} parent=1 // pred_check_branch
      %320 = sbr.rel (0) target = $region37
    $region36: #{bpr_forward.3} parent=1 // pred_region
      %s322 = ssub.s32 16, 16
      %323 = vsyncadd [#allocation10], %s322
      %s325 = sshll.u32 [#allocation9], 4
      %s326 = int_to_ptr.vmem [resolvable:$true] %s325
      %328 = dma.vmem_to_hbm [thread:$0]  %s326, 16, %s6, [#allocation10]
    $region37: #{bpr_forward.3} parent=1 // pred_fallthru
      _
    // Predicated region
    $region38: #{bpr_forward.3} parent=1 // pred_check
      _
    $region39: #{bpr_forward.3} parent=1 // pred_check_branch
      %330 = sbr.rel (0) target = $region41
    $region40: #{bpr_forward.3} parent=1 // pred_region
      %331 = dma.done [#allocation5], 16
    $region41: #{bpr_forward.3} parent=1 // pred_fallthru
      _
    // Predicated region
    $region42: #{bpr_forward.3} parent=1 // pred_check
      _
    $region43: #{bpr_forward.3} parent=1 // pred_check_branch
      %333 = sbr.rel (0) target = $region45
    $region44: #{bpr_forward.3} parent=1 // pred_region
      %334 = dma.done [#allocation7], 16
    $region45: #{bpr_forward.3} parent=1 // pred_fallthru
      _
    // Predicated region
    $region46: #{bpr_forward.3} parent=1 // pred_check
      _
    $region47: #{bpr_forward.3} parent=1 // pred_check_branch
      %336 = sbr.rel (0) target = $region49
    $region48: #{bpr_forward.3} parent=1 // pred_region
      %337 = dma.done [#allocation7], 16
    $region49: #{bpr_forward.3} parent=1 // pred_fallthru
      _
    // Predicated region
    $region50: #{bpr_forward.3} parent=1 // pred_check
      _
    $region51: #{bpr_forward.3} parent=1 // pred_check_branch
      %339 = sbr.rel (0) target = $region53
    $region52: #{bpr_forward.3} parent=1 // pred_region
      %340 = dma.done [#allocation10], 16
    $region53: #{bpr_forward.3} parent=1 // pred_fallthru
      _
    %341 = vsyncpa [#allocation5], 1
    %342 = vsyncpa [#allocation7], 1
    %343 = vsyncpa [#allocation10], 1

// kernel: bpr_forward.2
$region0: #{bpr_forward.2}
  #allocation0 [shape = 'u32[]', space=smem, size = 0x4, offset = 0x4, fixed_abs, tag = 'smem constant byte address 0x4 - core index']
  #allocation1 [shape = 'u32[144,128]{1,0:T(1,128)}', space=vmem, size = 0x12000, scoped, tag = 'internal scratch']
  %s0 = inlined_call_operand.vmem [shape: bf16[768,512], index: 0, kind: input, shape index: {}]
  %s1 = inlined_call_operand.vmem [shape: bf16[512,768], index: 1, kind: input, shape index: {}]
  %s2 = inlined_call_operand.vmem [shape: f32[32,512], index: 2, kind: input, shape index: {}]
  %s3 = inlined_call_operand.vmem [shape: f32[32,768], index: 3, kind: input, shape index: {}]
  %s4 = inlined_call_operand.vmem [shape: f32[1,512], index: 4, kind: input, shape index: {}]
  %s5 = inlined_call_operand.vmem [shape: f32[1,768], index: 5, kind: input, shape index: {}]
  %s6 = inlined_call_operand.vmem [shape: f32[128,512], index: 6, kind: output, shape index: {0}]
  %s7 = inlined_call_operand.vmem [shape: f32[128,768], index: 7, kind: output, shape index: {1}]
  %8 = xla_tuple %s6, %s7
  %s9 = sld [smem:[#allocation0]]
  $region42: #{bpr_forward.2} parent=0
    _
  %s11 = ssub.s32 1, %s9
  %s12 = scalar_select 0, %s11, %s9
  // Predicated region
  $region2: #{bpr_forward.2} parent=0 // pred_check
    _
  $region3: #{bpr_forward.2} parent=0 // pred_check_branch
    %14 = sbr.rel (0) target = $region5
  $region4: #{bpr_forward.2} parent=0 // pred_region
    _
  $region5: #{bpr_forward.2} parent=0 // pred_fallthru
    _
  // Predicated region
  $region6: #{bpr_forward.2} parent=0 // pred_check
    _
  $region7: #{bpr_forward.2} parent=0 // pred_check_branch
    %16 = sbr.rel (0) target = $region9
  $region8: #{bpr_forward.2} parent=0 // pred_region
    _
  $region9: #{bpr_forward.2} parent=0 // pred_fallthru
    _
  // Predicated region
  $region10: #{bpr_forward.2} parent=0 // pred_check
    _
  $region11: #{bpr_forward.2} parent=0 // pred_check_branch
    %18 = sbr.rel (0) target = $region13
  $region12: #{bpr_forward.2} parent=0 // pred_region
    _
  $region13: #{bpr_forward.2} parent=0 // pred_fallthru
    _
  // Predicated region
  $region14: #{bpr_forward.2} parent=0 // pred_check
    _
  $region15: #{bpr_forward.2} parent=0 // pred_check_branch
    %20 = sbr.rel (0) target = $region17
  $region16: #{bpr_forward.2} parent=0 // pred_region
    _
  $region17: #{bpr_forward.2} parent=0 // pred_fallthru
    _
  // Predicated region
  $region18: #{bpr_forward.2} parent=0 // pred_check
    _
  $region19: #{bpr_forward.2} parent=0 // pred_check_branch
    %22 = sbr.rel (0) target = $region21
  $region20: #{bpr_forward.2} parent=0 // pred_region
    _
  $region21: #{bpr_forward.2} parent=0 // pred_fallthru
    _
  // Predicated region
  $region22: #{bpr_forward.2} parent=0 // pred_check
    _
  $region23: #{bpr_forward.2} parent=0 // pred_check_branch
    %24 = sbr.rel (0) target = $region25
  $region24: #{bpr_forward.2} parent=0 // pred_region
    _
  $region25: #{bpr_forward.2} parent=0 // pred_fallthru
    _
  %v25 = vld [vmem:[%s0] sm:$0xff]
  %v26 = vld [vmem:[%s0 + $0x8] sm:$0xff]
  %v27 = vld [vmem:[%s0 + $0x10] sm:$0xff]
  %v28 = vld [vmem:[%s0 + $0x18] sm:$0xff]
  %v29 = vld [vmem:[%s0 + $0x20] sm:$0xff]
  %v30 = vld [vmem:[%s0 + $0x28] sm:$0xff]
  %v31 = vld [vmem:[%s0 + $0x30] sm:$0xff]
  %v32 = vld [vmem:[%s0 + $0x38] sm:$0xff]
  %v33 = vld [vmem:[%s0 + $0x40] sm:$0xff]
  %v34 = vld [vmem:[%s0 + $0x48] sm:$0xff]
  %v35 = vld [vmem:[%s0 + $0x50] sm:$0xff]
  %v36 = vld [vmem:[%s0 + $0x58] sm:$0xff]
  %v37 = vld [vmem:[%s0 + $0x60] sm:$0xff]
  %v38 = vld [vmem:[%s0 + $0x68] sm:$0xff]
  %v39 = vld [vmem:[%s0 + $0x70] sm:$0xff]
  %v40 = vld [vmem:[%s0 + $0x78] sm:$0xff]
  %v41 = vld [vmem:[%s0 + $0x80] sm:$0xff]
  %v42 = vld [vmem:[%s0 + $0x88] sm:$0xff]
  %v43 = vld [vmem:[%s0 + $0x90] sm:$0xff]
  %v44 = vld [vmem:[%s0 + $0x98] sm:$0xff]
  %v45 = vld [vmem:[%s0 + $0xa0] sm:$0xff]
  %v46 = vld [vmem:[%s0 + $0xa8] sm:$0xff]
  %v47 = vld [vmem:[%s0 + $0xb0] sm:$0xff]
  %v48 = vld [vmem:[%s0 + $0xb8] sm:$0xff]
  %v49 = vld [vmem:[%s0 + $0xc0] sm:$0xff]
  %v50 = vld [vmem:[%s0 + $0xc8] sm:$0xff]
  %v51 = vld [vmem:[%s0 + $0xd0] sm:$0xff]
  %v52 = vld [vmem:[%s0 + $0xd8] sm:$0xff]
  %v53 = vld [vmem:[%s0 + $0xe0] sm:$0xff]
  %v54 = vld [vmem:[%s0 + $0xe8] sm:$0xff]
  %v55 = vld [vmem:[%s0 + $0xf0] sm:$0xff]
  %v56 = vld [vmem:[%s0 + $0xf8] sm:$0xff]
  %v57 = vld [vmem:[%s0 + $0x100] sm:$0xff]
  %v58 = vld [vmem:[%s0 + $0x108] sm:$0xff]
  %v59 = vld [vmem:[%s0 + $0x110] sm:$0xff]
  %v60 = vld [vmem:[%s0 + $0x118] sm:$0xff]
  %v61 = vld [vmem:[%s0 + $0x120] sm:$0xff]
  %v62 = vld [vmem:[%s0 + $0x128] sm:$0xff]
  %v63 = vld [vmem:[%s0 + $0x130] sm:$0xff]
  %v64 = vld [vmem:[%s0 + $0x138] sm:$0xff]
  %v65 = vld [vmem:[%s0 + $0x140] sm:$0xff]
  %v66 = vld [vmem:[%s0 + $0x148] sm:$0xff]
  %v67 = vld [vmem:[%s0 + $0x150] sm:$0xff]
  %v68 = vld [vmem:[%s0 + $0x158] sm:$0xff]
  %v69 = vld [vmem:[%s0 + $0x160] sm:$0xff]
  %v70 = vld [vmem:[%s0 + $0x168] sm:$0xff]
  %v71 = vld [vmem:[%s0 + $0x170] sm:$0xff]
  %v72 = vld [vmem:[%s0 + $0x178] sm:$0xff]
  %v73 = vld [vmem:[%s0 + $0x180] sm:$0xff]
  %v74 = vld [vmem:[%s0 + $0x188] sm:$0xff]
  %v75 = vld [vmem:[%s0 + $0x190] sm:$0xff]
  %v76 = vld [vmem:[%s0 + $0x198] sm:$0xff]
  %v77 = vld [vmem:[%s0 + $0x1a0] sm:$0xff]
  %v78 = vld [vmem:[%s0 + $0x1a8] sm:$0xff]
  %v79 = vld [vmem:[%s0 + $0x1b0] sm:$0xff]
  %v80 = vld [vmem:[%s0 + $0x1b8] sm:$0xff]
  %v81 = vld [vmem:[%s0 + $0x1c0] sm:$0xff]
  %v82 = vld [vmem:[%s0 + $0x1c8] sm:$0xff]
  %v83 = vld [vmem:[%s0 + $0x1d0] sm:$0xff]
  %v84 = vld [vmem:[%s0 + $0x1d8] sm:$0xff]
  %v85 = vld [vmem:[%s0 + $0x1e0] sm:$0xff]
  %v86 = vld [vmem:[%s0 + $0x1e8] sm:$0xff]
  %v87 = vld [vmem:[%s0 + $0x1f0] sm:$0xff]
  %v88 = vld [vmem:[%s0 + $0x1f8] sm:$0xff]
  %v89 = vld [vmem:[%s0 + $0x200] sm:$0xff]
  %v90 = vld [vmem:[%s0 + $0x208] sm:$0xff]
  %v91 = vld [vmem:[%s0 + $0x210] sm:$0xff]
  %v92 = vld [vmem:[%s0 + $0x218] sm:$0xff]
  %v93 = vld [vmem:[%s0 + $0x220] sm:$0xff]
  %v94 = vld [vmem:[%s0 + $0x228] sm:$0xff]
  %v95 = vld [vmem:[%s0 + $0x230] sm:$0xff]
  %v96 = vld [vmem:[%s0 + $0x238] sm:$0xff]
  %v97 = vld [vmem:[%s0 + $0x240] sm:$0xff]
  %v98 = vld [vmem:[%s0 + $0x248] sm:$0xff]
  %v99 = vld [vmem:[%s0 + $0x250] sm:$0xff]
  %v100 = vld [vmem:[%s0 + $0x258] sm:$0xff]
  %v101 = vld [vmem:[%s0 + $0x260] sm:$0xff]
  %v102 = vld [vmem:[%s0 + $0x268] sm:$0xff]
  %v103 = vld [vmem:[%s0 + $0x270] sm:$0xff]
  %v104 = vld [vmem:[%s0 + $0x278] sm:$0xff]
  %v105 = vld [vmem:[%s0 + $0x280] sm:$0xff]
  %v106 = vld [vmem:[%s0 + $0x288] sm:$0xff]
  %v107 = vld [vmem:[%s0 + $0x290] sm:$0xff]
  %v108 = vld [vmem:[%s0 + $0x298] sm:$0xff]
  %v109 = vld [vmem:[%s0 + $0x2a0] sm:$0xff]
  %v110 = vld [vmem:[%s0 + $0x2a8] sm:$0xff]
  %v111 = vld [vmem:[%s0 + $0x2b0] sm:$0xff]
  %v112 = vld [vmem:[%s0 + $0x2b8] sm:$0xff]
  %v113 = vld [vmem:[%s0 + $0x2c0] sm:$0xff]
  %v114 = vld [vmem:[%s0 + $0x2c8] sm:$0xff]
  %v115 = vld [vmem:[%s0 + $0x2d0] sm:$0xff]
  %v116 = vld [vmem:[%s0 + $0x2d8] sm:$0xff]
  %v117 = vld [vmem:[%s0 + $0x2e0] sm:$0xff]
  %v118 = vld [vmem:[%s0 + $0x2e8] sm:$0xff]
  %v119 = vld [vmem:[%s0 + $0x2f0] sm:$0xff]
  %v120 = vld [vmem:[%s0 + $0x2f8] sm:$0xff]
  %v121 = vld [vmem:[%s0 + $0x300] sm:$0xff]
  %v122 = vld [vmem:[%s0 + $0x308] sm:$0xff]
  %v123 = vld [vmem:[%s0 + $0x310] sm:$0xff]
  %v124 = vld [vmem:[%s0 + $0x318] sm:$0xff]
  %v125 = vld [vmem:[%s0 + $0x320] sm:$0xff]
  %v126 = vld [vmem:[%s0 + $0x328] sm:$0xff]
  %v127 = vld [vmem:[%s0 + $0x330] sm:$0xff]
  %v128 = vld [vmem:[%s0 + $0x338] sm:$0xff]
  %v129 = vld [vmem:[%s0 + $0x340] sm:$0xff]
  %v130 = vld [vmem:[%s0 + $0x348] sm:$0xff]
  %v131 = vld [vmem:[%s0 + $0x350] sm:$0xff]
  %v132 = vld [vmem:[%s0 + $0x358] sm:$0xff]
  %v133 = vld [vmem:[%s0 + $0x360] sm:$0xff]
  %v134 = vld [vmem:[%s0 + $0x368] sm:$0xff]
  %v135 = vld [vmem:[%s0 + $0x370] sm:$0xff]
  %v136 = vld [vmem:[%s0 + $0x378] sm:$0xff]
  %v137 = vld [vmem:[%s0 + $0x380] sm:$0xff]
  %v138 = vld [vmem:[%s0 + $0x388] sm:$0xff]
  %v139 = vld [vmem:[%s0 + $0x390] sm:$0xff]
  %v140 = vld [vmem:[%s0 + $0x398] sm:$0xff]
  %v141 = vld [vmem:[%s0 + $0x3a0] sm:$0xff]
  %v142 = vld [vmem:[%s0 + $0x3a8] sm:$0xff]
  %v143 = vld [vmem:[%s0 + $0x3b0] sm:$0xff]
  %v144 = vld [vmem:[%s0 + $0x3b8] sm:$0xff]
  %v145 = vld [vmem:[%s0 + $0x3c0] sm:$0xff]
  %v146 = vld [vmem:[%s0 + $0x3c8] sm:$0xff]
  %v147 = vld [vmem:[%s0 + $0x3d0] sm:$0xff]
  %v148 = vld [vmem:[%s0 + $0x3d8] sm:$0xff]
  %v149 = vld [vmem:[%s0 + $0x3e0] sm:$0xff]
  %v150 = vld [vmem:[%s0 + $0x3e8] sm:$0xff]
  %v151 = vld [vmem:[%s0 + $0x3f0] sm:$0xff]
  %v152 = vld [vmem:[%s0 + $0x3f8] sm:$0xff]
  %v153 = vld [vmem:[%s0 + $0x400] sm:$0xff]
  %v154 = vld [vmem:[%s0 + $0x408] sm:$0xff]
  %v155 = vld [vmem:[%s0 + $0x410] sm:$0xff]
  %v156 = vld [vmem:[%s0 + $0x418] sm:$0xff]
  %v157 = vld [vmem:[%s0 + $0x420] sm:$0xff]
  %v158 = vld [vmem:[%s0 + $0x428] sm:$0xff]
  %v159 = vld [vmem:[%s0 + $0x430] sm:$0xff]
  %v160 = vld [vmem:[%s0 + $0x438] sm:$0xff]
  %v161 = vld [vmem:[%s0 + $0x440] sm:$0xff]
  %v162 = vld [vmem:[%s0 + $0x448] sm:$0xff]
  %v163 = vld [vmem:[%s0 + $0x450] sm:$0xff]
  %v164 = vld [vmem:[%s0 + $0x458] sm:$0xff]
  %v165 = vld [vmem:[%s0 + $0x460] sm:$0xff]
  %v166 = vld [vmem:[%s0 + $0x468] sm:$0xff]
  %v167 = vld [vmem:[%s0 + $0x470] sm:$0xff]
  %v168 = vld [vmem:[%s0 + $0x478] sm:$0xff]
  %v169 = vld [vmem:[%s0 + $0x480] sm:$0xff]
  %v170 = vld [vmem:[%s0 + $0x488] sm:$0xff]
  %v171 = vld [vmem:[%s0 + $0x490] sm:$0xff]
  %v172 = vld [vmem:[%s0 + $0x498] sm:$0xff]
  %v173 = vld [vmem:[%s0 + $0x4a0] sm:$0xff]
  %v174 = vld [vmem:[%s0 + $0x4a8] sm:$0xff]
  %v175 = vld [vmem:[%s0 + $0x4b0] sm:$0xff]
  %v176 = vld [vmem:[%s0 + $0x4b8] sm:$0xff]
  %v177 = vld [vmem:[%s0 + $0x4c0] sm:$0xff]
  %v178 = vld [vmem:[%s0 + $0x4c8] sm:$0xff]
  %v179 = vld [vmem:[%s0 + $0x4d0] sm:$0xff]
  %v180 = vld [vmem:[%s0 + $0x4d8] sm:$0xff]
  %v181 = vld [vmem:[%s0 + $0x4e0] sm:$0xff]
  %v182 = vld [vmem:[%s0 + $0x4e8] sm:$0xff]
  %v183 = vld [vmem:[%s0 + $0x4f0] sm:$0xff]
  %v184 = vld [vmem:[%s0 + $0x4f8] sm:$0xff]
  %v185 = vld [vmem:[%s0 + $0x500] sm:$0xff]
  %v186 = vld [vmem:[%s0 + $0x508] sm:$0xff]
  %v187 = vld [vmem:[%s0 + $0x510] sm:$0xff]
  %v188 = vld [vmem:[%s0 + $0x518] sm:$0xff]
  %v189 = vld [vmem:[%s0 + $0x520] sm:$0xff]
  %v190 = vld [vmem:[%s0 + $0x528] sm:$0xff]
  %v191 = vld [vmem:[%s0 + $0x530] sm:$0xff]
  %v192 = vld [vmem:[%s0 + $0x538] sm:$0xff]
  %v193 = vld [vmem:[%s0 + $0x540] sm:$0xff]
  %v194 = vld [vmem:[%s0 + $0x548] sm:$0xff]
  %v195 = vld [vmem:[%s0 + $0x550] sm:$0xff]
  %v196 = vld [vmem:[%s0 + $0x558] sm:$0xff]
  %v197 = vld [vmem:[%s0 + $0x560] sm:$0xff]
  %v198 = vld [vmem:[%s0 + $0x568] sm:$0xff]
  %v199 = vld [vmem:[%s0 + $0x570] sm:$0xff]
  %v200 = vld [vmem:[%s0 + $0x578] sm:$0xff]
  %v201 = vld [vmem:[%s0 + $0x580] sm:$0xff]
  %v202 = vld [vmem:[%s0 + $0x588] sm:$0xff]
  %v203 = vld [vmem:[%s0 + $0x590] sm:$0xff]
  %v204 = vld [vmem:[%s0 + $0x598] sm:$0xff]
  %v205 = vld [vmem:[%s0 + $0x5a0] sm:$0xff]
  %v206 = vld [vmem:[%s0 + $0x5a8] sm:$0xff]
  %v207 = vld [vmem:[%s0 + $0x5b0] sm:$0xff]
  %v208 = vld [vmem:[%s0 + $0x5b8] sm:$0xff]
  %v209 = vld [vmem:[%s0 + $0x5c0] sm:$0xff]
  %v210 = vld [vmem:[%s0 + $0x5c8] sm:$0xff]
  %v211 = vld [vmem:[%s0 + $0x5d0] sm:$0xff]
  %v212 = vld [vmem:[%s0 + $0x5d8] sm:$0xff]
  %v213 = vld [vmem:[%s0 + $0x5e0] sm:$0xff]
  %v214 = vld [vmem:[%s0 + $0x5e8] sm:$0xff]
  %v215 = vld [vmem:[%s0 + $0x5f0] sm:$0xff]
  %v216 = vld [vmem:[%s0 + $0x5f8] sm:$0xff]
  %v217 = vld [vmem:[%s1] sm:$0xff]
  %v218 = vld [vmem:[%s1 + $0x8] sm:$0xff]
  %v219 = vld [vmem:[%s1 + $0x10] sm:$0xff]
  %v220 = vld [vmem:[%s1 + $0x18] sm:$0xff]
  %v221 = vld [vmem:[%s1 + $0x20] sm:$0xff]
  %v222 = vld [vmem:[%s1 + $0x28] sm:$0xff]
  %v223 = vld [vmem:[%s1 + $0x30] sm:$0xff]
  %v224 = vld [vmem:[%s1 + $0x38] sm:$0xff]
  %v225 = vld [vmem:[%s1 + $0x40] sm:$0xff]
  %v226 = vld [vmem:[%s1 + $0x48] sm:$0xff]
  %v227 = vld [vmem:[%s1 + $0x50] sm:$0xff]
  %v228 = vld [vmem:[%s1 + $0x58] sm:$0xff]
  %v229 = vld [vmem:[%s1 + $0x60] sm:$0xff]
  %v230 = vld [vmem:[%s1 + $0x68] sm:$0xff]
  %v231 = vld [vmem:[%s1 + $0x70] sm:$0xff]
  %v232 = vld [vmem:[%s1 + $0x78] sm:$0xff]
  %v233 = vld [vmem:[%s1 + $0x80] sm:$0xff]
  %v234 = vld [vmem:[%s1 + $0x88] sm:$0xff]
  %v235 = vld [vmem:[%s1 + $0x90] sm:$0xff]
  %v236 = vld [vmem:[%s1 + $0x98] sm:$0xff]
  %v237 = vld [vmem:[%s1 + $0xa0] sm:$0xff]
  %v238 = vld [vmem:[%s1 + $0xa8] sm:$0xff]
  %v239 = vld [vmem:[%s1 + $0xb0] sm:$0xff]
  %v240 = vld [vmem:[%s1 + $0xb8] sm:$0xff]
  %v241 = vld [vmem:[%s1 + $0xc0] sm:$0xff]
  %v242 = vld [vmem:[%s1 + $0xc8] sm:$0xff]
  %v243 = vld [vmem:[%s1 + $0xd0] sm:$0xff]
  %v244 = vld [vmem:[%s1 + $0xd8] sm:$0xff]
  %v245 = vld [vmem:[%s1 + $0xe0] sm:$0xff]
  %v246 = vld [vmem:[%s1 + $0xe8] sm:$0xff]
  %v247 = vld [vmem:[%s1 + $0xf0] sm:$0xff]
  %v248 = vld [vmem:[%s1 + $0xf8] sm:$0xff]
  %v249 = vld [vmem:[%s1 + $0x100] sm:$0xff]
  %v250 = vld [vmem:[%s1 + $0x108] sm:$0xff]
  %v251 = vld [vmem:[%s1 + $0x110] sm:$0xff]
  %v252 = vld [vmem:[%s1 + $0x118] sm:$0xff]
  %v253 = vld [vmem:[%s1 + $0x120] sm:$0xff]
  %v254 = vld [vmem:[%s1 + $0x128] sm:$0xff]
  %v255 = vld [vmem:[%s1 + $0x130] sm:$0xff]
  %v256 = vld [vmem:[%s1 + $0x138] sm:$0xff]
  %v257 = vld [vmem:[%s1 + $0x140] sm:$0xff]
  %v258 = vld [vmem:[%s1 + $0x148] sm:$0xff]
  %v259 = vld [vmem:[%s1 + $0x150] sm:$0xff]
  %v260 = vld [vmem:[%s1 + $0x158] sm:$0xff]
  %v261 = vld [vmem:[%s1 + $0x160] sm:$0xff]
  %v262 = vld [vmem:[%s1 + $0x168] sm:$0xff]
  %v263 = vld [vmem:[%s1 + $0x170] sm:$0xff]
  %v264 = vld [vmem:[%s1 + $0x178] sm:$0xff]
  %v265 = vld [vmem:[%s1 + $0x180] sm:$0xff]
  %v266 = vld [vmem:[%s1 + $0x188] sm:$0xff]
  %v267 = vld [vmem:[%s1 + $0x190] sm:$0xff]
  %v268 = vld [vmem:[%s1 + $0x198] sm:$0xff]
  %v269 = vld [vmem:[%s1 + $0x1a0] sm:$0xff]
  %v270 = vld [vmem:[%s1 + $0x1a8] sm:$0xff]
  %v271 = vld [vmem:[%s1 + $0x1b0] sm:$0xff]
  %v272 = vld [vmem:[%s1 + $0x1b8] sm:$0xff]
  %v273 = vld [vmem:[%s1 + $0x1c0] sm:$0xff]
  %v274 = vld [vmem:[%s1 + $0x1c8] sm:$0xff]
  %v275 = vld [vmem:[%s1 + $0x1d0] sm:$0xff]
  %v276 = vld [vmem:[%s1 + $0x1d8] sm:$0xff]
  %v277 = vld [vmem:[%s1 + $0x1e0] sm:$0xff]
  %v278 = vld [vmem:[%s1 + $0x1e8] sm:$0xff]
  %v279 = vld [vmem:[%s1 + $0x1f0] sm:$0xff]
  %v280 = vld [vmem:[%s1 + $0x1f8] sm:$0xff]
  %v281 = vld [vmem:[%s1 + $0x200] sm:$0xff]
  %v282 = vld [vmem:[%s1 + $0x208] sm:$0xff]
  %v283 = vld [vmem:[%s1 + $0x210] sm:$0xff]
  %v284 = vld [vmem:[%s1 + $0x218] sm:$0xff]
  %v285 = vld [vmem:[%s1 + $0x220] sm:$0xff]
  %v286 = vld [vmem:[%s1 + $0x228] sm:$0xff]
  %v287 = vld [vmem:[%s1 + $0x230] sm:$0xff]
  %v288 = vld [vmem:[%s1 + $0x238] sm:$0xff]
  %v289 = vld [vmem:[%s1 + $0x240] sm:$0xff]
  %v290 = vld [vmem:[%s1 + $0x248] sm:$0xff]
  %v291 = vld [vmem:[%s1 + $0x250] sm:$0xff]
  %v292 = vld [vmem:[%s1 + $0x258] sm:$0xff]
  %v293 = vld [vmem:[%s1 + $0x260] sm:$0xff]
  %v294 = vld [vmem:[%s1 + $0x268] sm:$0xff]
  %v295 = vld [vmem:[%s1 + $0x270] sm:$0xff]
  %v296 = vld [vmem:[%s1 + $0x278] sm:$0xff]
  %v297 = vld [vmem:[%s1 + $0x280] sm:$0xff]
  %v298 = vld [vmem:[%s1 + $0x288] sm:$0xff]
  %v299 = vld [vmem:[%s1 + $0x290] sm:$0xff]
  %v300 = vld [vmem:[%s1 + $0x298] sm:$0xff]
  %v301 = vld [vmem:[%s1 + $0x2a0] sm:$0xff]
  %v302 = vld [vmem:[%s1 + $0x2a8] sm:$0xff]
  %v303 = vld [vmem:[%s1 + $0x2b0] sm:$0xff]
  %v304 = vld [vmem:[%s1 + $0x2b8] sm:$0xff]
  %v305 = vld [vmem:[%s1 + $0x2c0] sm:$0xff]
  %v306 = vld [vmem:[%s1 + $0x2c8] sm:$0xff]
  %v307 = vld [vmem:[%s1 + $0x2d0] sm:$0xff]
  %v308 = vld [vmem:[%s1 + $0x2d8] sm:$0xff]
  %v309 = vld [vmem:[%s1 + $0x2e0] sm:$0xff]
  %v310 = vld [vmem:[%s1 + $0x2e8] sm:$0xff]
  %v311 = vld [vmem:[%s1 + $0x2f0] sm:$0xff]
  %v312 = vld [vmem:[%s1 + $0x2f8] sm:$0xff]
  %v313 = vld [vmem:[%s1 + $0x300] sm:$0xff]
  %v314 = vld [vmem:[%s1 + $0x308] sm:$0xff]
  %v315 = vld [vmem:[%s1 + $0x310] sm:$0xff]
  %v316 = vld [vmem:[%s1 + $0x318] sm:$0xff]
  %v317 = vld [vmem:[%s1 + $0x320] sm:$0xff]
  %v318 = vld [vmem:[%s1 + $0x328] sm:$0xff]
  %v319 = vld [vmem:[%s1 + $0x330] sm:$0xff]
  %v320 = vld [vmem:[%s1 + $0x338] sm:$0xff]
  %v321 = vld [vmem:[%s1 + $0x340] sm:$0xff]
  %v322 = vld [vmem:[%s1 + $0x348] sm:$0xff]
  %v323 = vld [vmem:[%s1 + $0x350] sm:$0xff]
  %v324 = vld [vmem:[%s1 + $0x358] sm:$0xff]
  %v325 = vld [vmem:[%s1 + $0x360] sm:$0xff]
  %v326 = vld [vmem:[%s1 + $0x368] sm:$0xff]
  %v327 = vld [vmem:[%s1 + $0x370] sm:$0xff]
  %v328 = vld [vmem:[%s1 + $0x378] sm:$0xff]
  %v329 = vld [vmem:[%s1 + $0x380] sm:$0xff]
  %v330 = vld [vmem:[%s1 + $0x388] sm:$0xff]
  %v331 = vld [vmem:[%s1 + $0x390] sm:$0xff]
  %v332 = vld [vmem:[%s1 + $0x398] sm:$0xff]
  %v333 = vld [vmem:[%s1 + $0x3a0] sm:$0xff]
  %v334 = vld [vmem:[%s1 + $0x3a8] sm:$0xff]
  %v335 = vld [vmem:[%s1 + $0x3b0] sm:$0xff]
  %v336 = vld [vmem:[%s1 + $0x3b8] sm:$0xff]
  %v337 = vld [vmem:[%s1 + $0x3c0] sm:$0xff]
  %v338 = vld [vmem:[%s1 + $0x3c8] sm:$0xff]
  %v339 = vld [vmem:[%s1 + $0x3d0] sm:$0xff]
  %v340 = vld [vmem:[%s1 + $0x3d8] sm:$0xff]
  %v341 = vld [vmem:[%s1 + $0x3e0] sm:$0xff]
  %v342 = vld [vmem:[%s1 + $0x3e8] sm:$0xff]
  %v343 = vld [vmem:[%s1 + $0x3f0] sm:$0xff]
  %v344 = vld [vmem:[%s1 + $0x3f8] sm:$0xff]
  %v345 = vld [vmem:[%s1 + $0x400] sm:$0xff]
  %v346 = vld [vmem:[%s1 + $0x408] sm:$0xff]
  %v347 = vld [vmem:[%s1 + $0x410] sm:$0xff]
  %v348 = vld [vmem:[%s1 + $0x418] sm:$0xff]
  %v349 = vld [vmem:[%s1 + $0x420] sm:$0xff]
  %v350 = vld [vmem:[%s1 + $0x428] sm:$0xff]
  %v351 = vld [vmem:[%s1 + $0x430] sm:$0xff]
  %v352 = vld [vmem:[%s1 + $0x438] sm:$0xff]
  %v353 = vld [vmem:[%s1 + $0x440] sm:$0xff]
  %v354 = vld [vmem:[%s1 + $0x448] sm:$0xff]
  %v355 = vld [vmem:[%s1 + $0x450] sm:$0xff]
  %v356 = vld [vmem:[%s1 + $0x458] sm:$0xff]
  %v357 = vld [vmem:[%s1 + $0x460] sm:$0xff]
  %v358 = vld [vmem:[%s1 + $0x468] sm:$0xff]
  %v359 = vld [vmem:[%s1 + $0x470] sm:$0xff]
  %v360 = vld [vmem:[%s1 + $0x478] sm:$0xff]
  %v361 = vld [vmem:[%s1 + $0x480] sm:$0xff]
  %v362 = vld [vmem:[%s1 + $0x488] sm:$0xff]
  %v363 = vld [vmem:[%s1 + $0x490] sm:$0xff]
  %v364 = vld [vmem:[%s1 + $0x498] sm:$0xff]
  %v365 = vld [vmem:[%s1 + $0x4a0] sm:$0xff]
  %v366 = vld [vmem:[%s1 + $0x4a8] sm:$0xff]
  %v367 = vld [vmem:[%s1 + $0x4b0] sm:$0xff]
  %v368 = vld [vmem:[%s1 + $0x4b8] sm:$0xff]
  %v369 = vld [vmem:[%s1 + $0x4c0] sm:$0xff]
  %v370 = vld [vmem:[%s1 + $0x4c8] sm:$0xff]
  %v371 = vld [vmem:[%s1 + $0x4d0] sm:$0xff]
  %v372 = vld [vmem:[%s1 + $0x4d8] sm:$0xff]
  %v373 = vld [vmem:[%s1 + $0x4e0] sm:$0xff]
  %v374 = vld [vmem:[%s1 + $0x4e8] sm:$0xff]
  %v375 = vld [vmem:[%s1 + $0x4f0] sm:$0xff]
  %v376 = vld [vmem:[%s1 + $0x4f8] sm:$0xff]
  %v377 = vld [vmem:[%s1 + $0x500] sm:$0xff]
  %v378 = vld [vmem:[%s1 + $0x508] sm:$0xff]
  %v379 = vld [vmem:[%s1 + $0x510] sm:$0xff]
  %v380 = vld [vmem:[%s1 + $0x518] sm:$0xff]
  %v381 = vld [vmem:[%s1 + $0x520] sm:$0xff]
  %v382 = vld [vmem:[%s1 + $0x528] sm:$0xff]
  %v383 = vld [vmem:[%s1 + $0x530] sm:$0xff]
  %v384 = vld [vmem:[%s1 + $0x538] sm:$0xff]
  %v385 = vld [vmem:[%s1 + $0x540] sm:$0xff]
  %v386 = vld [vmem:[%s1 + $0x548] sm:$0xff]
  %v387 = vld [vmem:[%s1 + $0x550] sm:$0xff]
  %v388 = vld [vmem:[%s1 + $0x558] sm:$0xff]
  %v389 = vld [vmem:[%s1 + $0x560] sm:$0xff]
  %v390 = vld [vmem:[%s1 + $0x568] sm:$0xff]
  %v391 = vld [vmem:[%s1 + $0x570] sm:$0xff]
  %v392 = vld [vmem:[%s1 + $0x578] sm:$0xff]
  %v393 = vld [vmem:[%s1 + $0x580] sm:$0xff]
  %v394 = vld [vmem:[%s1 + $0x588] sm:$0xff]
  %v395 = vld [vmem:[%s1 + $0x590] sm:$0xff]
  %v396 = vld [vmem:[%s1 + $0x598] sm:$0xff]
  %v397 = vld [vmem:[%s1 + $0x5a0] sm:$0xff]
  %v398 = vld [vmem:[%s1 + $0x5a8] sm:$0xff]
  %v399 = vld [vmem:[%s1 + $0x5b0] sm:$0xff]
  %v400 = vld [vmem:[%s1 + $0x5b8] sm:$0xff]
  %v401 = vld [vmem:[%s1 + $0x5c0] sm:$0xff]
  %v402 = vld [vmem:[%s1 + $0x5c8] sm:$0xff]
  %v403 = vld [vmem:[%s1 + $0x5d0] sm:$0xff]
  %v404 = vld [vmem:[%s1 + $0x5d8] sm:$0xff]
  %v405 = vld [vmem:[%s1 + $0x5e0] sm:$0xff]
  %v406 = vld [vmem:[%s1 + $0x5e8] sm:$0xff]
  %v407 = vld [vmem:[%s1 + $0x5f0] sm:$0xff]
  %v408 = vld [vmem:[%s1 + $0x5f8] sm:$0xff]
  %v409 = vld [vmem:[%s2] sm:$0xff]
  %v410 = vld [vmem:[%s2 + $0x8] sm:$0xff]
  %v411 = vld [vmem:[%s2 + $0x10] sm:$0xff]
  %v412 = vld [vmem:[%s2 + $0x18] sm:$0xff]
  %v413 = vld [vmem:[%s2 + $0x20] sm:$0xff]
  %v414 = vld [vmem:[%s2 + $0x28] sm:$0xff]
  %v415 = vld [vmem:[%s2 + $0x30] sm:$0xff]
  %v416 = vld [vmem:[%s2 + $0x38] sm:$0xff]
  %v417 = vld [vmem:[%s2 + $0x40] sm:$0xff]
  %v418 = vld [vmem:[%s2 + $0x48] sm:$0xff]
  %v419 = vld [vmem:[%s2 + $0x50] sm:$0xff]
  %v420 = vld [vmem:[%s2 + $0x58] sm:$0xff]
  %v421 = vld [vmem:[%s2 + $0x60] sm:$0xff]
  %v422 = vld [vmem:[%s2 + $0x68] sm:$0xff]
  %v423 = vld [vmem:[%s2 + $0x70] sm:$0xff]
  %v424 = vld [vmem:[%s2 + $0x78] sm:$0xff]
  %v425 = vld [vmem:[%s3] sm:$0xff]
  %v426 = vld [vmem:[%s3 + $0x8] sm:$0xff]
  %v427 = vld [vmem:[%s3 + $0x10] sm:$0xff]
  %v428 = vld [vmem:[%s3 + $0x18] sm:$0xff]
  %v429 = vld [vmem:[%s3 + $0x20] sm:$0xff]
  %v430 = vld [vmem:[%s3 + $0x28] sm:$0xff]
  %v431 = vld [vmem:[%s3 + $0x30] sm:$0xff]
  %v432 = vld [vmem:[%s3 + $0x38] sm:$0xff]
  %v433 = vld [vmem:[%s3 + $0x40] sm:$0xff]
  %v434 = vld [vmem:[%s3 + $0x48] sm:$0xff]
  %v435 = vld [vmem:[%s3 + $0x50] sm:$0xff]
  %v436 = vld [vmem:[%s3 + $0x58] sm:$0xff]
  %v437 = vld [vmem:[%s3 + $0x60] sm:$0xff]
  %v438 = vld [vmem:[%s3 + $0x68] sm:$0xff]
  %v439 = vld [vmem:[%s3 + $0x70] sm:$0xff]
  %v440 = vld [vmem:[%s3 + $0x78] sm:$0xff]
  %v441 = vld [vmem:[%s3 + $0x80] sm:$0xff]
  %v442 = vld [vmem:[%s3 + $0x88] sm:$0xff]
  %v443 = vld [vmem:[%s3 + $0x90] sm:$0xff]
  %v444 = vld [vmem:[%s3 + $0x98] sm:$0xff]
  %v445 = vld [vmem:[%s3 + $0xa0] sm:$0xff]
  %v446 = vld [vmem:[%s3 + $0xa8] sm:$0xff]
  %v447 = vld [vmem:[%s3 + $0xb0] sm:$0xff]
  %v448 = vld [vmem:[%s3 + $0xb8] sm:$0xff]
  %v449 = vld [vmem:[%s4] sm:$0xf]
  %v450 = vld [vmem:[%s5] sm:$0x3f]
  %v451 = vpack.c.bf16 %v431, %v425
  %v452 = vpack.c.bf16 %v432, %v426
  %v453 = vpack.c.bf16 %v433, %v427
  %v454 = vpack.c.bf16 %v434, %v428
  %v455 = vpack.c.bf16 %v435, %v429
  %v456 = vpack.c.bf16 %v436, %v430
  %v457 = vpack.c.bf16 %v443, %v437
  %v458 = vpack.c.bf16 %v444, %v438
  %v459 = vpack.c.bf16 %v445, %v439
  %v460 = vpack.c.bf16 %v446, %v440
  %v461 = vpack.c.bf16 %v447, %v441
  %v462 = vpack.c.bf16 %v448, %v442
  %v464 = vlaneseq
  %v465 = vshrl.u32 %v464, 7
  %v466 = vsub.s32 0, %v465
  %v467 = vrot.slane %v449, %v466
  %v468 = vlaneseq
  %v469 = vshrl.u32 %v468, 7
  %v470 = vsub.s32 1, %v469
  %v471 = vrot.slane %v449, %v470
  %v472 = vlaneseq
  %v473 = vshrl.u32 %v472, 7
  %v474 = vsub.s32 2, %v473
  %v475 = vrot.slane %v449, %v474
  %v476 = vlaneseq
  %v477 = vshrl.u32 %v476, 7
  %v478 = vsub.s32 3, %v477
  %v479 = vrot.slane %v449, %v478
  %v484 = vmul.f32 %v409, %v467
  %v485 = vmul.f32 %v410, %v471
  %v486 = vmul.f32 %v411, %v475
  %v487 = vmul.f32 %v412, %v479
  %v488 = vmul.f32 %v413, %v467
  %v489 = vmul.f32 %v414, %v471
  %v490 = vmul.f32 %v415, %v475
  %v491 = vmul.f32 %v416, %v479
  %v492 = vmul.f32 %v417, %v467
  %v493 = vmul.f32 %v418, %v471
  %v494 = vmul.f32 %v419, %v475
  %v495 = vmul.f32 %v420, %v479
  %v496 = vmul.f32 %v421, %v467
  %v497 = vmul.f32 %v422, %v471
  %v498 = vmul.f32 %v423, %v475
  %v499 = vmul.f32 %v424, %v479
  %v692 = vunpack.c.l.b16 %v25
  %v693 = vunpack.c.h.b16 %v25
  %v694 = vunpack.c.l.b16 %v26
  %v695 = vunpack.c.h.b16 %v26
  %v696 = vunpack.c.l.b16 %v27
  %v697 = vunpack.c.h.b16 %v27
  %v698 = vunpack.c.l.b16 %v28
  %v699 = vunpack.c.h.b16 %v28
  %v700 = vunpack.c.l.b16 %v29
  %v701 = vunpack.c.h.b16 %v29
  %v702 = vunpack.c.l.b16 %v30
  %v703 = vunpack.c.h.b16 %v30
  %v704 = vunpack.c.l.b16 %v31
  %v705 = vunpack.c.h.b16 %v31
  %v706 = vunpack.c.l.b16 %v32
  %v707 = vunpack.c.h.b16 %v32
  %v708 = vunpack.c.l.b16 %v33
  %v709 = vunpack.c.h.b16 %v33
  %v710 = vunpack.c.l.b16 %v34
  %v711 = vunpack.c.h.b16 %v34
  %v712 = vunpack.c.l.b16 %v35
  %v713 = vunpack.c.h.b16 %v35
  %v714 = vunpack.c.l.b16 %v36
  %v715 = vunpack.c.h.b16 %v36
  %v716 = vunpack.c.l.b16 %v37
  %v717 = vunpack.c.h.b16 %v37
  %v718 = vunpack.c.l.b16 %v38
  %v719 = vunpack.c.h.b16 %v38
  %v720 = vunpack.c.l.b16 %v39
  %v721 = vunpack.c.h.b16 %v39
  %v722 = vunpack.c.l.b16 %v40
  %v723 = vunpack.c.h.b16 %v40
  %v724 = vunpack.c.l.b16 %v41
  %v725 = vunpack.c.h.b16 %v41
  %v726 = vunpack.c.l.b16 %v42
  %v727 = vunpack.c.h.b16 %v42
  %v728 = vunpack.c.l.b16 %v43
  %v729 = vunpack.c.h.b16 %v43
  %v730 = vunpack.c.l.b16 %v44
  %v731 = vunpack.c.h.b16 %v44
  %v732 = vunpack.c.l.b16 %v45
  %v733 = vunpack.c.h.b16 %v45
  %v734 = vunpack.c.l.b16 %v46
  %v735 = vunpack.c.h.b16 %v46
  %v736 = vunpack.c.l.b16 %v47
  %v737 = vunpack.c.h.b16 %v47
  %v738 = vunpack.c.l.b16 %v48
  %v739 = vunpack.c.h.b16 %v48
  %v740 = vunpack.c.l.b16 %v49
  %v741 = vunpack.c.h.b16 %v49
  %v742 = vunpack.c.l.b16 %v50
  %v743 = vunpack.c.h.b16 %v50
  %v744 = vunpack.c.l.b16 %v51
  %v745 = vunpack.c.h.b16 %v51
  %v746 = vunpack.c.l.b16 %v52
  %v747 = vunpack.c.h.b16 %v52
  %v748 = vunpack.c.l.b16 %v53
  %v749 = vunpack.c.h.b16 %v53
  %v750 = vunpack.c.l.b16 %v54
  %v751 = vunpack.c.h.b16 %v54
  %v752 = vunpack.c.l.b16 %v55
  %v753 = vunpack.c.h.b16 %v55
  %v754 = vunpack.c.l.b16 %v56
  %v755 = vunpack.c.h.b16 %v56
  %v756 = vunpack.c.l.b16 %v57
  %v757 = vunpack.c.h.b16 %v57
  %v758 = vunpack.c.l.b16 %v58
  %v759 = vunpack.c.h.b16 %v58
  %v760 = vunpack.c.l.b16 %v59
  %v761 = vunpack.c.h.b16 %v59
  %v762 = vunpack.c.l.b16 %v60
  %v763 = vunpack.c.h.b16 %v60
  %v764 = vunpack.c.l.b16 %v61
  %v765 = vunpack.c.h.b16 %v61
  %v766 = vunpack.c.l.b16 %v62
  %v767 = vunpack.c.h.b16 %v62
  %v768 = vunpack.c.l.b16 %v63
  %v769 = vunpack.c.h.b16 %v63
  %v770 = vunpack.c.l.b16 %v64
  %v771 = vunpack.c.h.b16 %v64
  %v772 = vunpack.c.l.b16 %v65
  %v773 = vunpack.c.h.b16 %v65
  %v774 = vunpack.c.l.b16 %v66
  %v775 = vunpack.c.h.b16 %v66
  %v776 = vunpack.c.l.b16 %v67
  %v777 = vunpack.c.h.b16 %v67
  %v778 = vunpack.c.l.b16 %v68
  %v779 = vunpack.c.h.b16 %v68
  %v780 = vunpack.c.l.b16 %v69
  %v781 = vunpack.c.h.b16 %v69
  %v782 = vunpack.c.l.b16 %v70
  %v783 = vunpack.c.h.b16 %v70
  %v784 = vunpack.c.l.b16 %v71
  %v785 = vunpack.c.h.b16 %v71
  %v786 = vunpack.c.l.b16 %v72
  %v787 = vunpack.c.h.b16 %v72
  %v788 = vunpack.c.l.b16 %v73
  %v789 = vunpack.c.h.b16 %v73
  %v790 = vunpack.c.l.b16 %v74
  %v791 = vunpack.c.h.b16 %v74
  %v792 = vunpack.c.l.b16 %v75
  %v793 = vunpack.c.h.b16 %v75
  %v794 = vunpack.c.l.b16 %v76
  %v795 = vunpack.c.h.b16 %v76
  %v796 = vunpack.c.l.b16 %v77
  %v797 = vunpack.c.h.b16 %v77
  %v798 = vunpack.c.l.b16 %v78
  %v799 = vunpack.c.h.b16 %v78
  %v800 = vunpack.c.l.b16 %v79
  %v801 = vunpack.c.h.b16 %v79
  %v802 = vunpack.c.l.b16 %v80
  %v803 = vunpack.c.h.b16 %v80
  %v804 = vunpack.c.l.b16 %v81
  %v805 = vunpack.c.h.b16 %v81
  %v806 = vunpack.c.l.b16 %v82
  %v807 = vunpack.c.h.b16 %v82
  %v808 = vunpack.c.l.b16 %v83
  %v809 = vunpack.c.h.b16 %v83
  %v810 = vunpack.c.l.b16 %v84
  %v811 = vunpack.c.h.b16 %v84
  %v812 = vunpack.c.l.b16 %v85
  %v813 = vunpack.c.h.b16 %v85
  %v814 = vunpack.c.l.b16 %v86
  %v815 = vunpack.c.h.b16 %v86
  %v816 = vunpack.c.l.b16 %v87
  %v817 = vunpack.c.h.b16 %v87
  %v818 = vunpack.c.l.b16 %v88
  %v819 = vunpack.c.h.b16 %v88
  %v820 = vunpack.c.l.b16 %v89
  %v821 = vunpack.c.h.b16 %v89
  %v822 = vunpack.c.l.b16 %v90
  %v823 = vunpack.c.h.b16 %v90
  %v824 = vunpack.c.l.b16 %v91
  %v825 = vunpack.c.h.b16 %v91
  %v826 = vunpack.c.l.b16 %v92
  %v827 = vunpack.c.h.b16 %v92
  %v828 = vunpack.c.l.b16 %v93
  %v829 = vunpack.c.h.b16 %v93
  %v830 = vunpack.c.l.b16 %v94
  %v831 = vunpack.c.h.b16 %v94
  %v832 = vunpack.c.l.b16 %v95
  %v833 = vunpack.c.h.b16 %v95
  %v834 = vunpack.c.l.b16 %v96
  %v835 = vunpack.c.h.b16 %v96
  %v836 = vunpack.c.l.b16 %v97
  %v837 = vunpack.c.h.b16 %v97
  %v838 = vunpack.c.l.b16 %v98
  %v839 = vunpack.c.h.b16 %v98
  %v840 = vunpack.c.l.b16 %v99
  %v841 = vunpack.c.h.b16 %v99
  %v842 = vunpack.c.l.b16 %v100
  %v843 = vunpack.c.h.b16 %v100
  %v844 = vunpack.c.l.b16 %v101
  %v845 = vunpack.c.h.b16 %v101
  %v846 = vunpack.c.l.b16 %v102
  %v847 = vunpack.c.h.b16 %v102
  %v848 = vunpack.c.l.b16 %v103
  %v849 = vunpack.c.h.b16 %v103
  %v850 = vunpack.c.l.b16 %v104
  %v851 = vunpack.c.h.b16 %v104
  %v852 = vunpack.c.l.b16 %v105
  %v853 = vunpack.c.h.b16 %v105
  %v854 = vunpack.c.l.b16 %v106
  %v855 = vunpack.c.h.b16 %v106
  %v856 = vunpack.c.l.b16 %v107
  %v857 = vunpack.c.h.b16 %v107
  %v858 = vunpack.c.l.b16 %v108
  %v859 = vunpack.c.h.b16 %v108
  %v860 = vunpack.c.l.b16 %v109
  %v861 = vunpack.c.h.b16 %v109
  %v862 = vunpack.c.l.b16 %v110
  %v863 = vunpack.c.h.b16 %v110
  %v864 = vunpack.c.l.b16 %v111
  %v865 = vunpack.c.h.b16 %v111
  %v866 = vunpack.c.l.b16 %v112
  %v867 = vunpack.c.h.b16 %v112
  %v868 = vunpack.c.l.b16 %v113
  %v869 = vunpack.c.h.b16 %v113
  %v870 = vunpack.c.l.b16 %v114
  %v871 = vunpack.c.h.b16 %v114
  %v872 = vunpack.c.l.b16 %v115
  %v873 = vunpack.c.h.b16 %v115
  %v874 = vunpack.c.l.b16 %v116
  %v875 = vunpack.c.h.b16 %v116
  %v876 = vunpack.c.l.b16 %v117
  %v877 = vunpack.c.h.b16 %v117
  %v878 = vunpack.c.l.b16 %v118
  %v879 = vunpack.c.h.b16 %v118
  %v880 = vunpack.c.l.b16 %v119
  %v881 = vunpack.c.h.b16 %v119
  %v882 = vunpack.c.l.b16 %v120
  %v883 = vunpack.c.h.b16 %v120
  %v884 = vunpack.c.l.b16 %v121
  %v885 = vunpack.c.h.b16 %v121
  %v886 = vunpack.c.l.b16 %v122
  %v887 = vunpack.c.h.b16 %v122
  %v888 = vunpack.c.l.b16 %v123
  %v889 = vunpack.c.h.b16 %v123
  %v890 = vunpack.c.l.b16 %v124
  %v891 = vunpack.c.h.b16 %v124
  %v892 = vunpack.c.l.b16 %v125
  %v893 = vunpack.c.h.b16 %v125
  %v894 = vunpack.c.l.b16 %v126
  %v895 = vunpack.c.h.b16 %v126
  %v896 = vunpack.c.l.b16 %v127
  %v897 = vunpack.c.h.b16 %v127
  %v898 = vunpack.c.l.b16 %v128
  %v899 = vunpack.c.h.b16 %v128
  %v900 = vunpack.c.l.b16 %v129
  %v901 = vunpack.c.h.b16 %v129
  %v902 = vunpack.c.l.b16 %v130
  %v903 = vunpack.c.h.b16 %v130
  %v904 = vunpack.c.l.b16 %v131
  %v905 = vunpack.c.h.b16 %v131
  %v906 = vunpack.c.l.b16 %v132
  %v907 = vunpack.c.h.b16 %v132
  %v908 = vunpack.c.l.b16 %v133
  %v909 = vunpack.c.h.b16 %v133
  %v910 = vunpack.c.l.b16 %v134
  %v911 = vunpack.c.h.b16 %v134
  %v912 = vunpack.c.l.b16 %v135
  %v913 = vunpack.c.h.b16 %v135
  %v914 = vunpack.c.l.b16 %v136
  %v915 = vunpack.c.h.b16 %v136
  %v916 = vunpack.c.l.b16 %v137
  %v917 = vunpack.c.h.b16 %v137
  %v918 = vunpack.c.l.b16 %v138
  %v919 = vunpack.c.h.b16 %v138
  %v920 = vunpack.c.l.b16 %v139
  %v921 = vunpack.c.h.b16 %v139
  %v922 = vunpack.c.l.b16 %v140
  %v923 = vunpack.c.h.b16 %v140
  %v924 = vunpack.c.l.b16 %v141
  %v925 = vunpack.c.h.b16 %v141
  %v926 = vunpack.c.l.b16 %v142
  %v927 = vunpack.c.h.b16 %v142
  %v928 = vunpack.c.l.b16 %v143
  %v929 = vunpack.c.h.b16 %v143
  %v930 = vunpack.c.l.b16 %v144
  %v931 = vunpack.c.h.b16 %v144
  %v932 = vunpack.c.l.b16 %v145
  %v933 = vunpack.c.h.b16 %v145
  %v934 = vunpack.c.l.b16 %v146
  %v935 = vunpack.c.h.b16 %v146
  %v936 = vunpack.c.l.b16 %v147
  %v937 = vunpack.c.h.b16 %v147
  %v938 = vunpack.c.l.b16 %v148
  %v939 = vunpack.c.h.b16 %v148
  %v940 = vunpack.c.l.b16 %v149
  %v941 = vunpack.c.h.b16 %v149
  %v942 = vunpack.c.l.b16 %v150
  %v943 = vunpack.c.h.b16 %v150
  %v944 = vunpack.c.l.b16 %v151
  %v945 = vunpack.c.h.b16 %v151
  %v946 = vunpack.c.l.b16 %v152
  %v947 = vunpack.c.h.b16 %v152
  %v948 = vunpack.c.l.b16 %v153
  %v949 = vunpack.c.h.b16 %v153
  %v950 = vunpack.c.l.b16 %v154
  %v951 = vunpack.c.h.b16 %v154
  %v952 = vunpack.c.l.b16 %v155
  %v953 = vunpack.c.h.b16 %v155
  %v954 = vunpack.c.l.b16 %v156
  %v955 = vunpack.c.h.b16 %v156
  %v956 = vunpack.c.l.b16 %v157
  %v957 = vunpack.c.h.b16 %v157
  %v958 = vunpack.c.l.b16 %v158
  %v959 = vunpack.c.h.b16 %v158
  %v960 = vunpack.c.l.b16 %v159
  %v961 = vunpack.c.h.b16 %v159
  %v962 = vunpack.c.l.b16 %v160
  %v963 = vunpack.c.h.b16 %v160
  %v964 = vunpack.c.l.b16 %v161
  %v965 = vunpack.c.h.b16 %v161
  %v966 = vunpack.c.l.b16 %v162
  %v967 = vunpack.c.h.b16 %v162
  %v968 = vunpack.c.l.b16 %v163
  %v969 = vunpack.c.h.b16 %v163
  %v970 = vunpack.c.l.b16 %v164
  %v971 = vunpack.c.h.b16 %v164
  %v972 = vunpack.c.l.b16 %v165
  %v973 = vunpack.c.h.b16 %v165
  %v974 = vunpack.c.l.b16 %v166
  %v975 = vunpack.c.h.b16 %v166
  %v976 = vunpack.c.l.b16 %v167
  %v977 = vunpack.c.h.b16 %v167
  %v978 = vunpack.c.l.b16 %v168
  %v979 = vunpack.c.h.b16 %v168
  %v980 = vunpack.c.l.b16 %v169
  %v981 = vunpack.c.h.b16 %v169
  %v982 = vunpack.c.l.b16 %v170
  %v983 = vunpack.c.h.b16 %v170
  %v984 = vunpack.c.l.b16 %v171
  %v985 = vunpack.c.h.b16 %v171
  %v986 = vunpack.c.l.b16 %v172
  %v987 = vunpack.c.h.b16 %v172
  %v988 = vunpack.c.l.b16 %v173
  %v989 = vunpack.c.h.b16 %v173
  %v990 = vunpack.c.l.b16 %v174
  %v991 = vunpack.c.h.b16 %v174
  %v992 = vunpack.c.l.b16 %v175
  %v993 = vunpack.c.h.b16 %v175
  %v994 = vunpack.c.l.b16 %v176
  %v995 = vunpack.c.h.b16 %v176
  %v996 = vunpack.c.l.b16 %v177
  %v997 = vunpack.c.h.b16 %v177
  %v998 = vunpack.c.l.b16 %v178
  %v999 = vunpack.c.h.b16 %v178
  %v1000 = vunpack.c.l.b16 %v179
  %v1001 = vunpack.c.h.b16 %v179
  %v1002 = vunpack.c.l.b16 %v180
  %v1003 = vunpack.c.h.b16 %v180
  %v1004 = vunpack.c.l.b16 %v181
  %v1005 = vunpack.c.h.b16 %v181
  %v1006 = vunpack.c.l.b16 %v182
  %v1007 = vunpack.c.h.b16 %v182
  %v1008 = vunpack.c.l.b16 %v183
  %v1009 = vunpack.c.h.b16 %v183
  %v1010 = vunpack.c.l.b16 %v184
  %v1011 = vunpack.c.h.b16 %v184
  %v1012 = vunpack.c.l.b16 %v185
  %v1013 = vunpack.c.h.b16 %v185
  %v1014 = vunpack.c.l.b16 %v186
  %v1015 = vunpack.c.h.b16 %v186
  %v1016 = vunpack.c.l.b16 %v187
  %v1017 = vunpack.c.h.b16 %v187
  %v1018 = vunpack.c.l.b16 %v188
  %v1019 = vunpack.c.h.b16 %v188
  %v1020 = vunpack.c.l.b16 %v189
  %v1021 = vunpack.c.h.b16 %v189
  %v1022 = vunpack.c.l.b16 %v190
  %v1023 = vunpack.c.h.b16 %v190
  %v1024 = vunpack.c.l.b16 %v191
  %v1025 = vunpack.c.h.b16 %v191
  %v1026 = vunpack.c.l.b16 %v192
  %v1027 = vunpack.c.h.b16 %v192
  %v1028 = vunpack.c.l.b16 %v193
  %v1029 = vunpack.c.h.b16 %v193
  %v1030 = vunpack.c.l.b16 %v194
  %v1031 = vunpack.c.h.b16 %v194
  %v1032 = vunpack.c.l.b16 %v195
  %v1033 = vunpack.c.h.b16 %v195
  %v1034 = vunpack.c.l.b16 %v196
  %v1035 = vunpack.c.h.b16 %v196
  %v1036 = vunpack.c.l.b16 %v197
  %v1037 = vunpack.c.h.b16 %v197
  %v1038 = vunpack.c.l.b16 %v198
  %v1039 = vunpack.c.h.b16 %v198
  %v1040 = vunpack.c.l.b16 %v199
  %v1041 = vunpack.c.h.b16 %v199
  %v1042 = vunpack.c.l.b16 %v200
  %v1043 = vunpack.c.h.b16 %v200
  %v1044 = vunpack.c.l.b16 %v201
  %v1045 = vunpack.c.h.b16 %v201
  %v1046 = vunpack.c.l.b16 %v202
  %v1047 = vunpack.c.h.b16 %v202
  %v1048 = vunpack.c.l.b16 %v203
  %v1049 = vunpack.c.h.b16 %v203
  %v1050 = vunpack.c.l.b16 %v204
  %v1051 = vunpack.c.h.b16 %v204
  %v1052 = vunpack.c.l.b16 %v205
  %v1053 = vunpack.c.h.b16 %v205
  %v1054 = vunpack.c.l.b16 %v206
  %v1055 = vunpack.c.h.b16 %v206
  %v1056 = vunpack.c.l.b16 %v207
  %v1057 = vunpack.c.h.b16 %v207
  %v1058 = vunpack.c.l.b16 %v208
  %v1059 = vunpack.c.h.b16 %v208
  %v1060 = vunpack.c.l.b16 %v209
  %v1061 = vunpack.c.h.b16 %v209
  %v1062 = vunpack.c.l.b16 %v210
  %v1063 = vunpack.c.h.b16 %v210
  %v1064 = vunpack.c.l.b16 %v211
  %v1065 = vunpack.c.h.b16 %v211
  %v1066 = vunpack.c.l.b16 %v212
  %v1067 = vunpack.c.h.b16 %v212
  %v1068 = vunpack.c.l.b16 %v213
  %v1069 = vunpack.c.h.b16 %v213
  %v1070 = vunpack.c.l.b16 %v214
  %v1071 = vunpack.c.h.b16 %v214
  %v1072 = vunpack.c.l.b16 %v215
  %v1073 = vunpack.c.h.b16 %v215
  %v1074 = vunpack.c.l.b16 %v216
  %v1075 = vunpack.c.h.b16 %v216
  %v1076 = vpack.c.b16 %v696, %v692
  %v1077 = vpack.c.b16 %v697, %v693
  %v1078 = vpack.c.b16 %v698, %v694
  %v1079 = vpack.c.b16 %v699, %v695
  %v1080 = vpack.c.b16 %v704, %v700
  %v1081 = vpack.c.b16 %v705, %v701
  %v1082 = vpack.c.b16 %v706, %v702
  %v1083 = vpack.c.b16 %v707, %v703
  %v1084 = vpack.c.b16 %v712, %v708
  %v1085 = vpack.c.b16 %v713, %v709
  %v1086 = vpack.c.b16 %v714, %v710
  %v1087 = vpack.c.b16 %v715, %v711
  %v1088 = vpack.c.b16 %v720, %v716
  %v1089 = vpack.c.b16 %v721, %v717
  %v1090 = vpack.c.b16 %v722, %v718
  %v1091 = vpack.c.b16 %v723, %v719
  %v1092 = vpack.c.b16 %v728, %v724
  %v1093 = vpack.c.b16 %v729, %v725
  %v1094 = vpack.c.b16 %v730, %v726
  %v1095 = vpack.c.b16 %v731, %v727
  %v1096 = vpack.c.b16 %v736, %v732
  %v1097 = vpack.c.b16 %v737, %v733
  %v1098 = vpack.c.b16 %v738, %v734
  %v1099 = vpack.c.b16 %v739, %v735
  %v1100 = vpack.c.b16 %v744, %v740
  %v1101 = vpack.c.b16 %v745, %v741
  %v1102 = vpack.c.b16 %v746, %v742
  %v1103 = vpack.c.b16 %v747, %v743
  %v1104 = vpack.c.b16 %v752, %v748
  %v1105 = vpack.c.b16 %v753, %v749
  %v1106 = vpack.c.b16 %v754, %v750
  %v1107 = vpack.c.b16 %v755, %v751
  %v1108 = vpack.c.b16 %v760, %v756
  %v1109 = vpack.c.b16 %v761, %v757
  %v1110 = vpack.c.b16 %v762, %v758
  %v1111 = vpack.c.b16 %v763, %v759
  %v1112 = vpack.c.b16 %v768, %v764
  %v1113 = vpack.c.b16 %v769, %v765
  %v1114 = vpack.c.b16 %v770, %v766
  %v1115 = vpack.c.b16 %v771, %v767
  %v1116 = vpack.c.b16 %v776, %v772
  %v1117 = vpack.c.b16 %v777, %v773
  %v1118 = vpack.c.b16 %v778, %v774
  %v1119 = vpack.c.b16 %v779, %v775
  %v1120 = vpack.c.b16 %v784, %v780
  %v1121 = vpack.c.b16 %v785, %v781
  %v1122 = vpack.c.b16 %v786, %v782
  %v1123 = vpack.c.b16 %v787, %v783
  %v1124 = vpack.c.b16 %v792, %v788
  %v1125 = vpack.c.b16 %v793, %v789
  %v1126 = vpack.c.b16 %v794, %v790
  %v1127 = vpack.c.b16 %v795, %v791
  %v1128 = vpack.c.b16 %v800, %v796
  %v1129 = vpack.c.b16 %v801, %v797
  %v1130 = vpack.c.b16 %v802, %v798
  %v1131 = vpack.c.b16 %v803, %v799
  %v1132 = vpack.c.b16 %v808, %v804
  %v1133 = vpack.c.b16 %v809, %v805
  %v1134 = vpack.c.b16 %v810, %v806
  %v1135 = vpack.c.b16 %v811, %v807
  %v1136 = vpack.c.b16 %v816, %v812
  %v1137 = vpack.c.b16 %v817, %v813
  %v1138 = vpack.c.b16 %v818, %v814
  %v1139 = vpack.c.b16 %v819, %v815
  %v1140 = vpack.c.b16 %v824, %v820
  %v1141 = vpack.c.b16 %v825, %v821
  %v1142 = vpack.c.b16 %v826, %v822
  %v1143 = vpack.c.b16 %v827, %v823
  %v1144 = vpack.c.b16 %v832, %v828
  %v1145 = vpack.c.b16 %v833, %v829
  %v1146 = vpack.c.b16 %v834, %v830
  %v1147 = vpack.c.b16 %v835, %v831
  %v1148 = vpack.c.b16 %v840, %v836
  %v1149 = vpack.c.b16 %v841, %v837
  %v1150 = vpack.c.b16 %v842, %v838
  %v1151 = vpack.c.b16 %v843, %v839
  %v1152 = vpack.c.b16 %v848, %v844
  %v1153 = vpack.c.b16 %v849, %v845
  %v1154 = vpack.c.b16 %v850, %v846
  %v1155 = vpack.c.b16 %v851, %v847
  %v1156 = vpack.c.b16 %v856, %v852
  %v1157 = vpack.c.b16 %v857, %v853
  %v1158 = vpack.c.b16 %v858, %v854
  %v1159 = vpack.c.b16 %v859, %v855
  %v1160 = vpack.c.b16 %v864, %v860
  %v1161 = vpack.c.b16 %v865, %v861
  %v1162 = vpack.c.b16 %v866, %v862
  %v1163 = vpack.c.b16 %v867, %v863
  %v1164 = vpack.c.b16 %v872, %v868
  %v1165 = vpack.c.b16 %v873, %v869
  %v1166 = vpack.c.b16 %v874, %v870
  %v1167 = vpack.c.b16 %v875, %v871
  %v1168 = vpack.c.b16 %v880, %v876
  %v1169 = vpack.c.b16 %v881, %v877
  %v1170 = vpack.c.b16 %v882, %v878
  %v1171 = vpack.c.b16 %v883, %v879
  %v1172 = vpack.c.b16 %v888, %v884
  %v1173 = vpack.c.b16 %v889, %v885
  %v1174 = vpack.c.b16 %v890, %v886
  %v1175 = vpack.c.b16 %v891, %v887
  %v1176 = vpack.c.b16 %v896, %v892
  %v1177 = vpack.c.b16 %v897, %v893
  %v1178 = vpack.c.b16 %v898, %v894
  %v1179 = vpack.c.b16 %v899, %v895
  %v1180 = vpack.c.b16 %v904, %v900
  %v1181 = vpack.c.b16 %v905, %v901
  %v1182 = vpack.c.b16 %v906, %v902
  %v1183 = vpack.c.b16 %v907, %v903
  %v1184 = vpack.c.b16 %v912, %v908
  %v1185 = vpack.c.b16 %v913, %v909
  %v1186 = vpack.c.b16 %v914, %v910
  %v1187 = vpack.c.b16 %v915, %v911
  %v1188 = vpack.c.b16 %v920, %v916
  %v1189 = vpack.c.b16 %v921, %v917
  %v1190 = vpack.c.b16 %v922, %v918
  %v1191 = vpack.c.b16 %v923, %v919
  %v1192 = vpack.c.b16 %v928, %v924
  %v1193 = vpack.c.b16 %v929, %v925
  %v1194 = vpack.c.b16 %v930, %v926
  %v1195 = vpack.c.b16 %v931, %v927
  %v1196 = vpack.c.b16 %v936, %v932
  %v1197 = vpack.c.b16 %v937, %v933
  %v1198 = vpack.c.b16 %v938, %v934
  %v1199 = vpack.c.b16 %v939, %v935
  %v1200 = vpack.c.b16 %v944, %v940
  %v1201 = vpack.c.b16 %v945, %v941
  %v1202 = vpack.c.b16 %v946, %v942
  %v1203 = vpack.c.b16 %v947, %v943
  %v1204 = vpack.c.b16 %v952, %v948
  %v1205 = vpack.c.b16 %v953, %v949
  %v1206 = vpack.c.b16 %v954, %v950
  %v1207 = vpack.c.b16 %v955, %v951
  %v1208 = vpack.c.b16 %v960, %v956
  %v1209 = vpack.c.b16 %v961, %v957
  %v1210 = vpack.c.b16 %v962, %v958
  %v1211 = vpack.c.b16 %v963, %v959
  %v1212 = vpack.c.b16 %v968, %v964
  %v1213 = vpack.c.b16 %v969, %v965
  %v1214 = vpack.c.b16 %v970, %v966
  %v1215 = vpack.c.b16 %v971, %v967
  %v1216 = vpack.c.b16 %v976, %v972
  %v1217 = vpack.c.b16 %v977, %v973
  %v1218 = vpack.c.b16 %v978, %v974
  %v1219 = vpack.c.b16 %v979, %v975
  %v1220 = vpack.c.b16 %v984, %v980
  %v1221 = vpack.c.b16 %v985, %v981
  %v1222 = vpack.c.b16 %v986, %v982
  %v1223 = vpack.c.b16 %v987, %v983
  %v1224 = vpack.c.b16 %v992, %v988
  %v1225 = vpack.c.b16 %v993, %v989
  %v1226 = vpack.c.b16 %v994, %v990
  %v1227 = vpack.c.b16 %v995, %v991
  %v1228 = vpack.c.b16 %v1000, %v996
  %v1229 = vpack.c.b16 %v1001, %v997
  %v1230 = vpack.c.b16 %v1002, %v998
  %v1231 = vpack.c.b16 %v1003, %v999
  %v1232 = vpack.c.b16 %v1008, %v1004
  %v1233 = vpack.c.b16 %v1009, %v1005
  %v1234 = vpack.c.b16 %v1010, %v1006
  %v1235 = vpack.c.b16 %v1011, %v1007
  %v1236 = vpack.c.b16 %v1016, %v1012
  %v1237 = vpack.c.b16 %v1017, %v1013
  %v1238 = vpack.c.b16 %v1018, %v1014
  %v1239 = vpack.c.b16 %v1019, %v1015
  %v1240 = vpack.c.b16 %v1024, %v1020
  %v1241 = vpack.c.b16 %v1025, %v1021
  %v1242 = vpack.c.b16 %v1026, %v1022
  %v1243 = vpack.c.b16 %v1027, %v1023
  %v1244 = vpack.c.b16 %v1032, %v1028
  %v1245 = vpack.c.b16 %v1033, %v1029
  %v1246 = vpack.c.b16 %v1034, %v1030
  %v1247 = vpack.c.b16 %v1035, %v1031
  %v1248 = vpack.c.b16 %v1040, %v1036
  %v1249 = vpack.c.b16 %v1041, %v1037
  %v1250 = vpack.c.b16 %v1042, %v1038
  %v1251 = vpack.c.b16 %v1043, %v1039
  %v1252 = vpack.c.b16 %v1048, %v1044
  %v1253 = vpack.c.b16 %v1049, %v1045
  %v1254 = vpack.c.b16 %v1050, %v1046
  %v1255 = vpack.c.b16 %v1051, %v1047
  %v1256 = vpack.c.b16 %v1056, %v1052
  %v1257 = vpack.c.b16 %v1057, %v1053
  %v1258 = vpack.c.b16 %v1058, %v1054
  %v1259 = vpack.c.b16 %v1059, %v1055
  %v1260 = vpack.c.b16 %v1064, %v1060
  %v1261 = vpack.c.b16 %v1065, %v1061
  %v1262 = vpack.c.b16 %v1066, %v1062
  %v1263 = vpack.c.b16 %v1067, %v1063
  %v1264 = vpack.c.b16 %v1072, %v1068
  %v1265 = vpack.c.b16 %v1073, %v1069
  %v1266 = vpack.c.b16 %v1074, %v1070
  %v1267 = vpack.c.b16 %v1075, %v1071
  %1460 = vmatprep.subr.bf16.mxu0 %v1077
  %1461 = vmatpush1.bf16.msra.mxu0 %v1076
  %1462 = vmatprep.subr.bf16.mxu0 %v1081
  %1463 = vmatpush1.bf16.msra.mxu0 %v1080
  %1464 = vmatprep.subr.bf16.mxu0 %v1085
  %1465 = vmatpush1.bf16.msra.mxu0 %v1084
  %1466 = vmatprep.subr.bf16.mxu0 %v1089
  %1467 = vmatpush1.bf16.msra.mxu0 %v1088
  %1468 = vmatprep.subr.bf16.mxu0 %v1093
  %1469 = vmatpush1.bf16.msra.mxu0 %v1092
  %1470 = vmatprep.subr.bf16.mxu0 %v1097
  %1471 = vmatpush1.bf16.msra.mxu0 %v1096
  %1472 = vmatprep.subr.bf16.mxu0 %v1101
  %1473 = vmatpush1.bf16.msra.mxu0 %v1100
  %1474 = vmatprep.subr.bf16.mxu0 %v1105
  %1475 = vmatpush1.bf16.msra.mxu0 %v1104
  %1476 = vmatprep.subr.bf16.mxu0 %v1109
  %1477 = vmatpush1.bf16.msra.mxu0 %v1108
  %1478 = vmatprep.subr.bf16.mxu0 %v1113
  %1479 = vmatpush1.bf16.msra.mxu0 %v1112
  %1480 = vmatprep.subr.bf16.mxu0 %v1117
  %1481 = vmatpush1.bf16.msra.mxu0 %v1116
  %1482 = vmatprep.subr.bf16.mxu0 %v1121
  %1483 = vmatpush1.bf16.msra.mxu0 %v1120
  %1484 = vmatprep.subr.bf16.mxu0 %v1125
  %1485 = vmatpush1.bf16.msra.mxu0 %v1124
  %1486 = vmatprep.subr.bf16.mxu0 %v1129
  %1487 = vmatpush1.bf16.msra.mxu0 %v1128
  %1488 = vmatprep.subr.bf16.mxu0 %v1133
  %1489 = vmatpush1.bf16.msra.mxu0 %v1132
  %1490 = vmatprep.subr.bf16.mxu0 %v1137
  %1491 = vmatpush1.bf16.msra.mxu0 %v1136
  %1492 = vmatprep.mubr.bf16.mxu0 %v452
  %1493 = vmatmul.mubr.bf16.gmra.mrb[0].mxu0 %v451
  %v1494 = vpop.f32.mrb[0].mxu0
  %v1495 = vadd.f32 %v484, %v1494
  %v1496 = vpop.f32.mrb[0].mxu0
  %v1497 = vadd.f32 %v485, %v1496
  %v1498 = vpop.f32.mrb[0].mxu0
  %v1499 = vadd.f32 %v488, %v1498
  %v1500 = vpop.f32.mrb[0].mxu0
  %v1501 = vadd.f32 %v489, %v1500
  %1502 = vmatprep.mubr.bf16.mxu0 %v458
  %1503 = vmatmul.mubr.bf16.gmra.mrb[0].mxu0 %v457
  %v1504 = vpop.f32.mrb[0].mxu0
  %v1505 = vadd.f32 %v492, %v1504
  %v1506 = vpop.f32.mrb[0].mxu0
  %v1507 = vadd.f32 %v493, %v1506
  %v1508 = vpop.f32.mrb[0].mxu0
  %v1509 = vadd.f32 %v496, %v1508
  %v1510 = vpop.f32.mrb[0].mxu0
  %v1511 = vadd.f32 %v497, %v1510
  %1512 = vdwg.mxu0
  %1513 = vmatprep.subr.bf16.mxu0 %v1141
  %1514 = vmatpush1.bf16.msra.mxu0 %v1140
  %1515 = vmatprep.subr.bf16.mxu0 %v1145
  %1516 = vmatpush1.bf16.msra.mxu0 %v1144
  %1517 = vmatprep.subr.bf16.mxu0 %v1149
  %1518 = vmatpush1.bf16.msra.mxu0 %v1148
  %1519 = vmatprep.subr.bf16.mxu0 %v1153
  %1520 = vmatpush1.bf16.msra.mxu0 %v1152
  %1521 = vmatprep.subr.bf16.mxu0 %v1157
  %1522 = vmatpush1.bf16.msra.mxu0 %v1156
  %1523 = vmatprep.subr.bf16.mxu0 %v1161
  %1524 = vmatpush1.bf16.msra.mxu0 %v1160
  %1525 = vmatprep.subr.bf16.mxu0 %v1165
  %1526 = vmatpush1.bf16.msra.mxu0 %v1164
  %1527 = vmatprep.subr.bf16.mxu0 %v1169
  %1528 = vmatpush1.bf16.msra.mxu0 %v1168
  %1529 = vmatprep.subr.bf16.mxu0 %v1173
  %1530 = vmatpush1.bf16.msra.mxu0 %v1172
  %1531 = vmatprep.subr.bf16.mxu0 %v1177
  %1532 = vmatpush1.bf16.msra.mxu0 %v1176
  %1533 = vmatprep.subr.bf16.mxu0 %v1181
  %1534 = vmatpush1.bf16.msra.mxu0 %v1180
  %1535 = vmatprep.subr.bf16.mxu0 %v1185
  %1536 = vmatpush1.bf16.msra.mxu0 %v1184
  %1537 = vmatprep.subr.bf16.mxu0 %v1189
  %1538 = vmatpush1.bf16.msra.mxu0 %v1188
  %1539 = vmatprep.subr.bf16.mxu0 %v1193
  %1540 = vmatpush1.bf16.msra.mxu0 %v1192
  %1541 = vmatprep.subr.bf16.mxu0 %v1197
  %1542 = vmatpush1.bf16.msra.mxu0 %v1196
  %1543 = vmatprep.subr.bf16.mxu0 %v1201
  %1544 = vmatpush1.bf16.msra.mxu0 %v1200
  %1545 = vmatprep.mubr.bf16.mxu0 %v454
  %1546 = vmatmul.mubr.bf16.gmra.mrb[0].mxu0 %v453
  %v1547 = vpop.f32.mrb[0].mxu0
  %v1548 = vadd.f32 %v1495, %v1547
  %v1549 = vpop.f32.mrb[0].mxu0
  %v1550 = vadd.f32 %v1497, %v1549
  %v1551 = vpop.f32.mrb[0].mxu0
  %v1552 = vadd.f32 %v1499, %v1551
  %v1553 = vpop.f32.mrb[0].mxu0
  %v1554 = vadd.f32 %v1501, %v1553
  %1555 = vmatprep.mubr.bf16.mxu0 %v460
  %1556 = vmatmul.mubr.bf16.gmra.mrb[0].mxu0 %v459
  %v1557 = vpop.f32.mrb[0].mxu0
  %v1558 = vadd.f32 %v1505, %v1557
  %v1559 = vpop.f32.mrb[0].mxu0
  %v1560 = vadd.f32 %v1507, %v1559
  %v1561 = vpop.f32.mrb[0].mxu0
  %v1562 = vadd.f32 %v1509, %v1561
  %v1563 = vpop.f32.mrb[0].mxu0
  %v1564 = vadd.f32 %v1511, %v1563
  %1565 = vdwg.mxu0
  %1566 = vmatprep.subr.bf16.mxu0 %v1205
  %1567 = vmatpush1.bf16.msra.mxu0 %v1204
  %1568 = vmatprep.subr.bf16.mxu0 %v1209
  %1569 = vmatpush1.bf16.msra.mxu0 %v1208
  %1570 = vmatprep.subr.bf16.mxu0 %v1213
  %1571 = vmatpush1.bf16.msra.mxu0 %v1212
  %1572 = vmatprep.subr.bf16.mxu0 %v1217
  %1573 = vmatpush1.bf16.msra.mxu0 %v1216
  %1574 = vmatprep.subr.bf16.mxu0 %v1221
  %1575 = vmatpush1.bf16.msra.mxu0 %v1220
  %1576 = vmatprep.subr.bf16.mxu0 %v1225
  %1577 = vmatpush1.bf16.msra.mxu0 %v1224
  %1578 = vmatprep.subr.bf16.mxu0 %v1229
  %1579 = vmatpush1.bf16.msra.mxu0 %v1228
  %1580 = vmatprep.subr.bf16.mxu0 %v1233
  %1581 = vmatpush1.bf16.msra.mxu0 %v1232
  %1582 = vmatprep.subr.bf16.mxu0 %v1237
  %1583 = vmatpush1.bf16.msra.mxu0 %v1236
  %1584 = vmatprep.subr.bf16.mxu0 %v1241
  %1585 = vmatpush1.bf16.msra.mxu0 %v1240
  %1586 = vmatprep.subr.bf16.mxu0 %v1245
  %1587 = vmatpush1.bf16.msra.mxu0 %v1244
  %1588 = vmatprep.subr.bf16.mxu0 %v1249
  %1589 = vmatpush1.bf16.msra.mxu0 %v1248
  %1590 = vmatprep.subr.bf16.mxu0 %v1253
  %1591 = vmatpush1.bf16.msra.mxu0 %v1252
  %1592 = vmatprep.subr.bf16.mxu0 %v1257
  %1593 = vmatpush1.bf16.msra.mxu0 %v1256
  %1594 = vmatprep.subr.bf16.mxu0 %v1261
  %1595 = vmatpush1.bf16.msra.mxu0 %v1260
  %1596 = vmatprep.subr.bf16.mxu0 %v1265
  %1597 = vmatpush1.bf16.msra.mxu0 %v1264
  %1598 = vmatprep.mubr.bf16.mxu0 %v456
  %1599 = vmatmul.mubr.bf16.gmra.mrb[0].mxu0 %v455
  %v1600 = vpop.f32.mrb[0].mxu0
  %v1601 = vadd.f32 %v1548, %v1600
  %v1602 = vpop.f32.mrb[0].mxu0
  %v1603 = vadd.f32 %v1550, %v1602
  %v1604 = vpop.f32.mrb[0].mxu0
  %v1605 = vadd.f32 %v1552, %v1604
  %v1606 = vpop.f32.mrb[0].mxu0
  %v1607 = vadd.f32 %v1554, %v1606
  %1608 = vmatprep.mubr.bf16.mxu0 %v462
  %1609 = vmatmul.mubr.bf16.gmra.mrb[0].mxu0 %v461
  %v1610 = vpop.f32.mrb[0].mxu0
  %v1611 = vadd.f32 %v1558, %v1610
  %v1612 = vpop.f32.mrb[0].mxu0
  %v1613 = vadd.f32 %v1560, %v1612
  %v1614 = vpop.f32.mrb[0].mxu0
  %v1615 = vadd.f32 %v1562, %v1614
  %v1616 = vpop.f32.mrb[0].mxu0
  %v1617 = vadd.f32 %v1564, %v1616
  %1618 = vdwg.mxu0
  %1619 = vmatprep.subr.bf16.mxu0 %v1079
  %1620 = vmatpush1.bf16.msra.mxu0 %v1078
  %1621 = vmatprep.subr.bf16.mxu0 %v1083
  %1622 = vmatpush1.bf16.msra.mxu0 %v1082
  %1623 = vmatprep.subr.bf16.mxu0 %v1087
  %1624 = vmatpush1.bf16.msra.mxu0 %v1086
  %1625 = vmatprep.subr.bf16.mxu0 %v1091
  %1626 = vmatpush1.bf16.msra.mxu0 %v1090
  %1627 = vmatprep.subr.bf16.mxu0 %v1095
  %1628 = vmatpush1.bf16.msra.mxu0 %v1094
  %1629 = vmatprep.subr.bf16.mxu0 %v1099
  %1630 = vmatpush1.bf16.msra.mxu0 %v1098
  %1631 = vmatprep.subr.bf16.mxu0 %v1103
  %1632 = vmatpush1.bf16.msra.mxu0 %v1102
  %1633 = vmatprep.subr.bf16.mxu0 %v1107
  %1634 = vmatpush1.bf16.msra.mxu0 %v1106
  %1635 = vmatprep.subr.bf16.mxu0 %v1111
  %1636 = vmatpush1.bf16.msra.mxu0 %v1110
  %1637 = vmatprep.subr.bf16.mxu0 %v1115
  %1638 = vmatpush1.bf16.msra.mxu0 %v1114
  %1639 = vmatprep.subr.bf16.mxu0 %v1119
  %1640 = vmatpush1.bf16.msra.mxu0 %v1118
  %1641 = vmatprep.subr.bf16.mxu0 %v1123
  %1642 = vmatpush1.bf16.msra.mxu0 %v1122
  %1643 = vmatprep.subr.bf16.mxu0 %v1127
  %1644 = vmatpush1.bf16.msra.mxu0 %v1126
  %1645 = vmatprep.subr.bf16.mxu0 %v1131
  %1646 = vmatpush1.bf16.msra.mxu0 %v1130
  %1647 = vmatprep.subr.bf16.mxu0 %v1135
  %1648 = vmatpush1.bf16.msra.mxu0 %v1134
  %1649 = vmatprep.subr.bf16.mxu0 %v1139
  %1650 = vmatpush1.bf16.msra.mxu0 %v1138
  %1651 = vmatprep.mubr.bf16.mxu0 %v452
  %1652 = vmatmul.mubr.bf16.gmra.mrb[0].mxu0 %v451
  %v1653 = vpop.f32.mrb[0].mxu0
  %v1654 = vadd.f32 %v486, %v1653
  %v1655 = vpop.f32.mrb[0].mxu0
  %v1656 = vadd.f32 %v487, %v1655
  %v1657 = vpop.f32.mrb[0].mxu0
  %v1658 = vadd.f32 %v490, %v1657
  %v1659 = vpop.f32.mrb[0].mxu0
  %v1660 = vadd.f32 %v491, %v1659
  %1661 = vmatprep.mubr.bf16.mxu0 %v458
  %1662 = vmatmul.mubr.bf16.gmra.mrb[0].mxu0 %v457
  %v1663 = vpop.f32.mrb[0].mxu0
  %v1664 = vadd.f32 %v494, %v1663
  %v1665 = vpop.f32.mrb[0].mxu0
  %v1666 = vadd.f32 %v495, %v1665
  %v1667 = vpop.f32.mrb[0].mxu0
  %v1668 = vadd.f32 %v498, %v1667
  %v1669 = vpop.f32.mrb[0].mxu0
  %v1670 = vadd.f32 %v499, %v1669
  %1671 = vdwg.mxu0
  %1672 = vmatprep.subr.bf16.mxu0 %v1143
  %1673 = vmatpush1.bf16.msra.mxu0 %v1142
  %1674 = vmatprep.subr.bf16.mxu0 %v1147
  %1675 = vmatpush1.bf16.msra.mxu0 %v1146
  %1676 = vmatprep.subr.bf16.mxu0 %v1151
  %1677 = vmatpush1.bf16.msra.mxu0 %v1150
  %1678 = vmatprep.subr.bf16.mxu0 %v1155
  %1679 = vmatpush1.bf16.msra.mxu0 %v1154
  %1680 = vmatprep.subr.bf16.mxu0 %v1159
  %1681 = vmatpush1.bf16.msra.mxu0 %v1158
  %1682 = vmatprep.subr.bf16.mxu0 %v1163
  %1683 = vmatpush1.bf16.msra.mxu0 %v1162
  %1684 = vmatprep.subr.bf16.mxu0 %v1167
  %1685 = vmatpush1.bf16.msra.mxu0 %v1166
  %1686 = vmatprep.subr.bf16.mxu0 %v1171
  %1687 = vmatpush1.bf16.msra.mxu0 %v1170
  %1688 = vmatprep.subr.bf16.mxu0 %v1175
  %1689 = vmatpush1.bf16.msra.mxu0 %v1174
  %1690 = vmatprep.subr.bf16.mxu0 %v1179
  %1691 = vmatpush1.bf16.msra.mxu0 %v1178
  %1692 = vmatprep.subr.bf16.mxu0 %v1183
  %1693 = vmatpush1.bf16.msra.mxu0 %v1182
  %1694 = vmatprep.subr.bf16.mxu0 %v1187
  %1695 = vmatpush1.bf16.msra.mxu0 %v1186
  %1696 = vmatprep.subr.bf16.mxu0 %v1191
  %1697 = vmatpush1.bf16.msra.mxu0 %v1190
  %1698 = vmatprep.subr.bf16.mxu0 %v1195
  %1699 = vmatpush1.bf16.msra.mxu0 %v1194
  %1700 = vmatprep.subr.bf16.mxu0 %v1199
  %1701 = vmatpush1.bf16.msra.mxu0 %v1198
  %1702 = vmatprep.subr.bf16.mxu0 %v1203
  %1703 = vmatpush1.bf16.msra.mxu0 %v1202
  %1704 = vmatprep.mubr.bf16.mxu0 %v454
  %1705 = vmatmul.mubr.bf16.gmra.mrb[0].mxu0 %v453
  %v1706 = vpop.f32.mrb[0].mxu0
  %v1707 = vadd.f32 %v1654, %v1706
  %v1708 = vpop.f32.mrb[0].mxu0
  %v1709 = vadd.f32 %v1656, %v1708
  %v1710 = vpop.f32.mrb[0].mxu0
  %v1711 = vadd.f32 %v1658, %v1710
  %v1712 = vpop.f32.mrb[0].mxu0
  %v1713 = vadd.f32 %v1660, %v1712
  %1714 = vmatprep.mubr.bf16.mxu0 %v460
  %1715 = vmatmul.mubr.bf16.gmra.mrb[0].mxu0 %v459
  %v1716 = vpop.f32.mrb[0].mxu0
  %v1717 = vadd.f32 %v1664, %v1716
  %v1718 = vpop.f32.mrb[0].mxu0
  %v1719 = vadd.f32 %v1666, %v1718
  %v1720 = vpop.f32.mrb[0].mxu0
  %v1721 = vadd.f32 %v1668, %v1720
  %v1722 = vpop.f32.mrb[0].mxu0
  %v1723 = vadd.f32 %v1670, %v1722
  %1724 = vdwg.mxu0
  %1725 = vmatprep.subr.bf16.mxu0 %v1207
  %1726 = vmatpush1.bf16.msra.mxu0 %v1206
  %1727 = vmatprep.subr.bf16.mxu0 %v1211
  %1728 = vmatpush1.bf16.msra.mxu0 %v1210
  %1729 = vmatprep.subr.bf16.mxu0 %v1215
  %1730 = vmatpush1.bf16.msra.mxu0 %v1214
  %1731 = vmatprep.subr.bf16.mxu0 %v1219
  %1732 = vmatpush1.bf16.msra.mxu0 %v1218
  %1733 = vmatprep.subr.bf16.mxu0 %v1223
  %1734 = vmatpush1.bf16.msra.mxu0 %v1222
  %1735 = vmatprep.subr.bf16.mxu0 %v1227
  %1736 = vmatpush1.bf16.msra.mxu0 %v1226
  %1737 = vmatprep.subr.bf16.mxu0 %v1231
  %1738 = vmatpush1.bf16.msra.mxu0 %v1230
  %1739 = vmatprep.subr.bf16.mxu0 %v1235
  %1740 = vmatpush1.bf16.msra.mxu0 %v1234
  %1741 = vmatprep.subr.bf16.mxu0 %v1239
  %1742 = vmatpush1.bf16.msra.mxu0 %v1238
  %1743 = vmatprep.subr.bf16.mxu0 %v1243
  %1744 = vmatpush1.bf16.msra.mxu0 %v1242
  %1745 = vmatprep.subr.bf16.mxu0 %v1247
  %1746 = vmatpush1.bf16.msra.mxu0 %v1246
  %1747 = vmatprep.subr.bf16.mxu0 %v1251
  %1748 = vmatpush1.bf16.msra.mxu0 %v1250
  %1749 = vmatprep.subr.bf16.mxu0 %v1255
  %1750 = vmatpush1.bf16.msra.mxu0 %v1254
  %1751 = vmatprep.subr.bf16.mxu0 %v1259
  %1752 = vmatpush1.bf16.msra.mxu0 %v1258
  %1753 = vmatprep.subr.bf16.mxu0 %v1263
  %1754 = vmatpush1.bf16.msra.mxu0 %v1262
  %1755 = vmatprep.subr.bf16.mxu0 %v1267
  %1756 = vmatpush1.bf16.msra.mxu0 %v1266
  %1757 = vmatprep.mubr.bf16.mxu0 %v456
  %1758 = vmatmul.mubr.bf16.gmra.mrb[0].mxu0 %v455
  %v1759 = vpop.f32.mrb[0].mxu0
  %v1760 = vadd.f32 %v1707, %v1759
  %v1761 = vpop.f32.mrb[0].mxu0
  %v1762 = vadd.f32 %v1709, %v1761
  %v1763 = vpop.f32.mrb[0].mxu0
  %v1764 = vadd.f32 %v1711, %v1763
  %v1765 = vpop.f32.mrb[0].mxu0
  %v1766 = vadd.f32 %v1713, %v1765
  %1767 = vmatprep.mubr.bf16.mxu0 %v462
  %1768 = vmatmul.mubr.bf16.gmra.mrb[0].mxu0 %v461
  %v1769 = vpop.f32.mrb[0].mxu0
  %v1770 = vadd.f32 %v1717, %v1769
  %v1771 = vpop.f32.mrb[0].mxu0
  %v1772 = vadd.f32 %v1719, %v1771
  %v1773 = vpop.f32.mrb[0].mxu0
  %v1774 = vadd.f32 %v1721, %v1773
  %v1775 = vpop.f32.mrb[0].mxu0
  %v1776 = vadd.f32 %v1723, %v1775
  %1777 = vdwg.mxu0
  %v1778 = vpack.c.bf16 %v413, %v409
  %v1779 = vpack.c.bf16 %v414, %v410
  %v1780 = vpack.c.bf16 %v415, %v411
  %v1781 = vpack.c.bf16 %v416, %v412
  %v1782 = vpack.c.bf16 %v421, %v417
  %v1783 = vpack.c.bf16 %v422, %v418
  %v1784 = vpack.c.bf16 %v423, %v419
  %v1785 = vpack.c.bf16 %v424, %v420
  %v1787 = vlaneseq
  %v1788 = vshrl.u32 %v1787, 7
  %v1789 = vsub.s32 0, %v1788
  %v1790 = vrot.slane %v450, %v1789
  %v1791 = vlaneseq
  %v1792 = vshrl.u32 %v1791, 7
  %v1793 = vsub.s32 1, %v1792
  %v1794 = vrot.slane %v450, %v1793
  %v1795 = vlaneseq
  %v1796 = vshrl.u32 %v1795, 7
  %v1797 = vsub.s32 2, %v1796
  %v1798 = vrot.slane %v450, %v1797
  %v1799 = vlaneseq
  %v1800 = vshrl.u32 %v1799, 7
  %v1801 = vsub.s32 3, %v1800
  %v1802 = vrot.slane %v450, %v1801
  %v1803 = vlaneseq
  %v1804 = vshrl.u32 %v1803, 7
  %v1805 = vsub.s32 4, %v1804
  %v1806 = vrot.slane %v450, %v1805
  %v1807 = vlaneseq
  %v1808 = vshrl.u32 %v1807, 7
  %v1809 = vsub.s32 5, %v1808
  %v1810 = vrot.slane %v450, %v1809
  %v1817 = vmul.f32 %v425, %v1790
  %v1818 = vmul.f32 %v426, %v1794
  %v1819 = vmul.f32 %v427, %v1798
  %v1820 = vmul.f32 %v428, %v1802
  %v1821 = vmul.f32 %v429, %v1806
  %v1822 = vmul.f32 %v430, %v1810
  %v1823 = vmul.f32 %v431, %v1790
  %v1824 = vmul.f32 %v432, %v1794
  %v1825 = vmul.f32 %v433, %v1798
  %v1826 = vmul.f32 %v434, %v1802
  %v1827 = vmul.f32 %v435, %v1806
  %v1828 = vmul.f32 %v436, %v1810
  %v1829 = vmul.f32 %v437, %v1790
  %v1830 = vmul.f32 %v438, %v1794
  %v1831 = vmul.f32 %v439, %v1798
  %v1832 = vmul.f32 %v440, %v1802
  %v1833 = vmul.f32 %v441, %v1806
  %v1834 = vmul.f32 %v442, %v1810
  %v1835 = vmul.f32 %v443, %v1790
  %v1836 = vmul.f32 %v444, %v1794
  %v1837 = vmul.f32 %v445, %v1798
  %v1838 = vmul.f32 %v446, %v1802
  %v1839 = vmul.f32 %v447, %v1806
  %v1840 = vmul.f32 %v448, %v1810
  %v2033 = vunpack.c.l.b16 %v217
  %v2034 = vunpack.c.h.b16 %v217
  %v2035 = vunpack.c.l.b16 %v218
  %v2036 = vunpack.c.h.b16 %v218
  %v2037 = vunpack.c.l.b16 %v219
  %v2038 = vunpack.c.h.b16 %v219
  %v2039 = vunpack.c.l.b16 %v220
  %v2040 = vunpack.c.h.b16 %v220
  %v2041 = vunpack.c.l.b16 %v221
  %v2042 = vunpack.c.h.b16 %v221
  %v2043 = vunpack.c.l.b16 %v222
  %v2044 = vunpack.c.h.b16 %v222
  %v2045 = vunpack.c.l.b16 %v223
  %v2046 = vunpack.c.h.b16 %v223
  %v2047 = vunpack.c.l.b16 %v224
  %v2048 = vunpack.c.h.b16 %v224
  %v2049 = vunpack.c.l.b16 %v225
  %v2050 = vunpack.c.h.b16 %v225
  %v2051 = vunpack.c.l.b16 %v226
  %v2052 = vunpack.c.h.b16 %v226
  %v2053 = vunpack.c.l.b16 %v227
  %v2054 = vunpack.c.h.b16 %v227
  %v2055 = vunpack.c.l.b16 %v228
  %v2056 = vunpack.c.h.b16 %v228
  %v2057 = vunpack.c.l.b16 %v229
  %v2058 = vunpack.c.h.b16 %v229
  %v2059 = vunpack.c.l.b16 %v230
  %v2060 = vunpack.c.h.b16 %v230
  %v2061 = vunpack.c.l.b16 %v231
  %v2062 = vunpack.c.h.b16 %v231
  %v2063 = vunpack.c.l.b16 %v232
  %v2064 = vunpack.c.h.b16 %v232
  %v2065 = vunpack.c.l.b16 %v233
  %v2066 = vunpack.c.h.b16 %v233
  %v2067 = vunpack.c.l.b16 %v234
  %v2068 = vunpack.c.h.b16 %v234
  %v2069 = vunpack.c.l.b16 %v235
  %v2070 = vunpack.c.h.b16 %v235
  %v2071 = vunpack.c.l.b16 %v236
  %v2072 = vunpack.c.h.b16 %v236
  %v2073 = vunpack.c.l.b16 %v237
  %v2074 = vunpack.c.h.b16 %v237
  %v2075 = vunpack.c.l.b16 %v238
  %v2076 = vunpack.c.h.b16 %v238
  %v2077 = vunpack.c.l.b16 %v239
  %v2078 = vunpack.c.h.b16 %v239
  %v2079 = vunpack.c.l.b16 %v240
  %v2080 = vunpack.c.h.b16 %v240
  %v2081 = vunpack.c.l.b16 %v241
  %v2082 = vunpack.c.h.b16 %v241
  %v2083 = vunpack.c.l.b16 %v242
  %v2084 = vunpack.c.h.b16 %v242
  %v2085 = vunpack.c.l.b16 %v243
  %v2086 = vunpack.c.h.b16 %v243
  %v2087 = vunpack.c.l.b16 %v244
  %v2088 = vunpack.c.h.b16 %v244
  %v2089 = vunpack.c.l.b16 %v245
  %v2090 = vunpack.c.h.b16 %v245
  %v2091 = vunpack.c.l.b16 %v246
  %v2092 = vunpack.c.h.b16 %v246
  %v2093 = vunpack.c.l.b16 %v247
  %v2094 = vunpack.c.h.b16 %v247
  %v2095 = vunpack.c.l.b16 %v248
  %v2096 = vunpack.c.h.b16 %v248
  %v2097 = vunpack.c.l.b16 %v249
  %v2098 = vunpack.c.h.b16 %v249
  %v2099 = vunpack.c.l.b16 %v250
  %v2100 = vunpack.c.h.b16 %v250
  %v2101 = vunpack.c.l.b16 %v251
  %v2102 = vunpack.c.h.b16 %v251
  %v2103 = vunpack.c.l.b16 %v252
  %v2104 = vunpack.c.h.b16 %v252
  %v2105 = vunpack.c.l.b16 %v253
  %v2106 = vunpack.c.h.b16 %v253
  %v2107 = vunpack.c.l.b16 %v254
  %v2108 = vunpack.c.h.b16 %v254
  %v2109 = vunpack.c.l.b16 %v255
  %v2110 = vunpack.c.h.b16 %v255
  %v2111 = vunpack.c.l.b16 %v256
  %v2112 = vunpack.c.h.b16 %v256
  %v2113 = vunpack.c.l.b16 %v257
  %v2114 = vunpack.c.h.b16 %v257
  %v2115 = vunpack.c.l.b16 %v258
  %v2116 = vunpack.c.h.b16 %v258
  %v2117 = vunpack.c.l.b16 %v259
  %v2118 = vunpack.c.h.b16 %v259
  %v2119 = vunpack.c.l.b16 %v260
  %v2120 = vunpack.c.h.b16 %v260
  %v2121 = vunpack.c.l.b16 %v261
  %v2122 = vunpack.c.h.b16 %v261
  %v2123 = vunpack.c.l.b16 %v262
  %v2124 = vunpack.c.h.b16 %v262
  %v2125 = vunpack.c.l.b16 %v263
  %v2126 = vunpack.c.h.b16 %v263
  %v2127 = vunpack.c.l.b16 %v264
  %v2128 = vunpack.c.h.b16 %v264
  %v2129 = vunpack.c.l.b16 %v265
  %v2130 = vunpack.c.h.b16 %v265
  %v2131 = vunpack.c.l.b16 %v266
  %v2132 = vunpack.c.h.b16 %v266
  %v2133 = vunpack.c.l.b16 %v267
  %v2134 = vunpack.c.h.b16 %v267
  %v2135 = vunpack.c.l.b16 %v268
  %v2136 = vunpack.c.h.b16 %v268
  %v2137 = vunpack.c.l.b16 %v269
  %v2138 = vunpack.c.h.b16 %v269
  %v2139 = vunpack.c.l.b16 %v270
  %v2140 = vunpack.c.h.b16 %v270
  %v2141 = vunpack.c.l.b16 %v271
  %v2142 = vunpack.c.h.b16 %v271
  %v2143 = vunpack.c.l.b16 %v272
  %v2144 = vunpack.c.h.b16 %v272
  %v2145 = vunpack.c.l.b16 %v273
  %v2146 = vunpack.c.h.b16 %v273
  %v2147 = vunpack.c.l.b16 %v274
  %v2148 = vunpack.c.h.b16 %v274
  %v2149 = vunpack.c.l.b16 %v275
  %v2150 = vunpack.c.h.b16 %v275
  %v2151 = vunpack.c.l.b16 %v276
  %v2152 = vunpack.c.h.b16 %v276
  %v2153 = vunpack.c.l.b16 %v277
  %v2154 = vunpack.c.h.b16 %v277
  %v2155 = vunpack.c.l.b16 %v278
  %v2156 = vunpack.c.h.b16 %v278
  %v2157 = vunpack.c.l.b16 %v279
  %v2158 = vunpack.c.h.b16 %v279
  %v2159 = vunpack.c.l.b16 %v280
  %v2160 = vunpack.c.h.b16 %v280
  %v2161 = vunpack.c.l.b16 %v281
  %v2162 = vunpack.c.h.b16 %v281
  %v2163 = vunpack.c.l.b16 %v282
  %v2164 = vunpack.c.h.b16 %v282
  %v2165 = vunpack.c.l.b16 %v283
  %v2166 = vunpack.c.h.b16 %v283
  %v2167 = vunpack.c.l.b16 %v284
  %v2168 = vunpack.c.h.b16 %v284
  %v2169 = vunpack.c.l.b16 %v285
  %v2170 = vunpack.c.h.b16 %v285
  %v2171 = vunpack.c.l.b16 %v286
  %v2172 = vunpack.c.h.b16 %v286
  %v2173 = vunpack.c.l.b16 %v287
  %v2174 = vunpack.c.h.b16 %v287
  %v2175 = vunpack.c.l.b16 %v288
  %v2176 = vunpack.c.h.b16 %v288
  %v2177 = vunpack.c.l.b16 %v289
  %v2178 = vunpack.c.h.b16 %v289
  %v2179 = vunpack.c.l.b16 %v290
  %v2180 = vunpack.c.h.b16 %v290
  %v2181 = vunpack.c.l.b16 %v291
  %v2182 = vunpack.c.h.b16 %v291
  %v2183 = vunpack.c.l.b16 %v292
  %v2184 = vunpack.c.h.b16 %v292
  %v2185 = vunpack.c.l.b16 %v293
  %v2186 = vunpack.c.h.b16 %v293
  %v2187 = vunpack.c.l.b16 %v294
  %v2188 = vunpack.c.h.b16 %v294
  %v2189 = vunpack.c.l.b16 %v295
  %v2190 = vunpack.c.h.b16 %v295
  %v2191 = vunpack.c.l.b16 %v296
  %v2192 = vunpack.c.h.b16 %v296
  %v2193 = vunpack.c.l.b16 %v297
  %v2194 = vunpack.c.h.b16 %v297
  %v2195 = vunpack.c.l.b16 %v298
  %v2196 = vunpack.c.h.b16 %v298
  %v2197 = vunpack.c.l.b16 %v299
  %v2198 = vunpack.c.h.b16 %v299
  %v2199 = vunpack.c.l.b16 %v300
  %v2200 = vunpack.c.h.b16 %v300
  %v2201 = vunpack.c.l.b16 %v301
  %v2202 = vunpack.c.h.b16 %v301
  %v2203 = vunpack.c.l.b16 %v302
  %v2204 = vunpack.c.h.b16 %v302
  %v2205 = vunpack.c.l.b16 %v303
  %v2206 = vunpack.c.h.b16 %v303
  %v2207 = vunpack.c.l.b16 %v304
  %v2208 = vunpack.c.h.b16 %v304
  %v2209 = vunpack.c.l.b16 %v305
  %v2210 = vunpack.c.h.b16 %v305
  %v2211 = vunpack.c.l.b16 %v306
  %v2212 = vunpack.c.h.b16 %v306
  %v2213 = vunpack.c.l.b16 %v307
  %v2214 = vunpack.c.h.b16 %v307
  %v2215 = vunpack.c.l.b16 %v308
  %v2216 = vunpack.c.h.b16 %v308
  %v2217 = vunpack.c.l.b16 %v309
  %v2218 = vunpack.c.h.b16 %v309
  %v2219 = vunpack.c.l.b16 %v310
  %v2220 = vunpack.c.h.b16 %v310
  %v2221 = vunpack.c.l.b16 %v311
  %v2222 = vunpack.c.h.b16 %v311
  %v2223 = vunpack.c.l.b16 %v312
  %v2224 = vunpack.c.h.b16 %v312
  %v2225 = vunpack.c.l.b16 %v313
  %v2226 = vunpack.c.h.b16 %v313
  %v2227 = vunpack.c.l.b16 %v314
  %v2228 = vunpack.c.h.b16 %v314
  %v2229 = vunpack.c.l.b16 %v315
  %v2230 = vunpack.c.h.b16 %v315
  %v2231 = vunpack.c.l.b16 %v316
  %v2232 = vunpack.c.h.b16 %v316
  %v2233 = vunpack.c.l.b16 %v317
  %v2234 = vunpack.c.h.b16 %v317
  %v2235 = vunpack.c.l.b16 %v318
  %v2236 = vunpack.c.h.b16 %v318
  %v2237 = vunpack.c.l.b16 %v319
  %v2238 = vunpack.c.h.b16 %v319
  %v2239 = vunpack.c.l.b16 %v320
  %v2240 = vunpack.c.h.b16 %v320
  %v2241 = vunpack.c.l.b16 %v321
  %v2242 = vunpack.c.h.b16 %v321
  %v2243 = vunpack.c.l.b16 %v322
  %v2244 = vunpack.c.h.b16 %v322
  %v2245 = vunpack.c.l.b16 %v323
  %v2246 = vunpack.c.h.b16 %v323
  %v2247 = vunpack.c.l.b16 %v324
  %v2248 = vunpack.c.h.b16 %v324
  %v2249 = vunpack.c.l.b16 %v325
  %v2250 = vunpack.c.h.b16 %v325
  %v2251 = vunpack.c.l.b16 %v326
  %v2252 = vunpack.c.h.b16 %v326
  %v2253 = vunpack.c.l.b16 %v327
  %v2254 = vunpack.c.h.b16 %v327
  %v2255 = vunpack.c.l.b16 %v328
  %v2256 = vunpack.c.h.b16 %v328
  %v2257 = vunpack.c.l.b16 %v329
  %v2258 = vunpack.c.h.b16 %v329
  %v2259 = vunpack.c.l.b16 %v330
  %v2260 = vunpack.c.h.b16 %v330
  %v2261 = vunpack.c.l.b16 %v331
  %v2262 = vunpack.c.h.b16 %v331
  %v2263 = vunpack.c.l.b16 %v332
  %v2264 = vunpack.c.h.b16 %v332
  %v2265 = vunpack.c.l.b16 %v333
  %v2266 = vunpack.c.h.b16 %v333
  %v2267 = vunpack.c.l.b16 %v334
  %v2268 = vunpack.c.h.b16 %v334
  %v2269 = vunpack.c.l.b16 %v335
  %v2270 = vunpack.c.h.b16 %v335
  %v2271 = vunpack.c.l.b16 %v336
  %v2272 = vunpack.c.h.b16 %v336
  %v2273 = vunpack.c.l.b16 %v337
  %v2274 = vunpack.c.h.b16 %v337
  %v2275 = vunpack.c.l.b16 %v338
  %v2276 = vunpack.c.h.b16 %v338
  %v2277 = vunpack.c.l.b16 %v339
  %v2278 = vunpack.c.h.b16 %v339
  %v2279 = vunpack.c.l.b16 %v340
  %v2280 = vunpack.c.h.b16 %v340
  %v2281 = vunpack.c.l.b16 %v341
  %v2282 = vunpack.c.h.b16 %v341
  %v2283 = vunpack.c.l.b16 %v342
  %v2284 = vunpack.c.h.b16 %v342
  %v2285 = vunpack.c.l.b16 %v343
  %v2286 = vunpack.c.h.b16 %v343
  %v2287 = vunpack.c.l.b16 %v344
  %v2288 = vunpack.c.h.b16 %v344
  %v2289 = vunpack.c.l.b16 %v345
  %v2290 = vunpack.c.h.b16 %v345
  %v2291 = vunpack.c.l.b16 %v346
  %v2292 = vunpack.c.h.b16 %v346
  %v2293 = vunpack.c.l.b16 %v347
  %v2294 = vunpack.c.h.b16 %v347
  %v2295 = vunpack.c.l.b16 %v348
  %v2296 = vunpack.c.h.b16 %v348
  %v2297 = vunpack.c.l.b16 %v349
  %v2298 = vunpack.c.h.b16 %v349
  %v2299 = vunpack.c.l.b16 %v350
  %v2300 = vunpack.c.h.b16 %v350
  %v2301 = vunpack.c.l.b16 %v351
  %v2302 = vunpack.c.h.b16 %v351
  %v2303 = vunpack.c.l.b16 %v352
  %v2304 = vunpack.c.h.b16 %v352
  %v2305 = vunpack.c.l.b16 %v353
  %v2306 = vunpack.c.h.b16 %v353
  %v2307 = vunpack.c.l.b16 %v354
  %v2308 = vunpack.c.h.b16 %v354
  %v2309 = vunpack.c.l.b16 %v355
  %v2310 = vunpack.c.h.b16 %v355
  %v2311 = vunpack.c.l.b16 %v356
  %v2312 = vunpack.c.h.b16 %v356
  %v2313 = vunpack.c.l.b16 %v357
  %v2314 = vunpack.c.h.b16 %v357
  %v2315 = vunpack.c.l.b16 %v358
  %v2316 = vunpack.c.h.b16 %v358
  %v2317 = vunpack.c.l.b16 %v359
  %v2318 = vunpack.c.h.b16 %v359
  %v2319 = vunpack.c.l.b16 %v360
  %v2320 = vunpack.c.h.b16 %v360
  %v2321 = vunpack.c.l.b16 %v361
  %v2322 = vunpack.c.h.b16 %v361
  %v2323 = vunpack.c.l.b16 %v362
  %v2324 = vunpack.c.h.b16 %v362
  %v2325 = vunpack.c.l.b16 %v363
  %v2326 = vunpack.c.h.b16 %v363
  %v2327 = vunpack.c.l.b16 %v364
  %v2328 = vunpack.c.h.b16 %v364
  %v2329 = vunpack.c.l.b16 %v365
  %v2330 = vunpack.c.h.b16 %v365
  %v2331 = vunpack.c.l.b16 %v366
  %v2332 = vunpack.c.h.b16 %v366
  %v2333 = vunpack.c.l.b16 %v367
  %v2334 = vunpack.c.h.b16 %v367
  %v2335 = vunpack.c.l.b16 %v368
  %v2336 = vunpack.c.h.b16 %v368
  %v2337 = vunpack.c.l.b16 %v369
  %v2338 = vunpack.c.h.b16 %v369
  %v2339 = vunpack.c.l.b16 %v370
  %v2340 = vunpack.c.h.b16 %v370
  %v2341 = vunpack.c.l.b16 %v371
  %v2342 = vunpack.c.h.b16 %v371
  %v2343 = vunpack.c.l.b16 %v372
  %v2344 = vunpack.c.h.b16 %v372
  %v2345 = vunpack.c.l.b16 %v373
  %v2346 = vunpack.c.h.b16 %v373
  %v2347 = vunpack.c.l.b16 %v374
  %v2348 = vunpack.c.h.b16 %v374
  %v2349 = vunpack.c.l.b16 %v375
  %v2350 = vunpack.c.h.b16 %v375
  %v2351 = vunpack.c.l.b16 %v376
  %v2352 = vunpack.c.h.b16 %v376
  %v2353 = vunpack.c.l.b16 %v377
  %v2354 = vunpack.c.h.b16 %v377
  %v2355 = vunpack.c.l.b16 %v378
  %v2356 = vunpack.c.h.b16 %v378
  %v2357 = vunpack.c.l.b16 %v379
  %v2358 = vunpack.c.h.b16 %v379
  %v2359 = vunpack.c.l.b16 %v380
  %v2360 = vunpack.c.h.b16 %v380
  %v2361 = vunpack.c.l.b16 %v381
  %v2362 = vunpack.c.h.b16 %v381
  %v2363 = vunpack.c.l.b16 %v382
  %v2364 = vunpack.c.h.b16 %v382
  %v2365 = vunpack.c.l.b16 %v383
  %v2366 = vunpack.c.h.b16 %v383
  %v2367 = vunpack.c.l.b16 %v384
  %v2368 = vunpack.c.h.b16 %v384
  %v2369 = vunpack.c.l.b16 %v385
  %v2370 = vunpack.c.h.b16 %v385
  %v2371 = vunpack.c.l.b16 %v386
  %v2372 = vunpack.c.h.b16 %v386
  %v2373 = vunpack.c.l.b16 %v387
  %v2374 = vunpack.c.h.b16 %v387
  %v2375 = vunpack.c.l.b16 %v388
  %v2376 = vunpack.c.h.b16 %v388
  %v2377 = vunpack.c.l.b16 %v389
  %v2378 = vunpack.c.h.b16 %v389
  %v2379 = vunpack.c.l.b16 %v390
  %v2380 = vunpack.c.h.b16 %v390
  %v2381 = vunpack.c.l.b16 %v391
  %v2382 = vunpack.c.h.b16 %v391
  %v2383 = vunpack.c.l.b16 %v392
  %v2384 = vunpack.c.h.b16 %v392
  %v2385 = vunpack.c.l.b16 %v393
  %v2386 = vunpack.c.h.b16 %v393
  %v2387 = vunpack.c.l.b16 %v394
  %v2388 = vunpack.c.h.b16 %v394
  %v2389 = vunpack.c.l.b16 %v395
  %v2390 = vunpack.c.h.b16 %v395
  %v2391 = vunpack.c.l.b16 %v396
  %v2392 = vunpack.c.h.b16 %v396
  %v2393 = vunpack.c.l.b16 %v397
  %v2394 = vunpack.c.h.b16 %v397
  %v2395 = vunpack.c.l.b16 %v398
  %v2396 = vunpack.c.h.b16 %v398
  %v2397 = vunpack.c.l.b16 %v399
  %v2398 = vunpack.c.h.b16 %v399
  %v2399 = vunpack.c.l.b16 %v400
  %v2400 = vunpack.c.h.b16 %v400
  %v2401 = vunpack.c.l.b16 %v401
  %v2402 = vunpack.c.h.b16 %v401
  %v2403 = vunpack.c.l.b16 %v402
  %v2404 = vunpack.c.h.b16 %v402
  %v2405 = vunpack.c.l.b16 %v403
  %v2406 = vunpack.c.h.b16 %v403
  %v2407 = vunpack.c.l.b16 %v404
  %v2408 = vunpack.c.h.b16 %v404
  %v2409 = vunpack.c.l.b16 %v405
  %v2410 = vunpack.c.h.b16 %v405
  %v2411 = vunpack.c.l.b16 %v406
  %v2412 = vunpack.c.h.b16 %v406
  %v2413 = vunpack.c.l.b16 %v407
  %v2414 = vunpack.c.h.b16 %v407
  %v2415 = vunpack.c.l.b16 %v408
  %v2416 = vunpack.c.h.b16 %v408
  %v2417 = vpack.c.b16 %v2039, %v2033
  %v2418 = vpack.c.b16 %v2040, %v2034
  %v2419 = vpack.c.b16 %v2041, %v2035
  %v2420 = vpack.c.b16 %v2042, %v2036
  %v2421 = vpack.c.b16 %v2043, %v2037
  %v2422 = vpack.c.b16 %v2044, %v2038
  %v2423 = vpack.c.b16 %v2051, %v2045
  %v2424 = vpack.c.b16 %v2052, %v2046
  %v2425 = vpack.c.b16 %v2053, %v2047
  %v2426 = vpack.c.b16 %v2054, %v2048
  %v2427 = vpack.c.b16 %v2055, %v2049
  %v2428 = vpack.c.b16 %v2056, %v2050
  %v2429 = vpack.c.b16 %v2063, %v2057
  %v2430 = vpack.c.b16 %v2064, %v2058
  %v2431 = vpack.c.b16 %v2065, %v2059
  %v2432 = vpack.c.b16 %v2066, %v2060
  %v2433 = vpack.c.b16 %v2067, %v2061
  %v2434 = vpack.c.b16 %v2068, %v2062
  %v2435 = vpack.c.b16 %v2075, %v2069
  %v2436 = vpack.c.b16 %v2076, %v2070
  %v2437 = vpack.c.b16 %v2077, %v2071
  %v2438 = vpack.c.b16 %v2078, %v2072
  %v2439 = vpack.c.b16 %v2079, %v2073
  %v2440 = vpack.c.b16 %v2080, %v2074
  %v2441 = vpack.c.b16 %v2087, %v2081
  %v2442 = vpack.c.b16 %v2088, %v2082
  %v2443 = vpack.c.b16 %v2089, %v2083
  %v2444 = vpack.c.b16 %v2090, %v2084
  %v2445 = vpack.c.b16 %v2091, %v2085
  %v2446 = vpack.c.b16 %v2092, %v2086
  %v2447 = vpack.c.b16 %v2099, %v2093
  %v2448 = vpack.c.b16 %v2100, %v2094
  %v2449 = vpack.c.b16 %v2101, %v2095
  %v2450 = vpack.c.b16 %v2102, %v2096
  %v2451 = vpack.c.b16 %v2103, %v2097
  %v2452 = vpack.c.b16 %v2104, %v2098
  %v2453 = vpack.c.b16 %v2111, %v2105
  %v2454 = vpack.c.b16 %v2112, %v2106
  %v2455 = vpack.c.b16 %v2113, %v2107
  %v2456 = vpack.c.b16 %v2114, %v2108
  %v2457 = vpack.c.b16 %v2115, %v2109
  %v2458 = vpack.c.b16 %v2116, %v2110
  %v2459 = vpack.c.b16 %v2123, %v2117
  %v2460 = vpack.c.b16 %v2124, %v2118
  %v2461 = vpack.c.b16 %v2125, %v2119
  %v2462 = vpack.c.b16 %v2126, %v2120
  %v2463 = vpack.c.b16 %v2127, %v2121
  %v2464 = vpack.c.b16 %v2128, %v2122
  %v2465 = vpack.c.b16 %v2135, %v2129
  %v2466 = vpack.c.b16 %v2136, %v2130
  %v2467 = vpack.c.b16 %v2137, %v2131
  %v2468 = vpack.c.b16 %v2138, %v2132
  %v2469 = vpack.c.b16 %v2139, %v2133
  %v2470 = vpack.c.b16 %v2140, %v2134
  %v2471 = vpack.c.b16 %v2147, %v2141
  %v2472 = vpack.c.b16 %v2148, %v2142
  %v2473 = vpack.c.b16 %v2149, %v2143
  %v2474 = vpack.c.b16 %v2150, %v2144
  %v2475 = vpack.c.b16 %v2151, %v2145
  %v2476 = vpack.c.b16 %v2152, %v2146
  %v2477 = vpack.c.b16 %v2159, %v2153
  %v2478 = vpack.c.b16 %v2160, %v2154
  %v2479 = vpack.c.b16 %v2161, %v2155
  %v2480 = vpack.c.b16 %v2162, %v2156
  %v2481 = vpack.c.b16 %v2163, %v2157
  %v2482 = vpack.c.b16 %v2164, %v2158
  %v2483 = vpack.c.b16 %v2171, %v2165
  %v2484 = vpack.c.b16 %v2172, %v2166
  %v2485 = vpack.c.b16 %v2173, %v2167
  %v2486 = vpack.c.b16 %v2174, %v2168
  %v2487 = vpack.c.b16 %v2175, %v2169
  %v2488 = vpack.c.b16 %v2176, %v2170
  %v2489 = vpack.c.b16 %v2183, %v2177
  %v2490 = vpack.c.b16 %v2184, %v2178
  %v2491 = vpack.c.b16 %v2185, %v2179
  %v2492 = vpack.c.b16 %v2186, %v2180
  %v2493 = vpack.c.b16 %v2187, %v2181
  %v2494 = vpack.c.b16 %v2188, %v2182
  %v2495 = vpack.c.b16 %v2195, %v2189
  %v2496 = vpack.c.b16 %v2196, %v2190
  %v2497 = vpack.c.b16 %v2197, %v2191
  %v2498 = vpack.c.b16 %v2198, %v2192
  %v2499 = vpack.c.b16 %v2199, %v2193
  %v2500 = vpack.c.b16 %v2200, %v2194
  %v2501 = vpack.c.b16 %v2207, %v2201
  %v2502 = vpack.c.b16 %v2208, %v2202
  %v2503 = vpack.c.b16 %v2209, %v2203
  %v2504 = vpack.c.b16 %v2210, %v2204
  %v2505 = vpack.c.b16 %v2211, %v2205
  %v2506 = vpack.c.b16 %v2212, %v2206
  %v2507 = vpack.c.b16 %v2219, %v2213
  %v2508 = vpack.c.b16 %v2220, %v2214
  %v2509 = vpack.c.b16 %v2221, %v2215
  %v2510 = vpack.c.b16 %v2222, %v2216
  %v2511 = vpack.c.b16 %v2223, %v2217
  %v2512 = vpack.c.b16 %v2224, %v2218
  %v2513 = vpack.c.b16 %v2231, %v2225
  %v2514 = vpack.c.b16 %v2232, %v2226
  %v2515 = vpack.c.b16 %v2233, %v2227
  %v2516 = vpack.c.b16 %v2234, %v2228
  %v2517 = vpack.c.b16 %v2235, %v2229
  %v2518 = vpack.c.b16 %v2236, %v2230
  %v2519 = vpack.c.b16 %v2243, %v2237
  %v2520 = vpack.c.b16 %v2244, %v2238
  %v2521 = vpack.c.b16 %v2245, %v2239
  %v2522 = vpack.c.b16 %v2246, %v2240
  %v2523 = vpack.c.b16 %v2247, %v2241
  %v2524 = vpack.c.b16 %v2248, %v2242
  %v2525 = vpack.c.b16 %v2255, %v2249
  %v2526 = vpack.c.b16 %v2256, %v2250
  %v2527 = vpack.c.b16 %v2257, %v2251
  %v2528 = vpack.c.b16 %v2258, %v2252
  %v2529 = vpack.c.b16 %v2259, %v2253
  %v2530 = vpack.c.b16 %v2260, %v2254
  %v2531 = vpack.c.b16 %v2267, %v2261
  %v2532 = vpack.c.b16 %v2268, %v2262
  %v2533 = vpack.c.b16 %v2269, %v2263
  %v2534 = vpack.c.b16 %v2270, %v2264
  %v2535 = vpack.c.b16 %v2271, %v2265
  %v2536 = vpack.c.b16 %v2272, %v2266
  %v2537 = vpack.c.b16 %v2279, %v2273
  %v2538 = vpack.c.b16 %v2280, %v2274
  %v2539 = vpack.c.b16 %v2281, %v2275
  %v2540 = vpack.c.b16 %v2282, %v2276
  %v2541 = vpack.c.b16 %v2283, %v2277
  %v2542 = vpack.c.b16 %v2284, %v2278
  %v2543 = vpack.c.b16 %v2291, %v2285
  %v2544 = vpack.c.b16 %v2292, %v2286
  %v2545 = vpack.c.b16 %v2293, %v2287
  %v2546 = vpack.c.b16 %v2294, %v2288
  %v2547 = vpack.c.b16 %v2295, %v2289
  %v2548 = vpack.c.b16 %v2296, %v2290
  %v2549 = vpack.c.b16 %v2303, %v2297
  %v2550 = vpack.c.b16 %v2304, %v2298
  %v2551 = vpack.c.b16 %v2305, %v2299
  %v2552 = vpack.c.b16 %v2306, %v2300
  %v2553 = vpack.c.b16 %v2307, %v2301
  %v2554 = vpack.c.b16 %v2308, %v2302
  %v2555 = vpack.c.b16 %v2315, %v2309
  %v2556 = vpack.c.b16 %v2316, %v2310
  %v2557 = vpack.c.b16 %v2317, %v2311
  %v2558 = vpack.c.b16 %v2318, %v2312
  %v2559 = vpack.c.b16 %v2319, %v2313
  %v2560 = vpack.c.b16 %v2320, %v2314
  %v2561 = vpack.c.b16 %v2327, %v2321
  %v2562 = vpack.c.b16 %v2328, %v2322
  %v2563 = vpack.c.b16 %v2329, %v2323
  %v2564 = vpack.c.b16 %v2330, %v2324
  %v2565 = vpack.c.b16 %v2331, %v2325
  %v2566 = vpack.c.b16 %v2332, %v2326
  %v2567 = vpack.c.b16 %v2339, %v2333
  %v2568 = vpack.c.b16 %v2340, %v2334
  %v2569 = vpack.c.b16 %v2341, %v2335
  %v2570 = vpack.c.b16 %v2342, %v2336
  %v2571 = vpack.c.b16 %v2343, %v2337
  %v2572 = vpack.c.b16 %v2344, %v2338
  %v2573 = vpack.c.b16 %v2351, %v2345
  %v2574 = vpack.c.b16 %v2352, %v2346
  %v2575 = vpack.c.b16 %v2353, %v2347
  %v2576 = vpack.c.b16 %v2354, %v2348
  %v2577 = vpack.c.b16 %v2355, %v2349
  %v2578 = vpack.c.b16 %v2356, %v2350
  %v2579 = vpack.c.b16 %v2363, %v2357
  %v2580 = vpack.c.b16 %v2364, %v2358
  %v2581 = vpack.c.b16 %v2365, %v2359
  %v2582 = vpack.c.b16 %v2366, %v2360
  %v2583 = vpack.c.b16 %v2367, %v2361
  %v2584 = vpack.c.b16 %v2368, %v2362
  %v2585 = vpack.c.b16 %v2375, %v2369
  %v2586 = vpack.c.b16 %v2376, %v2370
  %v2587 = vpack.c.b16 %v2377, %v2371
  %v2588 = vpack.c.b16 %v2378, %v2372
  %v2589 = vpack.c.b16 %v2379, %v2373
  %v2590 = vpack.c.b16 %v2380, %v2374
  %v2591 = vpack.c.b16 %v2387, %v2381
  %v2592 = vpack.c.b16 %v2388, %v2382
  %v2593 = vpack.c.b16 %v2389, %v2383
  %v2594 = vpack.c.b16 %v2390, %v2384
  %v2595 = vpack.c.b16 %v2391, %v2385
  %v2596 = vpack.c.b16 %v2392, %v2386
  %v2597 = vpack.c.b16 %v2399, %v2393
  %v2598 = vpack.c.b16 %v2400, %v2394
  %v2599 = vpack.c.b16 %v2401, %v2395
  %v2600 = vpack.c.b16 %v2402, %v2396
  %v2601 = vpack.c.b16 %v2403, %v2397
  %v2602 = vpack.c.b16 %v2404, %v2398
  %v2603 = vpack.c.b16 %v2411, %v2405
  %v2604 = vpack.c.b16 %v2412, %v2406
  %v2605 = vpack.c.b16 %v2413, %v2407
  %v2606 = vpack.c.b16 %v2414, %v2408
  %v2607 = vpack.c.b16 %v2415, %v2409
  %v2608 = vpack.c.b16 %v2416, %v2410
  %2801 = vmatprep.subr.bf16.mxu0 %v2418
  %2802 = vmatpush1.bf16.msra.mxu0 %v2417
  %2803 = vmatprep.subr.bf16.mxu0 %v2424
  %2804 = vmatpush1.bf16.msra.mxu0 %v2423
  %2805 = vmatprep.subr.bf16.mxu0 %v2430
  %2806 = vmatpush1.bf16.msra.mxu0 %v2429
  %2807 = vmatprep.subr.bf16.mxu0 %v2436
  %2808 = vmatpush1.bf16.msra.mxu0 %v2435
  %2809 = vmatprep.subr.bf16.mxu0 %v2442
  %2810 = vmatpush1.bf16.msra.mxu0 %v2441
  %2811 = vmatprep.subr.bf16.mxu0 %v2448
  %2812 = vmatpush1.bf16.msra.mxu0 %v2447
  %2813 = vmatprep.subr.bf16.mxu0 %v2454
  %2814 = vmatpush1.bf16.msra.mxu0 %v2453
  %2815 = vmatprep.subr.bf16.mxu0 %v2460
  %2816 = vmatpush1.bf16.msra.mxu0 %v2459
  %2817 = vmatprep.subr.bf16.mxu0 %v2466
  %2818 = vmatpush1.bf16.msra.mxu0 %v2465
  %2819 = vmatprep.subr.bf16.mxu0 %v2472
  %2820 = vmatpush1.bf16.msra.mxu0 %v2471
  %2821 = vmatprep.subr.bf16.mxu0 %v2478
  %2822 = vmatpush1.bf16.msra.mxu0 %v2477
  %2823 = vmatprep.subr.bf16.mxu0 %v2484
  %2824 = vmatpush1.bf16.msra.mxu0 %v2483
  %2825 = vmatprep.subr.bf16.mxu0 %v2490
  %2826 = vmatpush1.bf16.msra.mxu0 %v2489
  %2827 = vmatprep.subr.bf16.mxu0 %v2496
  %2828 = vmatpush1.bf16.msra.mxu0 %v2495
  %2829 = vmatprep.subr.bf16.mxu0 %v2502
  %2830 = vmatpush1.bf16.msra.mxu0 %v2501
  %2831 = vmatprep.subr.bf16.mxu0 %v2508
  %2832 = vmatpush1.bf16.msra.mxu0 %v2507
  %2833 = vmatprep.mubr.bf16.mxu0 %v1779
  %2834 = vmatmul.mubr.bf16.gmra.mrb[0].mxu0 %v1778
  %v2835 = vpop.f32.mrb[0].mxu0
  %v2836 = vadd.f32 %v1817, %v2835
  %v2837 = vpop.f32.mrb[0].mxu0
  %v2838 = vadd.f32 %v1818, %v2837
  %v2839 = vpop.f32.mrb[0].mxu0
  %v2840 = vadd.f32 %v1823, %v2839
  %v2841 = vpop.f32.mrb[0].mxu0
  %v2842 = vadd.f32 %v1824, %v2841
  %2843 = vmatprep.mubr.bf16.mxu0 %v1783
  %2844 = vmatmul.mubr.bf16.gmra.mrb[0].mxu0 %v1782
  %v2845 = vpop.f32.mrb[0].mxu0
  %v2846 = vadd.f32 %v1829, %v2845
  %v2847 = vpop.f32.mrb[0].mxu0
  %v2848 = vadd.f32 %v1830, %v2847
  %v2849 = vpop.f32.mrb[0].mxu0
  %v2850 = vadd.f32 %v1835, %v2849
  %v2851 = vpop.f32.mrb[0].mxu0
  %v2852 = vadd.f32 %v1836, %v2851
  %2853 = vdwg.mxu0
  %2854 = vmatprep.subr.bf16.mxu0 %v2514
  %2855 = vmatpush1.bf16.msra.mxu0 %v2513
  %2856 = vmatprep.subr.bf16.mxu0 %v2520
  %2857 = vmatpush1.bf16.msra.mxu0 %v2519
  %2858 = vmatprep.subr.bf16.mxu0 %v2526
  %2859 = vmatpush1.bf16.msra.mxu0 %v2525
  %2860 = vmatprep.subr.bf16.mxu0 %v2532
  %2861 = vmatpush1.bf16.msra.mxu0 %v2531
  %2862 = vmatprep.subr.bf16.mxu0 %v2538
  %2863 = vmatpush1.bf16.msra.mxu0 %v2537
  %2864 = vmatprep.subr.bf16.mxu0 %v2544
  %2865 = vmatpush1.bf16.msra.mxu0 %v2543
  %2866 = vmatprep.subr.bf16.mxu0 %v2550
  %2867 = vmatpush1.bf16.msra.mxu0 %v2549
  %2868 = vmatprep.subr.bf16.mxu0 %v2556
  %2869 = vmatpush1.bf16.msra.mxu0 %v2555
  %2870 = vmatprep.subr.bf16.mxu0 %v2562
  %2871 = vmatpush1.bf16.msra.mxu0 %v2561
  %2872 = vmatprep.subr.bf16.mxu0 %v2568
  %2873 = vmatpush1.bf16.msra.mxu0 %v2567
  %2874 = vmatprep.subr.bf16.mxu0 %v2574
  %2875 = vmatpush1.bf16.msra.mxu0 %v2573
  %2876 = vmatprep.subr.bf16.mxu0 %v2580
  %2877 = vmatpush1.bf16.msra.mxu0 %v2579
  %2878 = vmatprep.subr.bf16.mxu0 %v2586
  %2879 = vmatpush1.bf16.msra.mxu0 %v2585
  %2880 = vmatprep.subr.bf16.mxu0 %v2592
  %2881 = vmatpush1.bf16.msra.mxu0 %v2591
  %2882 = vmatprep.subr.bf16.mxu0 %v2598
  %2883 = vmatpush1.bf16.msra.mxu0 %v2597
  %2884 = vmatprep.subr.bf16.mxu0 %v2604
  %2885 = vmatpush1.bf16.msra.mxu0 %v2603
  %2886 = vmatprep.mubr.bf16.mxu0 %v1781
  %2887 = vmatmul.mubr.bf16.gmra.mrb[0].mxu0 %v1780
  %v2888 = vpop.f32.mrb[0].mxu0
  %v2889 = vadd.f32 %v2836, %v2888
  %v2890 = vpop.f32.mrb[0].mxu0
  %v2891 = vadd.f32 %v2838, %v2890
  %v2892 = vpop.f32.mrb[0].mxu0
  %v2893 = vadd.f32 %v2840, %v2892
  %v2894 = vpop.f32.mrb[0].mxu0
  %v2895 = vadd.f32 %v2842, %v2894
  %2896 = vmatprep.mubr.bf16.mxu0 %v1785
  %2897 = vmatmul.mubr.bf16.gmra.mrb[0].mxu0 %v1784
  %v2898 = vpop.f32.mrb[0].mxu0
  %v2899 = vadd.f32 %v2846, %v2898
  %v2900 = vpop.f32.mrb[0].mxu0
  %v2901 = vadd.f32 %v2848, %v2900
  %v2902 = vpop.f32.mrb[0].mxu0
  %v2903 = vadd.f32 %v2850, %v2902
  %v2904 = vpop.f32.mrb[0].mxu0
  %v2905 = vadd.f32 %v2852, %v2904
  %2906 = vdwg.mxu0
  %2907 = vmatprep.subr.bf16.mxu0 %v2420
  %2908 = vmatpush1.bf16.msra.mxu0 %v2419
  %2909 = vmatprep.subr.bf16.mxu0 %v2426
  %2910 = vmatpush1.bf16.msra.mxu0 %v2425
  %2911 = vmatprep.subr.bf16.mxu0 %v2432
  %2912 = vmatpush1.bf16.msra.mxu0 %v2431
  %2913 = vmatprep.subr.bf16.mxu0 %v2438
  %2914 = vmatpush1.bf16.msra.mxu0 %v2437
  %2915 = vmatprep.subr.bf16.mxu0 %v2444
  %2916 = vmatpush1.bf16.msra.mxu0 %v2443
  %2917 = vmatprep.subr.bf16.mxu0 %v2450
  %2918 = vmatpush1.bf16.msra.mxu0 %v2449
  %2919 = vmatprep.subr.bf16.mxu0 %v2456
  %2920 = vmatpush1.bf16.msra.mxu0 %v2455
  %2921 = vmatprep.subr.bf16.mxu0 %v2462
  %2922 = vmatpush1.bf16.msra.mxu0 %v2461
  %2923 = vmatprep.subr.bf16.mxu0 %v2468
  %2924 = vmatpush1.bf16.msra.mxu0 %v2467
  %2925 = vmatprep.subr.bf16.mxu0 %v2474
  %2926 = vmatpush1.bf16.msra.mxu0 %v2473
  %2927 = vmatprep.subr.bf16.mxu0 %v2480
  %2928 = vmatpush1.bf16.msra.mxu0 %v2479
  %2929 = vmatprep.subr.bf16.mxu0 %v2486
  %2930 = vmatpush1.bf16.msra.mxu0 %v2485
  %2931 = vmatprep.subr.bf16.mxu0 %v2492
  %2932 = vmatpush1.bf16.msra.mxu0 %v2491
  %2933 = vmatprep.subr.bf16.mxu0 %v2498
  %2934 = vmatpush1.bf16.msra.mxu0 %v2497
  %2935 = vmatprep.subr.bf16.mxu0 %v2504
  %2936 = vmatpush1.bf16.msra.mxu0 %v2503
  %2937 = vmatprep.subr.bf16.mxu0 %v2510
  %2938 = vmatpush1.bf16.msra.mxu0 %v2509
  %2939 = vmatprep.mubr.bf16.mxu0 %v1779
  %2940 = vmatmul.mubr.bf16.gmra.mrb[0].mxu0 %v1778
  %v2941 = vpop.f32.mrb[0].mxu0
  %v2942 = vadd.f32 %v1819, %v2941
  %v2943 = vpop.f32.mrb[0].mxu0
  %v2944 = vadd.f32 %v1820, %v2943
  %v2945 = vpop.f32.mrb[0].mxu0
  %v2946 = vadd.f32 %v1825, %v2945
  %v2947 = vpop.f32.mrb[0].mxu0
  %v2948 = vadd.f32 %v1826, %v2947
  %2949 = vmatprep.mubr.bf16.mxu0 %v1783
  %2950 = vmatmul.mubr.bf16.gmra.mrb[0].mxu0 %v1782
  %v2951 = vpop.f32.mrb[0].mxu0
  %v2952 = vadd.f32 %v1831, %v2951
  %v2953 = vpop.f32.mrb[0].mxu0
  %v2954 = vadd.f32 %v1832, %v2953
  %v2955 = vpop.f32.mrb[0].mxu0
  %v2956 = vadd.f32 %v1837, %v2955
  %v2957 = vpop.f32.mrb[0].mxu0
  %v2958 = vadd.f32 %v1838, %v2957
  %2959 = vdwg.mxu0
  %2960 = vmatprep.subr.bf16.mxu0 %v2516
  %2961 = vmatpush1.bf16.msra.mxu0 %v2515
  %2962 = vmatprep.subr.bf16.mxu0 %v2522
  %2963 = vmatpush1.bf16.msra.mxu0 %v2521
  %2964 = vmatprep.subr.bf16.mxu0 %v2528
  %2965 = vmatpush1.bf16.msra.mxu0 %v2527
  %2966 = vmatprep.subr.bf16.mxu0 %v2534
  %2967 = vmatpush1.bf16.msra.mxu0 %v2533
  %2968 = vmatprep.subr.bf16.mxu0 %v2540
  %2969 = vmatpush1.bf16.msra.mxu0 %v2539
  %2970 = vmatprep.subr.bf16.mxu0 %v2546
  %2971 = vmatpush1.bf16.msra.mxu0 %v2545
  %2972 = vmatprep.subr.bf16.mxu0 %v2552
  %2973 = vmatpush1.bf16.msra.mxu0 %v2551
  %2974 = vmatprep.subr.bf16.mxu0 %v2558
  %2975 = vmatpush1.bf16.msra.mxu0 %v2557
  %2976 = vmatprep.subr.bf16.mxu0 %v2564
  %2977 = vmatpush1.bf16.msra.mxu0 %v2563
  %2978 = vmatprep.subr.bf16.mxu0 %v2570
  %2979 = vmatpush1.bf16.msra.mxu0 %v2569
  %2980 = vmatprep.subr.bf16.mxu0 %v2576
  %2981 = vmatpush1.bf16.msra.mxu0 %v2575
  %2982 = vmatprep.subr.bf16.mxu0 %v2582
  %2983 = vmatpush1.bf16.msra.mxu0 %v2581
  %2984 = vmatprep.subr.bf16.mxu0 %v2588
  %2985 = vmatpush1.bf16.msra.mxu0 %v2587
  %2986 = vmatprep.subr.bf16.mxu0 %v2594
  %2987 = vmatpush1.bf16.msra.mxu0 %v2593
  %2988 = vmatprep.subr.bf16.mxu0 %v2600
  %2989 = vmatpush1.bf16.msra.mxu0 %v2599
  %2990 = vmatprep.subr.bf16.mxu0 %v2606
  %2991 = vmatpush1.bf16.msra.mxu0 %v2605
  %2992 = vmatprep.mubr.bf16.mxu0 %v1781
  %2993 = vmatmul.mubr.bf16.gmra.mrb[0].mxu0 %v1780
  %v2994 = vpop.f32.mrb[0].mxu0
  %v2995 = vadd.f32 %v2942, %v2994
  %v2996 = vpop.f32.mrb[0].mxu0
  %v2997 = vadd.f32 %v2944, %v2996
  %v2998 = vpop.f32.mrb[0].mxu0
  %v2999 = vadd.f32 %v2946, %v2998
  %v3000 = vpop.f32.mrb[0].mxu0
  %v3001 = vadd.f32 %v2948, %v3000
  %3002 = vmatprep.mubr.bf16.mxu0 %v1785
  %3003 = vmatmul.mubr.bf16.gmra.mrb[0].mxu0 %v1784
  %v3004 = vpop.f32.mrb[0].mxu0
  %v3005 = vadd.f32 %v2952, %v3004
  %v3006 = vpop.f32.mrb[0].mxu0
  %v3007 = vadd.f32 %v2954, %v3006
  %v3008 = vpop.f32.mrb[0].mxu0
  %v3009 = vadd.f32 %v2956, %v3008
  %v3010 = vpop.f32.mrb[0].mxu0
  %v3011 = vadd.f32 %v2958, %v3010
  %3012 = vdwg.mxu0
  %3013 = vmatprep.subr.bf16.mxu0 %v2422
  %3014 = vmatpush1.bf16.msra.mxu0 %v2421
  %3015 = vmatprep.subr.bf16.mxu0 %v2428
  %3016 = vmatpush1.bf16.msra.mxu0 %v2427
  %3017 = vmatprep.subr.bf16.mxu0 %v2434
  %3018 = vmatpush1.bf16.msra.mxu0 %v2433
  %3019 = vmatprep.subr.bf16.mxu0 %v2440
  %3020 = vmatpush1.bf16.msra.mxu0 %v2439
  %3021 = vmatprep.subr.bf16.mxu0 %v2446
  %3022 = vmatpush1.bf16.msra.mxu0 %v2445
  %3023 = vmatprep.subr.bf16.mxu0 %v2452
  %3024 = vmatpush1.bf16.msra.mxu0 %v2451
  %3025 = vmatprep.subr.bf16.mxu0 %v2458
  %3026 = vmatpush1.bf16.msra.mxu0 %v2457
  %3027 = vmatprep.subr.bf16.mxu0 %v2464
  %3028 = vmatpush1.bf16.msra.mxu0 %v2463
  %3029 = vmatprep.subr.bf16.mxu0 %v2470
  %3030 = vmatpush1.bf16.msra.mxu0 %v2469
  %3031 = vmatprep.subr.bf16.mxu0 %v2476
  %3032 = vmatpush1.bf16.msra.mxu0 %v2475
  %3033 = vmatprep.subr.bf16.mxu0 %v2482
  %3034 = vmatpush1.bf16.msra.mxu0 %v2481
  %3035 = vmatprep.subr.bf16.mxu0 %v2488
  %3036 = vmatpush1.bf16.msra.mxu0 %v2487
  %3037 = vmatprep.subr.bf16.mxu0 %v2494
  %3038 = vmatpush1.bf16.msra.mxu0 %v2493
  %3039 = vmatprep.subr.bf16.mxu0 %v2500
  %3040 = vmatpush1.bf16.msra.mxu0 %v2499
  %3041 = vmatprep.subr.bf16.mxu0 %v2506
  %3042 = vmatpush1.bf16.msra.mxu0 %v2505
  %3043 = vmatprep.subr.bf16.mxu0 %v2512
  %3044 = vmatpush1.bf16.msra.mxu0 %v2511
  %3045 = vmatprep.mubr.bf16.mxu0 %v1779
  %3046 = vmatmul.mubr.bf16.gmra.mrb[0].mxu0 %v1778
  %v3047 = vpop.f32.mrb[0].mxu0
  %v3048 = vadd.f32 %v1821, %v3047
  %v3049 = vpop.f32.mrb[0].mxu0
  %v3050 = vadd.f32 %v1822, %v3049
  %v3051 = vpop.f32.mrb[0].mxu0
  %v3052 = vadd.f32 %v1827, %v3051
  %v3053 = vpop.f32.mrb[0].mxu0
  %v3054 = vadd.f32 %v1828, %v3053
  %3055 = vmatprep.mubr.bf16.mxu0 %v1783
  %3056 = vmatmul.mubr.bf16.gmra.mrb[0].mxu0 %v1782
  %v3057 = vpop.f32.mrb[0].mxu0
  %v3058 = vadd.f32 %v1833, %v3057
  %v3059 = vpop.f32.mrb[0].mxu0
  %v3060 = vadd.f32 %v1834, %v3059
  %v3061 = vpop.f32.mrb[0].mxu0
  %v3062 = vadd.f32 %v1839, %v3061
  %v3063 = vpop.f32.mrb[0].mxu0
  %v3064 = vadd.f32 %v1840, %v3063
  %3065 = vdwg.mxu0
  %3066 = vmatprep.subr.bf16.mxu0 %v2518
  %3067 = vmatpush1.bf16.msra.mxu0 %v2517
  %3068 = vmatprep.subr.bf16.mxu0 %v2524
  %3069 = vmatpush1.bf16.msra.mxu0 %v2523
  %3070 = vmatprep.subr.bf16.mxu0 %v2530
  %3071 = vmatpush1.bf16.msra.mxu0 %v2529
  %3072 = vmatprep.subr.bf16.mxu0 %v2536
  %3073 = vmatpush1.bf16.msra.mxu0 %v2535
  %3074 = vmatprep.subr.bf16.mxu0 %v2542
  %3075 = vmatpush1.bf16.msra.mxu0 %v2541
  %3076 = vmatprep.subr.bf16.mxu0 %v2548
  %3077 = vmatpush1.bf16.msra.mxu0 %v2547
  %3078 = vmatprep.subr.bf16.mxu0 %v2554
  %3079 = vmatpush1.bf16.msra.mxu0 %v2553
  %3080 = vmatprep.subr.bf16.mxu0 %v2560
  %3081 = vmatpush1.bf16.msra.mxu0 %v2559
  %3082 = vmatprep.subr.bf16.mxu0 %v2566
  %3083 = vmatpush1.bf16.msra.mxu0 %v2565
  %3084 = vmatprep.subr.bf16.mxu0 %v2572
  %3085 = vmatpush1.bf16.msra.mxu0 %v2571
  %3086 = vmatprep.subr.bf16.mxu0 %v2578
  %3087 = vmatpush1.bf16.msra.mxu0 %v2577
  %3088 = vmatprep.subr.bf16.mxu0 %v2584
  %3089 = vmatpush1.bf16.msra.mxu0 %v2583
  %3090 = vmatprep.subr.bf16.mxu0 %v2590
  %3091 = vmatpush1.bf16.msra.mxu0 %v2589
  %3092 = vmatprep.subr.bf16.mxu0 %v2596
  %3093 = vmatpush1.bf16.msra.mxu0 %v2595
  %3094 = vmatprep.subr.bf16.mxu0 %v2602
  %3095 = vmatpush1.bf16.msra.mxu0 %v2601
  %3096 = vmatprep.subr.bf16.mxu0 %v2608
  %3097 = vmatpush1.bf16.msra.mxu0 %v2607
  %3098 = vmatprep.mubr.bf16.mxu0 %v1781
  %3099 = vmatmul.mubr.bf16.gmra.mrb[0].mxu0 %v1780
  %v3100 = vpop.f32.mrb[0].mxu0
  %v3101 = vadd.f32 %v3048, %v3100
  %v3102 = vpop.f32.mrb[0].mxu0
  %v3103 = vadd.f32 %v3050, %v3102
  %v3104 = vpop.f32.mrb[0].mxu0
  %v3105 = vadd.f32 %v3052, %v3104
  %v3106 = vpop.f32.mrb[0].mxu0
  %v3107 = vadd.f32 %v3054, %v3106
  %3108 = vmatprep.mubr.bf16.mxu0 %v1785
  %3109 = vmatmul.mubr.bf16.gmra.mrb[0].mxu0 %v1784
  %v3110 = vpop.f32.mrb[0].mxu0
  %v3111 = vadd.f32 %v3058, %v3110
  %v3112 = vpop.f32.mrb[0].mxu0
  %v3113 = vadd.f32 %v3060, %v3112
  %v3114 = vpop.f32.mrb[0].mxu0
  %v3115 = vadd.f32 %v3062, %v3114
  %v3116 = vpop.f32.mrb[0].mxu0
  %v3117 = vadd.f32 %v3064, %v3116
  %3118 = vdwg.mxu0
  %v3119 = vpack.c.bf16 %v2893, %v2889
  %v3120 = vpack.c.bf16 %v2895, %v2891
  %v3121 = vpack.c.bf16 %v2999, %v2995
  %v3122 = vpack.c.bf16 %v3001, %v2997
  %v3123 = vpack.c.bf16 %v3105, %v3101
  %v3124 = vpack.c.bf16 %v3107, %v3103
  %v3125 = vpack.c.bf16 %v2903, %v2899
  %v3126 = vpack.c.bf16 %v2905, %v2901
  %v3127 = vpack.c.bf16 %v3009, %v3005
  %v3128 = vpack.c.bf16 %v3011, %v3007
  %v3129 = vpack.c.bf16 %v3115, %v3111
  %v3130 = vpack.c.bf16 %v3117, %v3113
  %v3131 = vmul.f32 %v1601, %v467
  %v3132 = vmul.f32 %v1603, %v471
  %v3133 = vmul.f32 %v1760, %v475
  %v3134 = vmul.f32 %v1762, %v479
  %v3135 = vmul.f32 %v1605, %v467
  %v3136 = vmul.f32 %v1607, %v471
  %v3137 = vmul.f32 %v1764, %v475
  %v3138 = vmul.f32 %v1766, %v479
  %v3139 = vmul.f32 %v1611, %v467
  %v3140 = vmul.f32 %v1613, %v471
  %v3141 = vmul.f32 %v1770, %v475
  %v3142 = vmul.f32 %v1772, %v479
  %v3143 = vmul.f32 %v1615, %v467
  %v3144 = vmul.f32 %v1617, %v471
  %v3145 = vmul.f32 %v1774, %v475
  %v3146 = vmul.f32 %v1776, %v479
  %3147 = vmatprep.subr.bf16.mxu0 %v1077
  %3148 = vmatpush1.bf16.msra.mxu0 %v1076
  %3149 = vmatprep.subr.bf16.mxu0 %v1081
  %3150 = vmatpush1.bf16.msra.mxu0 %v1080
  %3151 = vmatprep.subr.bf16.mxu0 %v1085
  %3152 = vmatpush1.bf16.msra.mxu0 %v1084
  %3153 = vmatprep.subr.bf16.mxu0 %v1089
  %3154 = vmatpush1.bf16.msra.mxu0 %v1088
  %3155 = vmatprep.subr.bf16.mxu0 %v1093
  %3156 = vmatpush1.bf16.msra.mxu0 %v1092
  %3157 = vmatprep.subr.bf16.mxu0 %v1097
  %3158 = vmatpush1.bf16.msra.mxu0 %v1096
  %3159 = vmatprep.subr.bf16.mxu0 %v1101
  %3160 = vmatpush1.bf16.msra.mxu0 %v1100
  %3161 = vmatprep.subr.bf16.mxu0 %v1105
  %3162 = vmatpush1.bf16.msra.mxu0 %v1104
  %3163 = vmatprep.subr.bf16.mxu0 %v1109
  %3164 = vmatpush1.bf16.msra.mxu0 %v1108
  %3165 = vmatprep.subr.bf16.mxu0 %v1113
  %3166 = vmatpush1.bf16.msra.mxu0 %v1112
  %3167 = vmatprep.subr.bf16.mxu0 %v1117
  %3168 = vmatpush1.bf16.msra.mxu0 %v1116
  %3169 = vmatprep.subr.bf16.mxu0 %v1121
  %3170 = vmatpush1.bf16.msra.mxu0 %v1120
  %3171 = vmatprep.subr.bf16.mxu0 %v1125
  %3172 = vmatpush1.bf16.msra.mxu0 %v1124
  %3173 = vmatprep.subr.bf16.mxu0 %v1129
  %3174 = vmatpush1.bf16.msra.mxu0 %v1128
  %3175 = vmatprep.subr.bf16.mxu0 %v1133
  %3176 = vmatpush1.bf16.msra.mxu0 %v1132
  %3177 = vmatprep.subr.bf16.mxu0 %v1137
  %3178 = vmatpush1.bf16.msra.mxu0 %v1136
  %3179 = vmatprep.mubr.bf16.mxu0 %v3120
  %3180 = vmatmul.mubr.bf16.gmra.mrb[0].mxu0 %v3119
  %v3181 = vpop.f32.mrb[0].mxu0
  %v3182 = vadd.f32 %v3131, %v3181
  %v3183 = vpop.f32.mrb[0].mxu0
  %v3184 = vadd.f32 %v3132, %v3183
  %v3185 = vpop.f32.mrb[0].mxu0
  %v3186 = vadd.f32 %v3135, %v3185
  %v3187 = vpop.f32.mrb[0].mxu0
  %v3188 = vadd.f32 %v3136, %v3187
  %3189 = vmatprep.mubr.bf16.mxu0 %v3126
  %3190 = vmatmul.mubr.bf16.gmra.mrb[0].mxu0 %v3125
  %v3191 = vpop.f32.mrb[0].mxu0
  %v3192 = vadd.f32 %v3139, %v3191
  %v3193 = vpop.f32.mrb[0].mxu0
  %v3194 = vadd.f32 %v3140, %v3193
  %v3195 = vpop.f32.mrb[0].mxu0
  %v3196 = vadd.f32 %v3143, %v3195
  %v3197 = vpop.f32.mrb[0].mxu0
  %v3198 = vadd.f32 %v3144, %v3197
  %3199 = vdwg.mxu0
  %3200 = vmatprep.subr.bf16.mxu0 %v1141
  %3201 = vmatpush1.bf16.msra.mxu0 %v1140
  %3202 = vmatprep.subr.bf16.mxu0 %v1145
  %3203 = vmatpush1.bf16.msra.mxu0 %v1144
  %3204 = vmatprep.subr.bf16.mxu0 %v1149
  %3205 = vmatpush1.bf16.msra.mxu0 %v1148
  %3206 = vmatprep.subr.bf16.mxu0 %v1153
  %3207 = vmatpush1.bf16.msra.mxu0 %v1152
  %3208 = vmatprep.subr.bf16.mxu0 %v1157
  %3209 = vmatpush1.bf16.msra.mxu0 %v1156
  %3210 = vmatprep.subr.bf16.mxu0 %v1161
  %3211 = vmatpush1.bf16.msra.mxu0 %v1160
  %3212 = vmatprep.subr.bf16.mxu0 %v1165
  %3213 = vmatpush1.bf16.msra.mxu0 %v1164
  %3214 = vmatprep.subr.bf16.mxu0 %v1169
  %3215 = vmatpush1.bf16.msra.mxu0 %v1168
  %3216 = vmatprep.subr.bf16.mxu0 %v1173
  %3217 = vmatpush1.bf16.msra.mxu0 %v1172
  %3218 = vmatprep.subr.bf16.mxu0 %v1177
  %3219 = vmatpush1.bf16.msra.mxu0 %v1176
  %3220 = vmatprep.subr.bf16.mxu0 %v1181
  %3221 = vmatpush1.bf16.msra.mxu0 %v1180
  %3222 = vmatprep.subr.bf16.mxu0 %v1185
  %3223 = vmatpush1.bf16.msra.mxu0 %v1184
  %3224 = vmatprep.subr.bf16.mxu0 %v1189
  %3225 = vmatpush1.bf16.msra.mxu0 %v1188
  %3226 = vmatprep.subr.bf16.mxu0 %v1193
  %3227 = vmatpush1.bf16.msra.mxu0 %v1192
  %3228 = vmatprep.subr.bf16.mxu0 %v1197
  %3229 = vmatpush1.bf16.msra.mxu0 %v1196
  %3230 = vmatprep.subr.bf16.mxu0 %v1201
  %3231 = vmatpush1.bf16.msra.mxu0 %v1200
  %3232 = vmatprep.mubr.bf16.mxu0 %v3122
  %3233 = vmatmul.mubr.bf16.gmra.mrb[0].mxu0 %v3121
  %v3234 = vpop.f32.mrb[0].mxu0
  %v3235 = vadd.f32 %v3182, %v3234
  %v3236 = vpop.f32.mrb[0].mxu0
  %v3237 = vadd.f32 %v3184, %v3236
  %v3238 = vpop.f32.mrb[0].mxu0
  %v3239 = vadd.f32 %v3186, %v3238
  %v3240 = vpop.f32.mrb[0].mxu0
  %v3241 = vadd.f32 %v3188, %v3240
  %3242 = vmatprep.mubr.bf16.mxu0 %v3128
  %3243 = vmatmul.mubr.bf16.gmra.mrb[0].mxu0 %v3127
  %v3244 = vpop.f32.mrb[0].mxu0
  %v3245 = vadd.f32 %v3192, %v3244
  %v3246 = vpop.f32.mrb[0].mxu0
  %v3247 = vadd.f32 %v3194, %v3246
  %v3248 = vpop.f32.mrb[0].mxu0
  %v3249 = vadd.f32 %v3196, %v3248
  %v3250 = vpop.f32.mrb[0].mxu0
  %v3251 = vadd.f32 %v3198, %v3250
  %3252 = vdwg.mxu0
  %3253 = vmatprep.subr.bf16.mxu0 %v1205
  %3254 = vmatpush1.bf16.msra.mxu0 %v1204
  %3255 = vmatprep.subr.bf16.mxu0 %v1209
  %3256 = vmatpush1.bf16.msra.mxu0 %v1208
  %3257 = vmatprep.subr.bf16.mxu0 %v1213
  %3258 = vmatpush1.bf16.msra.mxu0 %v1212
  %3259 = vmatprep.subr.bf16.mxu0 %v1217
  %3260 = vmatpush1.bf16.msra.mxu0 %v1216
  %3261 = vmatprep.subr.bf16.mxu0 %v1221
  %3262 = vmatpush1.bf16.msra.mxu0 %v1220
  %3263 = vmatprep.subr.bf16.mxu0 %v1225
  %3264 = vmatpush1.bf16.msra.mxu0 %v1224
  %3265 = vmatprep.subr.bf16.mxu0 %v1229
  %3266 = vmatpush1.bf16.msra.mxu0 %v1228
  %3267 = vmatprep.subr.bf16.mxu0 %v1233
  %3268 = vmatpush1.bf16.msra.mxu0 %v1232
  %3269 = vmatprep.subr.bf16.mxu0 %v1237
  %3270 = vmatpush1.bf16.msra.mxu0 %v1236
  %3271 = vmatprep.subr.bf16.mxu0 %v1241
  %3272 = vmatpush1.bf16.msra.mxu0 %v1240
  %3273 = vmatprep.subr.bf16.mxu0 %v1245
  %3274 = vmatpush1.bf16.msra.mxu0 %v1244
  %3275 = vmatprep.subr.bf16.mxu0 %v1249
  %3276 = vmatpush1.bf16.msra.mxu0 %v1248
  %3277 = vmatprep.subr.bf16.mxu0 %v1253
  %3278 = vmatpush1.bf16.msra.mxu0 %v1252
  %3279 = vmatprep.subr.bf16.mxu0 %v1257
  %3280 = vmatpush1.bf16.msra.mxu0 %v1256
  %3281 = vmatprep.subr.bf16.mxu0 %v1261
  %3282 = vmatpush1.bf16.msra.mxu0 %v1260
  %3283 = vmatprep.subr.bf16.mxu0 %v1265
  %3284 = vmatpush1.bf16.msra.mxu0 %v1264
  %3285 = vmatprep.mubr.bf16.mxu0 %v3124
  %3286 = vmatmul.mubr.bf16.gmra.mrb[0].mxu0 %v3123
  %v3287 = vpop.f32.mrb[0].mxu0
  %v3288 = vadd.f32 %v3235, %v3287
  %v3289 = vpop.f32.mrb[0].mxu0
  %v3290 = vadd.f32 %v3237, %v3289
  %v3291 = vpop.f32.mrb[0].mxu0
  %v3292 = vadd.f32 %v3239, %v3291
  %v3293 = vpop.f32.mrb[0].mxu0
  %v3294 = vadd.f32 %v3241, %v3293
  %3295 = vmatprep.mubr.bf16.mxu0 %v3130
  %3296 = vmatmul.mubr.bf16.gmra.mrb[0].mxu0 %v3129
  %v3297 = vpop.f32.mrb[0].mxu0
  %v3298 = vadd.f32 %v3245, %v3297
  %v3299 = vpop.f32.mrb[0].mxu0
  %v3300 = vadd.f32 %v3247, %v3299
  %v3301 = vpop.f32.mrb[0].mxu0
  %v3302 = vadd.f32 %v3249, %v3301
  %v3303 = vpop.f32.mrb[0].mxu0
  %v3304 = vadd.f32 %v3251, %v3303
  %3305 = vdwg.mxu0
  %3306 = vmatprep.subr.bf16.mxu0 %v1079
  %3307 = vmatpush1.bf16.msra.mxu0 %v1078
  %3308 = vmatprep.subr.bf16.mxu0 %v1083
  %3309 = vmatpush1.bf16.msra.mxu0 %v1082
  %3310 = vmatprep.subr.bf16.mxu0 %v1087
  %3311 = vmatpush1.bf16.msra.mxu0 %v1086
  %3312 = vmatprep.subr.bf16.mxu0 %v1091
  %3313 = vmatpush1.bf16.msra.mxu0 %v1090
  %3314 = vmatprep.subr.bf16.mxu0 %v1095
  %3315 = vmatpush1.bf16.msra.mxu0 %v1094
  %3316 = vmatprep.subr.bf16.mxu0 %v1099
  %3317 = vmatpush1.bf16.msra.mxu0 %v1098
  %3318 = vmatprep.subr.bf16.mxu0 %v1103
  %3319 = vmatpush1.bf16.msra.mxu0 %v1102
  %3320 = vmatprep.subr.bf16.mxu0 %v1107
  %3321 = vmatpush1.bf16.msra.mxu0 %v1106
  %3322 = vmatprep.subr.bf16.mxu0 %v1111
  %3323 = vmatpush1.bf16.msra.mxu0 %v1110
  %3324 = vmatprep.subr.bf16.mxu0 %v1115
  %3325 = vmatpush1.bf16.msra.mxu0 %v1114
  %3326 = vmatprep.subr.bf16.mxu0 %v1119
  %3327 = vmatpush1.bf16.msra.mxu0 %v1118
  %3328 = vmatprep.subr.bf16.mxu0 %v1123
  %3329 = vmatpush1.bf16.msra.mxu0 %v1122
  %3330 = vmatprep.subr.bf16.mxu0 %v1127
  %3331 = vmatpush1.bf16.msra.mxu0 %v1126
  %3332 = vmatprep.subr.bf16.mxu0 %v1131
  %3333 = vmatpush1.bf16.msra.mxu0 %v1130
  %3334 = vmatprep.subr.bf16.mxu0 %v1135
  %3335 = vmatpush1.bf16.msra.mxu0 %v1134
  %3336 = vmatprep.subr.bf16.mxu0 %v1139
  %3337 = vmatpush1.bf16.msra.mxu0 %v1138
  %3338 = vmatprep.mubr.bf16.mxu0 %v3120
  %3339 = vmatmul.mubr.bf16.gmra.mrb[0].mxu0 %v3119
  %v3340 = vpop.f32.mrb[0].mxu0
  %v3341 = vadd.f32 %v3133, %v3340
  %v3342 = vpop.f32.mrb[0].mxu0
  %v3343 = vadd.f32 %v3134, %v3342
  %v3344 = vpop.f32.mrb[0].mxu0
  %v3345 = vadd.f32 %v3137, %v3344
  %v3346 = vpop.f32.mrb[0].mxu0
  %v3347 = vadd.f32 %v3138, %v3346
  %3348 = vmatprep.mubr.bf16.mxu0 %v3126
  %3349 = vmatmul.mubr.bf16.gmra.mrb[0].mxu0 %v3125
  %v3350 = vpop.f32.mrb[0].mxu0
  %v3351 = vadd.f32 %v3141, %v3350
  %v3352 = vpop.f32.mrb[0].mxu0
  %v3353 = vadd.f32 %v3142, %v3352
  %v3354 = vpop.f32.mrb[0].mxu0
  %v3355 = vadd.f32 %v3145, %v3354
  %v3356 = vpop.f32.mrb[0].mxu0
  %v3357 = vadd.f32 %v3146, %v3356
  %3358 = vdwg.mxu0
  %3359 = vmatprep.subr.bf16.mxu0 %v1143
  %3360 = vmatpush1.bf16.msra.mxu0 %v1142
  %3361 = vmatprep.subr.bf16.mxu0 %v1147
  %3362 = vmatpush1.bf16.msra.mxu0 %v1146
  %3363 = vmatprep.subr.bf16.mxu0 %v1151
  %3364 = vmatpush1.bf16.msra.mxu0 %v1150
  %3365 = vmatprep.subr.bf16.mxu0 %v1155
  %3366 = vmatpush1.bf16.msra.mxu0 %v1154
  %3367 = vmatprep.subr.bf16.mxu0 %v1159
  %3368 = vmatpush1.bf16.msra.mxu0 %v1158
  %3369 = vmatprep.subr.bf16.mxu0 %v1163
  %3370 = vmatpush1.bf16.msra.mxu0 %v1162
  %3371 = vmatprep.subr.bf16.mxu0 %v1167
  %3372 = vmatpush1.bf16.msra.mxu0 %v1166
  %3373 = vmatprep.subr.bf16.mxu0 %v1171
  %3374 = vmatpush1.bf16.msra.mxu0 %v1170
  %3375 = vmatprep.subr.bf16.mxu0 %v1175
  %3376 = vmatpush1.bf16.msra.mxu0 %v1174
  %3377 = vmatprep.subr.bf16.mxu0 %v1179
  %3378 = vmatpush1.bf16.msra.mxu0 %v1178
  %3379 = vmatprep.subr.bf16.mxu0 %v1183
  %3380 = vmatpush1.bf16.msra.mxu0 %v1182
  %3381 = vmatprep.subr.bf16.mxu0 %v1187
  %3382 = vmatpush1.bf16.msra.mxu0 %v1186
  %3383 = vmatprep.subr.bf16.mxu0 %v1191
  %3384 = vmatpush1.bf16.msra.mxu0 %v1190
  %3385 = vmatprep.subr.bf16.mxu0 %v1195
  %3386 = vmatpush1.bf16.msra.mxu0 %v1194
  %3387 = vmatprep.subr.bf16.mxu0 %v1199
  %3388 = vmatpush1.bf16.msra.mxu0 %v1198
  %3389 = vmatprep.subr.bf16.mxu0 %v1203
  %3390 = vmatpush1.bf16.msra.mxu0 %v1202
  %3391 = vmatprep.mubr.bf16.mxu0 %v3122
  %3392 = vmatmul.mubr.bf16.gmra.mrb[0].mxu0 %v3121
  %v3393 = vpop.f32.mrb[0].mxu0
  %v3394 = vadd.f32 %v3341, %v3393
  %v3395 = vpop.f32.mrb[0].mxu0
  %v3396 = vadd.f32 %v3343, %v3395
  %v3397 = vpop.f32.mrb[0].mxu0
  %v3398 = vadd.f32 %v3345, %v3397
  %v3399 = vpop.f32.mrb[0].mxu0
  %v3400 = vadd.f32 %v3347, %v3399
  %3401 = vmatprep.mubr.bf16.mxu0 %v3128
  %3402 = vmatmul.mubr.bf16.gmra.mrb[0].mxu0 %v3127
  %v3403 = vpop.f32.mrb[0].mxu0
  %v3404 = vadd.f32 %v3351, %v3403
  %v3405 = vpop.f32.mrb[0].mxu0
  %v3406 = vadd.f32 %v3353, %v3405
  %v3407 = vpop.f32.mrb[0].mxu0
  %v3408 = vadd.f32 %v3355, %v3407
  %v3409 = vpop.f32.mrb[0].mxu0
  %v3410 = vadd.f32 %v3357, %v3409
  %3411 = vdwg.mxu0
  %3412 = vmatprep.subr.bf16.mxu0 %v1207
  %3413 = vmatpush1.bf16.msra.mxu0 %v1206
  %3414 = vmatprep.subr.bf16.mxu0 %v1211
  %3415 = vmatpush1.bf16.msra.mxu0 %v1210
  %3416 = vmatprep.subr.bf16.mxu0 %v1215
  %3417 = vmatpush1.bf16.msra.mxu0 %v1214
  %3418 = vmatprep.subr.bf16.mxu0 %v1219
  %3419 = vmatpush1.bf16.msra.mxu0 %v1218
  %3420 = vmatprep.subr.bf16.mxu0 %v1223
  %3421 = vmatpush1.bf16.msra.mxu0 %v1222
  %3422 = vmatprep.subr.bf16.mxu0 %v1227
  %3423 = vmatpush1.bf16.msra.mxu0 %v1226
  %3424 = vmatprep.subr.bf16.mxu0 %v1231
  %3425 = vmatpush1.bf16.msra.mxu0 %v1230
  %3426 = vmatprep.subr.bf16.mxu0 %v1235
  %3427 = vmatpush1.bf16.msra.mxu0 %v1234
  %3428 = vmatprep.subr.bf16.mxu0 %v1239
  %3429 = vmatpush1.bf16.msra.mxu0 %v1238
  %3430 = vmatprep.subr.bf16.mxu0 %v1243
  %3431 = vmatpush1.bf16.msra.mxu0 %v1242
  %3432 = vmatprep.subr.bf16.mxu0 %v1247
  %3433 = vmatpush1.bf16.msra.mxu0 %v1246
  %3434 = vmatprep.subr.bf16.mxu0 %v1251
  %3435 = vmatpush1.bf16.msra.mxu0 %v1250
  %3436 = vmatprep.subr.bf16.mxu0 %v1255
  %3437 = vmatpush1.bf16.msra.mxu0 %v1254
  %3438 = vmatprep.subr.bf16.mxu0 %v1259
  %3439 = vmatpush1.bf16.msra.mxu0 %v1258
  %3440 = vmatprep.subr.bf16.mxu0 %v1263
  %3441 = vmatpush1.bf16.msra.mxu0 %v1262
  %3442 = vmatprep.subr.bf16.mxu0 %v1267
  %3443 = vmatpush1.bf16.msra.mxu0 %v1266
  %3444 = vmatprep.mubr.bf16.mxu0 %v3124
  %3445 = vmatmul.mubr.bf16.gmra.mrb[0].mxu0 %v3123
  %v3446 = vpop.f32.mrb[0].mxu0
  %v3447 = vadd.f32 %v3394, %v3446
  %v3448 = vpop.f32.mrb[0].mxu0
  %v3449 = vadd.f32 %v3396, %v3448
  %v3450 = vpop.f32.mrb[0].mxu0
  %v3451 = vadd.f32 %v3398, %v3450
  %v3452 = vpop.f32.mrb[0].mxu0
  %v3453 = vadd.f32 %v3400, %v3452
  %3454 = vmatprep.mubr.bf16.mxu0 %v3130
  %3455 = vmatmul.mubr.bf16.gmra.mrb[0].mxu0 %v3129
  %v3456 = vpop.f32.mrb[0].mxu0
  %v3457 = vadd.f32 %v3404, %v3456
  %v3458 = vpop.f32.mrb[0].mxu0
  %v3459 = vadd.f32 %v3406, %v3458
  %v3460 = vpop.f32.mrb[0].mxu0
  %v3461 = vadd.f32 %v3408, %v3460
  %v3462 = vpop.f32.mrb[0].mxu0
  %v3463 = vadd.f32 %v3410, %v3462
  %3464 = vdwg.mxu0
  %v3465 = vpack.c.bf16 %v1605, %v1601
  %v3466 = vpack.c.bf16 %v1607, %v1603
  %v3467 = vpack.c.bf16 %v1764, %v1760
  %v3468 = vpack.c.bf16 %v1766, %v1762
  %v3469 = vpack.c.bf16 %v1615, %v1611
  %v3470 = vpack.c.bf16 %v1617, %v1613
  %v3471 = vpack.c.bf16 %v1774, %v1770
  %v3472 = vpack.c.bf16 %v1776, %v1772
  %v3473 = vmul.f32 %v2889, %v1790
  %v3474 = vmul.f32 %v2891, %v1794
  %v3475 = vmul.f32 %v2995, %v1798
  %v3476 = vmul.f32 %v2997, %v1802
  %v3477 = vmul.f32 %v3101, %v1806
  %v3478 = vmul.f32 %v3103, %v1810
  %v3479 = vmul.f32 %v2893, %v1790
  %v3480 = vmul.f32 %v2895, %v1794
  %v3481 = vmul.f32 %v2999, %v1798
  %v3482 = vmul.f32 %v3001, %v1802
  %v3483 = vmul.f32 %v3105, %v1806
  %v3484 = vmul.f32 %v3107, %v1810
  %v3485 = vmul.f32 %v2899, %v1790
  %v3486 = vmul.f32 %v2901, %v1794
  %v3487 = vmul.f32 %v3005, %v1798
  %v3488 = vmul.f32 %v3007, %v1802
  %v3489 = vmul.f32 %v3111, %v1806
  %v3490 = vmul.f32 %v3113, %v1810
  %v3491 = vmul.f32 %v2903, %v1790
  %v3492 = vmul.f32 %v2905, %v1794
  %v3493 = vmul.f32 %v3009, %v1798
  %v3494 = vmul.f32 %v3011, %v1802
  %v3495 = vmul.f32 %v3115, %v1806
  %v3496 = vmul.f32 %v3117, %v1810
  %3497 = vmatprep.subr.bf16.mxu0 %v2418
  %3498 = vmatpush1.bf16.msra.mxu0 %v2417
  %3499 = vmatprep.subr.bf16.mxu0 %v2424
  %3500 = vmatpush1.bf16.msra.mxu0 %v2423
  %3501 = vmatprep.subr.bf16.mxu0 %v2430
  %3502 = vmatpush1.bf16.msra.mxu0 %v2429
  %3503 = vmatprep.subr.bf16.mxu0 %v2436
  %3504 = vmatpush1.bf16.msra.mxu0 %v2435
  %3505 = vmatprep.subr.bf16.mxu0 %v2442
  %3506 = vmatpush1.bf16.msra.mxu0 %v2441
  %3507 = vmatprep.subr.bf16.mxu0 %v2448
  %3508 = vmatpush1.bf16.msra.mxu0 %v2447
  %3509 = vmatprep.subr.bf16.mxu0 %v2454
  %3510 = vmatpush1.bf16.msra.mxu0 %v2453
  %3511 = vmatprep.subr.bf16.mxu0 %v2460
  %3512 = vmatpush1.bf16.msra.mxu0 %v2459
  %3513 = vmatprep.subr.bf16.mxu0 %v2466
  %3514 = vmatpush1.bf16.msra.mxu0 %v2465
  %3515 = vmatprep.subr.bf16.mxu0 %v2472
  %3516 = vmatpush1.bf16.msra.mxu0 %v2471
  %3517 = vmatprep.subr.bf16.mxu0 %v2478
  %3518 = vmatpush1.bf16.msra.mxu0 %v2477
  %3519 = vmatprep.subr.bf16.mxu0 %v2484
  %3520 = vmatpush1.bf16.msra.mxu0 %v2483
  %3521 = vmatprep.subr.bf16.mxu0 %v2490
  %3522 = vmatpush1.bf16.msra.mxu0 %v2489
  %3523 = vmatprep.subr.bf16.mxu0 %v2496
  %3524 = vmatpush1.bf16.msra.mxu0 %v2495
  %3525 = vmatprep.subr.bf16.mxu0 %v2502
  %3526 = vmatpush1.bf16.msra.mxu0 %v2501
  %3527 = vmatprep.subr.bf16.mxu0 %v2508
  %3528 = vmatpush1.bf16.msra.mxu0 %v2507
  %3529 = vmatprep.mubr.bf16.mxu0 %v3466
  %3530 = vmatmul.mubr.bf16.gmra.mrb[0].mxu0 %v3465
  %v3531 = vpop.f32.mrb[0].mxu0
  %v3532 = vadd.f32 %v3473, %v3531
  %v3533 = vpop.f32.mrb[0].mxu0
  %v3534 = vadd.f32 %v3474, %v3533
  %v3535 = vpop.f32.mrb[0].mxu0
  %v3536 = vadd.f32 %v3479, %v3535
  %v3537 = vpop.f32.mrb[0].mxu0
  %v3538 = vadd.f32 %v3480, %v3537
  %3539 = vmatprep.mubr.bf16.mxu0 %v3470
  %3540 = vmatmul.mubr.bf16.gmra.mrb[0].mxu0 %v3469
  %v3541 = vpop.f32.mrb[0].mxu0
  %v3542 = vadd.f32 %v3485, %v3541
  %v3543 = vpop.f32.mrb[0].mxu0
  %v3544 = vadd.f32 %v3486, %v3543
  %v3545 = vpop.f32.mrb[0].mxu0
  %v3546 = vadd.f32 %v3491, %v3545
  %v3547 = vpop.f32.mrb[0].mxu0
  %v3548 = vadd.f32 %v3492, %v3547
  %3549 = vdwg.mxu0
  %3550 = vmatprep.subr.bf16.mxu0 %v2514
  %3551 = vmatpush1.bf16.msra.mxu0 %v2513
  %3552 = vmatprep.subr.bf16.mxu0 %v2520
  %3553 = vmatpush1.bf16.msra.mxu0 %v2519
  %3554 = vmatprep.subr.bf16.mxu0 %v2526
  %3555 = vmatpush1.bf16.msra.mxu0 %v2525
  %3556 = vmatprep.subr.bf16.mxu0 %v2532
  %3557 = vmatpush1.bf16.msra.mxu0 %v2531
  %3558 = vmatprep.subr.bf16.mxu0 %v2538
  %3559 = vmatpush1.bf16.msra.mxu0 %v2537
  %3560 = vmatprep.subr.bf16.mxu0 %v2544
  %3561 = vmatpush1.bf16.msra.mxu0 %v2543
  %3562 = vmatprep.subr.bf16.mxu0 %v2550
  %3563 = vmatpush1.bf16.msra.mxu0 %v2549
  %3564 = vmatprep.subr.bf16.mxu0 %v2556
  %3565 = vmatpush1.bf16.msra.mxu0 %v2555
  %3566 = vmatprep.subr.bf16.mxu0 %v2562
  %3567 = vmatpush1.bf16.msra.mxu0 %v2561
  %3568 = vmatprep.subr.bf16.mxu0 %v2568
  %3569 = vmatpush1.bf16.msra.mxu0 %v2567
  %3570 = vmatprep.subr.bf16.mxu0 %v2574
  %3571 = vmatpush1.bf16.msra.mxu0 %v2573
  %3572 = vmatprep.subr.bf16.mxu0 %v2580
  %3573 = vmatpush1.bf16.msra.mxu0 %v2579
  %3574 = vmatprep.subr.bf16.mxu0 %v2586
  %3575 = vmatpush1.bf16.msra.mxu0 %v2585
  %3576 = vmatprep.subr.bf16.mxu0 %v2592
  %3577 = vmatpush1.bf16.msra.mxu0 %v2591
  %3578 = vmatprep.subr.bf16.mxu0 %v2598
  %3579 = vmatpush1.bf16.msra.mxu0 %v2597
  %3580 = vmatprep.subr.bf16.mxu0 %v2604
  %3581 = vmatpush1.bf16.msra.mxu0 %v2603
  %3582 = vmatprep.mubr.bf16.mxu0 %v3468
  %3583 = vmatmul.mubr.bf16.gmra.mrb[0].mxu0 %v3467
  %v3584 = vpop.f32.mrb[0].mxu0
  %v3585 = vadd.f32 %v3532, %v3584
  %v3586 = vpop.f32.mrb[0].mxu0
  %v3587 = vadd.f32 %v3534, %v3586
  %v3588 = vpop.f32.mrb[0].mxu0
  %v3589 = vadd.f32 %v3536, %v3588
  %v3590 = vpop.f32.mrb[0].mxu0
  %v3591 = vadd.f32 %v3538, %v3590
  %3592 = vmatprep.mubr.bf16.mxu0 %v3472
  %3593 = vmatmul.mubr.bf16.gmra.mrb[0].mxu0 %v3471
  %v3594 = vpop.f32.mrb[0].mxu0
  %v3595 = vadd.f32 %v3542, %v3594
  %v3596 = vpop.f32.mrb[0].mxu0
  %v3597 = vadd.f32 %v3544, %v3596
  %v3598 = vpop.f32.mrb[0].mxu0
  %v3599 = vadd.f32 %v3546, %v3598
  %v3600 = vpop.f32.mrb[0].mxu0
  %v3601 = vadd.f32 %v3548, %v3600
  %3602 = vdwg.mxu0
  %3603 = vmatprep.subr.bf16.mxu0 %v2420
  %3604 = vmatpush1.bf16.msra.mxu0 %v2419
  %3605 = vmatprep.subr.bf16.mxu0 %v2426
  %3606 = vmatpush1.bf16.msra.mxu0 %v2425
  %3607 = vmatprep.subr.bf16.mxu0 %v2432
  %3608 = vmatpush1.bf16.msra.mxu0 %v2431
  %3609 = vmatprep.subr.bf16.mxu0 %v2438
  %3610 = vmatpush1.bf16.msra.mxu0 %v2437
  %3611 = vmatprep.subr.bf16.mxu0 %v2444
  %3612 = vmatpush1.bf16.msra.mxu0 %v2443
  %3613 = vmatprep.subr.bf16.mxu0 %v2450
  %3614 = vmatpush1.bf16.msra.mxu0 %v2449
  %3615 = vmatprep.subr.bf16.mxu0 %v2456
  %3616 = vmatpush1.bf16.msra.mxu0 %v2455
  %3617 = vmatprep.subr.bf16.mxu0 %v2462
  %3618 = vmatpush1.bf16.msra.mxu0 %v2461
  %3619 = vmatprep.subr.bf16.mxu0 %v2468
  %3620 = vmatpush1.bf16.msra.mxu0 %v2467
  %3621 = vmatprep.subr.bf16.mxu0 %v2474
  %3622 = vmatpush1.bf16.msra.mxu0 %v2473
  %3623 = vmatprep.subr.bf16.mxu0 %v2480
  %3624 = vmatpush1.bf16.msra.mxu0 %v2479
  %3625 = vmatprep.subr.bf16.mxu0 %v2486
  %3626 = vmatpush1.bf16.msra.mxu0 %v2485
  %3627 = vmatprep.subr.bf16.mxu0 %v2492
  %3628 = vmatpush1.bf16.msra.mxu0 %v2491
  %3629 = vmatprep.subr.bf16.mxu0 %v2498
  %3630 = vmatpush1.bf16.msra.mxu0 %v2497
  %3631 = vmatprep.subr.bf16.mxu0 %v2504
  %3632 = vmatpush1.bf16.msra.mxu0 %v2503
  %3633 = vmatprep.subr.bf16.mxu0 %v2510
  %3634 = vmatpush1.bf16.msra.mxu0 %v2509
  %3635 = vmatprep.mubr.bf16.mxu0 %v3466
  %3636 = vmatmul.mubr.bf16.gmra.mrb[0].mxu0 %v3465
  %v3637 = vpop.f32.mrb[0].mxu0
  %v3638 = vadd.f32 %v3475, %v3637
  %v3639 = vpop.f32.mrb[0].mxu0
  %v3640 = vadd.f32 %v3476, %v3639
  %v3641 = vpop.f32.mrb[0].mxu0
  %v3642 = vadd.f32 %v3481, %v3641
  %v3643 = vpop.f32.mrb[0].mxu0
  %v3644 = vadd.f32 %v3482, %v3643
  %3645 = vmatprep.mubr.bf16.mxu0 %v3470
  %3646 = vmatmul.mubr.bf16.gmra.mrb[0].mxu0 %v3469
  %v3647 = vpop.f32.mrb[0].mxu0
  %v3648 = vadd.f32 %v3487, %v3647
  %v3649 = vpop.f32.mrb[0].mxu0
  %v3650 = vadd.f32 %v3488, %v3649
  %v3651 = vpop.f32.mrb[0].mxu0
  %v3652 = vadd.f32 %v3493, %v3651
  %v3653 = vpop.f32.mrb[0].mxu0
  %v3654 = vadd.f32 %v3494, %v3653
  %3655 = vdwg.mxu0
  %3656 = vmatprep.subr.bf16.mxu0 %v2516
  %3657 = vmatpush1.bf16.msra.mxu0 %v2515
  %3658 = vmatprep.subr.bf16.mxu0 %v2522
  %3659 = vmatpush1.bf16.msra.mxu0 %v2521
  %3660 = vmatprep.subr.bf16.mxu0 %v2528
  %3661 = vmatpush1.bf16.msra.mxu0 %v2527
  %3662 = vmatprep.subr.bf16.mxu0 %v2534
  %3663 = vmatpush1.bf16.msra.mxu0 %v2533
  %3664 = vmatprep.subr.bf16.mxu0 %v2540
  %3665 = vmatpush1.bf16.msra.mxu0 %v2539
  %3666 = vmatprep.subr.bf16.mxu0 %v2546
  %3667 = vmatpush1.bf16.msra.mxu0 %v2545
  %3668 = vmatprep.subr.bf16.mxu0 %v2552
  %3669 = vmatpush1.bf16.msra.mxu0 %v2551
  %3670 = vmatprep.subr.bf16.mxu0 %v2558
  %3671 = vmatpush1.bf16.msra.mxu0 %v2557
  %3672 = vmatprep.subr.bf16.mxu0 %v2564
  %3673 = vmatpush1.bf16.msra.mxu0 %v2563
  %3674 = vmatprep.subr.bf16.mxu0 %v2570
  %3675 = vmatpush1.bf16.msra.mxu0 %v2569
  %3676 = vmatprep.subr.bf16.mxu0 %v2576
  %3677 = vmatpush1.bf16.msra.mxu0 %v2575
  %3678 = vmatprep.subr.bf16.mxu0 %v2582
  %3679 = vmatpush1.bf16.msra.mxu0 %v2581
  %3680 = vmatprep.subr.bf16.mxu0 %v2588
  %3681 = vmatpush1.bf16.msra.mxu0 %v2587
  %3682 = vmatprep.subr.bf16.mxu0 %v2594
  %3683 = vmatpush1.bf16.msra.mxu0 %v2593
  %3684 = vmatprep.subr.bf16.mxu0 %v2600
  %3685 = vmatpush1.bf16.msra.mxu0 %v2599
  %3686 = vmatprep.subr.bf16.mxu0 %v2606
  %3687 = vmatpush1.bf16.msra.mxu0 %v2605
  %3688 = vmatprep.mubr.bf16.mxu0 %v3468
  %3689 = vmatmul.mubr.bf16.gmra.mrb[0].mxu0 %v3467
  %v3690 = vpop.f32.mrb[0].mxu0
  %v3691 = vadd.f32 %v3638, %v3690
  %v3692 = vpop.f32.mrb[0].mxu0
  %v3693 = vadd.f32 %v3640, %v3692
  %v3694 = vpop.f32.mrb[0].mxu0
  %v3695 = vadd.f32 %v3642, %v3694
  %v3696 = vpop.f32.mrb[0].mxu0
  %v3697 = vadd.f32 %v3644, %v3696
  %3698 = vmatprep.mubr.bf16.mxu0 %v3472
  %3699 = vmatmul.mubr.bf16.gmra.mrb[0].mxu0 %v3471
  %v3700 = vpop.f32.mrb[0].mxu0
  %v3701 = vadd.f32 %v3648, %v3700
  %v3702 = vpop.f32.mrb[0].mxu0
  %v3703 = vadd.f32 %v3650, %v3702
  %v3704 = vpop.f32.mrb[0].mxu0
  %v3705 = vadd.f32 %v3652, %v3704
  %v3706 = vpop.f32.mrb[0].mxu0
  %v3707 = vadd.f32 %v3654, %v3706
  %3708 = vdwg.mxu0
  %3709 = vmatprep.subr.bf16.mxu0 %v2422
  %3710 = vmatpush1.bf16.msra.mxu0 %v2421
  %3711 = vmatprep.subr.bf16.mxu0 %v2428
  %3712 = vmatpush1.bf16.msra.mxu0 %v2427
  %3713 = vmatprep.subr.bf16.mxu0 %v2434
  %3714 = vmatpush1.bf16.msra.mxu0 %v2433
  %3715 = vmatprep.subr.bf16.mxu0 %v2440
  %3716 = vmatpush1.bf16.msra.mxu0 %v2439
  %3717 = vmatprep.subr.bf16.mxu0 %v2446
  %3718 = vmatpush1.bf16.msra.mxu0 %v2445
  %3719 = vmatprep.subr.bf16.mxu0 %v2452
  %3720 = vmatpush1.bf16.msra.mxu0 %v2451
  %3721 = vmatprep.subr.bf16.mxu0 %v2458
  %3722 = vmatpush1.bf16.msra.mxu0 %v2457
  %3723 = vmatprep.subr.bf16.mxu0 %v2464
  %3724 = vmatpush1.bf16.msra.mxu0 %v2463
  %3725 = vmatprep.subr.bf16.mxu0 %v2470
  %3726 = vmatpush1.bf16.msra.mxu0 %v2469
  %3727 = vmatprep.subr.bf16.mxu0 %v2476
  %3728 = vmatpush1.bf16.msra.mxu0 %v2475
  %3729 = vmatprep.subr.bf16.mxu0 %v2482
  %3730 = vmatpush1.bf16.msra.mxu0 %v2481
  %3731 = vmatprep.subr.bf16.mxu0 %v2488
  %3732 = vmatpush1.bf16.msra.mxu0 %v2487
  %3733 = vmatprep.subr.bf16.mxu0 %v2494
  %3734 = vmatpush1.bf16.msra.mxu0 %v2493
  %3735 = vmatprep.subr.bf16.mxu0 %v2500
  %3736 = vmatpush1.bf16.msra.mxu0 %v2499
  %3737 = vmatprep.subr.bf16.mxu0 %v2506
  %3738 = vmatpush1.bf16.msra.mxu0 %v2505
  %3739 = vmatprep.subr.bf16.mxu0 %v2512
  %3740 = vmatpush1.bf16.msra.mxu0 %v2511
  %3741 = vmatprep.mubr.bf16.mxu0 %v3466
  %3742 = vmatmul.mubr.bf16.gmra.mrb[0].mxu0 %v3465
  %v3743 = vpop.f32.mrb[0].mxu0
  %v3744 = vadd.f32 %v3477, %v3743
  %v3745 = vpop.f32.mrb[0].mxu0
  %v3746 = vadd.f32 %v3478, %v3745
  %v3747 = vpop.f32.mrb[0].mxu0
  %v3748 = vadd.f32 %v3483, %v3747
  %v3749 = vpop.f32.mrb[0].mxu0
  %v3750 = vadd.f32 %v3484, %v3749
  %3751 = vmatprep.mubr.bf16.mxu0 %v3470
  %3752 = vmatmul.mubr.bf16.gmra.mrb[0].mxu0 %v3469
  %v3753 = vpop.f32.mrb[0].mxu0
  %v3754 = vadd.f32 %v3489, %v3753
  %v3755 = vpop.f32.mrb[0].mxu0
  %v3756 = vadd.f32 %v3490, %v3755
  %v3757 = vpop.f32.mrb[0].mxu0
  %v3758 = vadd.f32 %v3495, %v3757
  %v3759 = vpop.f32.mrb[0].mxu0
  %v3760 = vadd.f32 %v3496, %v3759
  %3761 = vdwg.mxu0
  %3762 = vmatprep.subr.bf16.mxu0 %v2518
  %3763 = vmatpush1.bf16.msra.mxu0 %v2517
  %3764 = vmatprep.subr.bf16.mxu0 %v2524
  %3765 = vmatpush1.bf16.msra.mxu0 %v2523
  %3766 = vmatprep.subr.bf16.mxu0 %v2530
  %3767 = vmatpush1.bf16.msra.mxu0 %v2529
  %3768 = vmatprep.subr.bf16.mxu0 %v2536
  %3769 = vmatpush1.bf16.msra.mxu0 %v2535
  %3770 = vmatprep.subr.bf16.mxu0 %v2542
  %3771 = vmatpush1.bf16.msra.mxu0 %v2541
  %3772 = vmatprep.subr.bf16.mxu0 %v2548
  %3773 = vmatpush1.bf16.msra.mxu0 %v2547
  %3774 = vmatprep.subr.bf16.mxu0 %v2554
  %3775 = vmatpush1.bf16.msra.mxu0 %v2553
  %3776 = vmatprep.subr.bf16.mxu0 %v2560
  %3777 = vmatpush1.bf16.msra.mxu0 %v2559
  %3778 = vmatprep.subr.bf16.mxu0 %v2566
  %3779 = vmatpush1.bf16.msra.mxu0 %v2565
  %3780 = vmatprep.subr.bf16.mxu0 %v2572
  %3781 = vmatpush1.bf16.msra.mxu0 %v2571
  %3782 = vmatprep.subr.bf16.mxu0 %v2578
  %3783 = vmatpush1.bf16.msra.mxu0 %v2577
  %3784 = vmatprep.subr.bf16.mxu0 %v2584
  %3785 = vmatpush1.bf16.msra.mxu0 %v2583
  %3786 = vmatprep.subr.bf16.mxu0 %v2590
  %3787 = vmatpush1.bf16.msra.mxu0 %v2589
  %3788 = vmatprep.subr.bf16.mxu0 %v2596
  %3789 = vmatpush1.bf16.msra.mxu0 %v2595
  %3790 = vmatprep.subr.bf16.mxu0 %v2602
  %3791 = vmatpush1.bf16.msra.mxu0 %v2601
  %3792 = vmatprep.subr.bf16.mxu0 %v2608
  %3793 = vmatpush1.bf16.msra.mxu0 %v2607
  %3794 = vmatprep.mubr.bf16.mxu0 %v3468
  %3795 = vmatmul.mubr.bf16.gmra.mrb[0].mxu0 %v3467
  %v3796 = vpop.f32.mrb[0].mxu0
  %v3797 = vadd.f32 %v3744, %v3796
  %v3798 = vpop.f32.mrb[0].mxu0
  %v3799 = vadd.f32 %v3746, %v3798
  %v3800 = vpop.f32.mrb[0].mxu0
  %v3801 = vadd.f32 %v3748, %v3800
  %v3802 = vpop.f32.mrb[0].mxu0
  %v3803 = vadd.f32 %v3750, %v3802
  %3804 = vmatprep.mubr.bf16.mxu0 %v3472
  %3805 = vmatmul.mubr.bf16.gmra.mrb[0].mxu0 %v3471
  %v3806 = vpop.f32.mrb[0].mxu0
  %v3807 = vadd.f32 %v3754, %v3806
  %v3808 = vpop.f32.mrb[0].mxu0
  %v3809 = vadd.f32 %v3756, %v3808
  %v3810 = vpop.f32.mrb[0].mxu0
  %v3811 = vadd.f32 %v3758, %v3810
  %v3812 = vpop.f32.mrb[0].mxu0
  %v3813 = vadd.f32 %v3760, %v3812
  %3814 = vdwg.mxu0
  %v3815 = vpack.c.bf16 %v3589, %v3585
  %v3816 = vpack.c.bf16 %v3591, %v3587
  %v3817 = vpack.c.bf16 %v3695, %v3691
  %v3818 = vpack.c.bf16 %v3697, %v3693
  %v3819 = vpack.c.bf16 %v3801, %v3797
  %v3820 = vpack.c.bf16 %v3803, %v3799
  %v3821 = vpack.c.bf16 %v3599, %v3595
  %v3822 = vpack.c.bf16 %v3601, %v3597
  %v3823 = vpack.c.bf16 %v3705, %v3701
  %v3824 = vpack.c.bf16 %v3707, %v3703
  %v3825 = vpack.c.bf16 %v3811, %v3807
  %v3826 = vpack.c.bf16 %v3813, %v3809
  %v3827 = vmul.f32 %v3288, %v467
  %v3828 = vmul.f32 %v3290, %v471
  %v3829 = vmul.f32 %v3447, %v475
  %v3830 = vmul.f32 %v3449, %v479
  %v3831 = vmul.f32 %v3292, %v467
  %v3832 = vmul.f32 %v3294, %v471
  %v3833 = vmul.f32 %v3451, %v475
  %v3834 = vmul.f32 %v3453, %v479
  %v3835 = vmul.f32 %v3298, %v467
  %v3836 = vmul.f32 %v3300, %v471
  %v3837 = vmul.f32 %v3457, %v475
  %v3838 = vmul.f32 %v3459, %v479
  %v3839 = vmul.f32 %v3302, %v467
  %v3840 = vmul.f32 %v3304, %v471
  %v3841 = vmul.f32 %v3461, %v475
  %v3842 = vmul.f32 %v3463, %v479
  %3843 = vmatprep.subr.bf16.mxu0 %v1077
  %3844 = vmatpush1.bf16.msra.mxu0 %v1076
  %3845 = vmatprep.subr.bf16.mxu0 %v1081
  %3846 = vmatpush1.bf16.msra.mxu0 %v1080
  %3847 = vmatprep.subr.bf16.mxu0 %v1085
  %3848 = vmatpush1.bf16.msra.mxu0 %v1084
  %3849 = vmatprep.subr.bf16.mxu0 %v1089
  %3850 = vmatpush1.bf16.msra.mxu0 %v1088
  %3851 = vmatprep.subr.bf16.mxu0 %v1093
  %3852 = vmatpush1.bf16.msra.mxu0 %v1092
  %3853 = vmatprep.subr.bf16.mxu0 %v1097
  %3854 = vmatpush1.bf16.msra.mxu0 %v1096
  %3855 = vmatprep.subr.bf16.mxu0 %v1101
  %3856 = vmatpush1.bf16.msra.mxu0 %v1100
  %3857 = vmatprep.subr.bf16.mxu0 %v1105
  %3858 = vmatpush1.bf16.msra.mxu0 %v1104
  %3859 = vmatprep.subr.bf16.mxu0 %v1109
  %3860 = vmatpush1.bf16.msra.mxu0 %v1108
  %3861 = vmatprep.subr.bf16.mxu0 %v1113
  %3862 = vmatpush1.bf16.msra.mxu0 %v1112
  %3863 = vmatprep.subr.bf16.mxu0 %v1117
  %3864 = vmatpush1.bf16.msra.mxu0 %v1116
  %3865 = vmatprep.subr.bf16.mxu0 %v1121
  %3866 = vmatpush1.bf16.msra.mxu0 %v1120
  %3867 = vmatprep.subr.bf16.mxu0 %v1125
  %3868 = vmatpush1.bf16.msra.mxu0 %v1124
  %3869 = vmatprep.subr.bf16.mxu0 %v1129
  %3870 = vmatpush1.bf16.msra.mxu0 %v1128
  %3871 = vmatprep.subr.bf16.mxu0 %v1133
  %3872 = vmatpush1.bf16.msra.mxu0 %v1132
  %3873 = vmatprep.subr.bf16.mxu0 %v1137
  %3874 = vmatpush1.bf16.msra.mxu0 %v1136
  %3875 = vmatprep.mubr.bf16.mxu0 %v3816
  %3876 = vmatmul.mubr.bf16.gmra.mrb[0].mxu0 %v3815
  %v3877 = vpop.f32.mrb[0].mxu0
  %v3878 = vadd.f32 %v3827, %v3877
  %v3879 = vpop.f32.mrb[0].mxu0
  %v3880 = vadd.f32 %v3828, %v3879
  %v3881 = vpop.f32.mrb[0].mxu0
  %v3882 = vadd.f32 %v3831, %v3881
  %v3883 = vpop.f32.mrb[0].mxu0
  %v3884 = vadd.f32 %v3832, %v3883
  %3885 = vmatprep.mubr.bf16.mxu0 %v3822
  %3886 = vmatmul.mubr.bf16.gmra.mrb[0].mxu0 %v3821
  %v3887 = vpop.f32.mrb[0].mxu0
  %v3888 = vadd.f32 %v3835, %v3887
  %v3889 = vpop.f32.mrb[0].mxu0
  %v3890 = vadd.f32 %v3836, %v3889
  %v3891 = vpop.f32.mrb[0].mxu0
  %v3892 = vadd.f32 %v3839, %v3891
  %v3893 = vpop.f32.mrb[0].mxu0
  %v3894 = vadd.f32 %v3840, %v3893
  %3895 = vdwg.mxu0
  %3896 = vmatprep.subr.bf16.mxu0 %v1141
  %3897 = vmatpush1.bf16.msra.mxu0 %v1140
  %3898 = vmatprep.subr.bf16.mxu0 %v1145
  %3899 = vmatpush1.bf16.msra.mxu0 %v1144
  %3900 = vmatprep.subr.bf16.mxu0 %v1149
  %3901 = vmatpush1.bf16.msra.mxu0 %v1148
  %3902 = vmatprep.subr.bf16.mxu0 %v1153
  %3903 = vmatpush1.bf16.msra.mxu0 %v1152
  %3904 = vmatprep.subr.bf16.mxu0 %v1157
  %3905 = vmatpush1.bf16.msra.mxu0 %v1156
  %3906 = vmatprep.subr.bf16.mxu0 %v1161
  %3907 = vmatpush1.bf16.msra.mxu0 %v1160
  %3908 = vmatprep.subr.bf16.mxu0 %v1165
  %3909 = vmatpush1.bf16.msra.mxu0 %v1164
  %3910 = vmatprep.subr.bf16.mxu0 %v1169
  %3911 = vmatpush1.bf16.msra.mxu0 %v1168
  %3912 = vmatprep.subr.bf16.mxu0 %v1173
  %3913 = vmatpush1.bf16.msra.mxu0 %v1172
  %3914 = vmatprep.subr.bf16.mxu0 %v1177
  %3915 = vmatpush1.bf16.msra.mxu0 %v1176
  %3916 = vmatprep.subr.bf16.mxu0 %v1181
  %3917 = vmatpush1.bf16.msra.mxu0 %v1180
  %3918 = vmatprep.subr.bf16.mxu0 %v1185
  %3919 = vmatpush1.bf16.msra.mxu0 %v1184
  %3920 = vmatprep.subr.bf16.mxu0 %v1189
  %3921 = vmatpush1.bf16.msra.mxu0 %v1188
  %3922 = vmatprep.subr.bf16.mxu0 %v1193
  %3923 = vmatpush1.bf16.msra.mxu0 %v1192
  %3924 = vmatprep.subr.bf16.mxu0 %v1197
  %3925 = vmatpush1.bf16.msra.mxu0 %v1196
  %3926 = vmatprep.subr.bf16.mxu0 %v1201
  %3927 = vmatpush1.bf16.msra.mxu0 %v1200
  %3928 = vmatprep.mubr.bf16.mxu0 %v3818
  %3929 = vmatmul.mubr.bf16.gmra.mrb[0].mxu0 %v3817
  %v3930 = vpop.f32.mrb[0].mxu0
  %v3931 = vadd.f32 %v3878, %v3930
  %v3932 = vpop.f32.mrb[0].mxu0
  %v3933 = vadd.f32 %v3880, %v3932
  %v3934 = vpop.f32.mrb[0].mxu0
  %v3935 = vadd.f32 %v3882, %v3934
  %v3936 = vpop.f32.mrb[0].mxu0
  %v3937 = vadd.f32 %v3884, %v3936
  %3938 = vmatprep.mubr.bf16.mxu0 %v3824
  %3939 = vmatmul.mubr.bf16.gmra.mrb[0].mxu0 %v3823
  %v3940 = vpop.f32.mrb[0].mxu0
  %v3941 = vadd.f32 %v3888, %v3940
  %v3942 = vpop.f32.mrb[0].mxu0
  %v3943 = vadd.f32 %v3890, %v3942
  %v3944 = vpop.f32.mrb[0].mxu0
  %v3945 = vadd.f32 %v3892, %v3944
  %v3946 = vpop.f32.mrb[0].mxu0
  %v3947 = vadd.f32 %v3894, %v3946
  %3948 = vdwg.mxu0
  %3949 = vmatprep.subr.bf16.mxu0 %v1205
  %3950 = vmatpush1.bf16.msra.mxu0 %v1204
  %3951 = vmatprep.subr.bf16.mxu0 %v1209
  %3952 = vmatpush1.bf16.msra.mxu0 %v1208
  %3953 = vmatprep.subr.bf16.mxu0 %v1213
  %3954 = vmatpush1.bf16.msra.mxu0 %v1212
  %3955 = vmatprep.subr.bf16.mxu0 %v1217
  %3956 = vmatpush1.bf16.msra.mxu0 %v1216
  %3957 = vmatprep.subr.bf16.mxu0 %v1221
  %3958 = vmatpush1.bf16.msra.mxu0 %v1220
  %3959 = vmatprep.subr.bf16.mxu0 %v1225
  %3960 = vmatpush1.bf16.msra.mxu0 %v1224
  %3961 = vmatprep.subr.bf16.mxu0 %v1229
  %3962 = vmatpush1.bf16.msra.mxu0 %v1228
  %3963 = vmatprep.subr.bf16.mxu0 %v1233
  %3964 = vmatpush1.bf16.msra.mxu0 %v1232
  %3965 = vmatprep.subr.bf16.mxu0 %v1237
  %3966 = vmatpush1.bf16.msra.mxu0 %v1236
  %3967 = vmatprep.subr.bf16.mxu0 %v1241
  %3968 = vmatpush1.bf16.msra.mxu0 %v1240
  %3969 = vmatprep.subr.bf16.mxu0 %v1245
  %3970 = vmatpush1.bf16.msra.mxu0 %v1244
  %3971 = vmatprep.subr.bf16.mxu0 %v1249
  %3972 = vmatpush1.bf16.msra.mxu0 %v1248
  %3973 = vmatprep.subr.bf16.mxu0 %v1253
  %3974 = vmatpush1.bf16.msra.mxu0 %v1252
  %3975 = vmatprep.subr.bf16.mxu0 %v1257
  %3976 = vmatpush1.bf16.msra.mxu0 %v1256
  %3977 = vmatprep.subr.bf16.mxu0 %v1261
  %3978 = vmatpush1.bf16.msra.mxu0 %v1260
  %3979 = vmatprep.subr.bf16.mxu0 %v1265
  %3980 = vmatpush1.bf16.msra.mxu0 %v1264
  %3981 = vmatprep.mubr.bf16.mxu0 %v3820
  %3982 = vmatmul.mubr.bf16.gmra.mrb[0].mxu0 %v3819
  %v3983 = vpop.f32.mrb[0].mxu0
  %v3984 = vadd.f32 %v3931, %v3983
  %v3985 = vpop.f32.mrb[0].mxu0
  %v3986 = vadd.f32 %v3933, %v3985
  %v3987 = vpop.f32.mrb[0].mxu0
  %v3988 = vadd.f32 %v3935, %v3987
  %v3989 = vpop.f32.mrb[0].mxu0
  %v3990 = vadd.f32 %v3937, %v3989
  %3991 = vmatprep.mubr.bf16.mxu0 %v3826
  %3992 = vmatmul.mubr.bf16.gmra.mrb[0].mxu0 %v3825
  %v3993 = vpop.f32.mrb[0].mxu0
  %v3994 = vadd.f32 %v3941, %v3993
  %v3995 = vpop.f32.mrb[0].mxu0
  %v3996 = vadd.f32 %v3943, %v3995
  %v3997 = vpop.f32.mrb[0].mxu0
  %v3998 = vadd.f32 %v3945, %v3997
  %v3999 = vpop.f32.mrb[0].mxu0
  %v4000 = vadd.f32 %v3947, %v3999
  %4001 = vdwg.mxu0
  %4002 = vmatprep.subr.bf16.mxu0 %v1079
  %4003 = vmatpush1.bf16.msra.mxu0 %v1078
  %4004 = vmatprep.subr.bf16.mxu0 %v1083
  %4005 = vmatpush1.bf16.msra.mxu0 %v1082
  %4006 = vmatprep.subr.bf16.mxu0 %v1087
  %4007 = vmatpush1.bf16.msra.mxu0 %v1086
  %4008 = vmatprep.subr.bf16.mxu0 %v1091
  %4009 = vmatpush1.bf16.msra.mxu0 %v1090
  %4010 = vmatprep.subr.bf16.mxu0 %v1095
  %4011 = vmatpush1.bf16.msra.mxu0 %v1094
  %4012 = vmatprep.subr.bf16.mxu0 %v1099
  %4013 = vmatpush1.bf16.msra.mxu0 %v1098
  %4014 = vmatprep.subr.bf16.mxu0 %v1103
  %4015 = vmatpush1.bf16.msra.mxu0 %v1102
  %4016 = vmatprep.subr.bf16.mxu0 %v1107
  %4017 = vmatpush1.bf16.msra.mxu0 %v1106
  %4018 = vmatprep.subr.bf16.mxu0 %v1111
  %4019 = vmatpush1.bf16.msra.mxu0 %v1110
  %4020 = vmatprep.subr.bf16.mxu0 %v1115
  %4021 = vmatpush1.bf16.msra.mxu0 %v1114
  %4022 = vmatprep.subr.bf16.mxu0 %v1119
  %4023 = vmatpush1.bf16.msra.mxu0 %v1118
  %4024 = vmatprep.subr.bf16.mxu0 %v1123
  %4025 = vmatpush1.bf16.msra.mxu0 %v1122
  %4026 = vmatprep.subr.bf16.mxu0 %v1127
  %4027 = vmatpush1.bf16.msra.mxu0 %v1126
  %4028 = vmatprep.subr.bf16.mxu0 %v1131
  %4029 = vmatpush1.bf16.msra.mxu0 %v1130
  %4030 = vmatprep.subr.bf16.mxu0 %v1135
  %4031 = vmatpush1.bf16.msra.mxu0 %v1134
  %4032 = vmatprep.subr.bf16.mxu0 %v1139
  %4033 = vmatpush1.bf16.msra.mxu0 %v1138
  %4034 = vmatprep.mubr.bf16.mxu0 %v3816
  %4035 = vmatmul.mubr.bf16.gmra.mrb[0].mxu0 %v3815
  %v4036 = vpop.f32.mrb[0].mxu0
  %v4037 = vadd.f32 %v3829, %v4036
  %v4038 = vpop.f32.mrb[0].mxu0
  %v4039 = vadd.f32 %v3830, %v4038
  %v4040 = vpop.f32.mrb[0].mxu0
  %v4041 = vadd.f32 %v3833, %v4040
  %v4042 = vpop.f32.mrb[0].mxu0
  %v4043 = vadd.f32 %v3834, %v4042
  %4044 = vmatprep.mubr.bf16.mxu0 %v3822
  %4045 = vmatmul.mubr.bf16.gmra.mrb[0].mxu0 %v3821
  %v4046 = vpop.f32.mrb[0].mxu0
  %v4047 = vadd.f32 %v3837, %v4046
  %v4048 = vpop.f32.mrb[0].mxu0
  %v4049 = vadd.f32 %v3838, %v4048
  %v4050 = vpop.f32.mrb[0].mxu0
  %v4051 = vadd.f32 %v3841, %v4050
  %v4052 = vpop.f32.mrb[0].mxu0
  %v4053 = vadd.f32 %v3842, %v4052
  %4054 = vdwg.mxu0
  %4055 = vmatprep.subr.bf16.mxu0 %v1143
  %4056 = vmatpush1.bf16.msra.mxu0 %v1142
  %4057 = vmatprep.subr.bf16.mxu0 %v1147
  %4058 = vmatpush1.bf16.msra.mxu0 %v1146
  %4059 = vmatprep.subr.bf16.mxu0 %v1151
  %4060 = vmatpush1.bf16.msra.mxu0 %v1150
  %4061 = vmatprep.subr.bf16.mxu0 %v1155
  %4062 = vmatpush1.bf16.msra.mxu0 %v1154
  %4063 = vmatprep.subr.bf16.mxu0 %v1159
  %4064 = vmatpush1.bf16.msra.mxu0 %v1158
  %4065 = vmatprep.subr.bf16.mxu0 %v1163
  %4066 = vmatpush1.bf16.msra.mxu0 %v1162
  %4067 = vmatprep.subr.bf16.mxu0 %v1167
  %4068 = vmatpush1.bf16.msra.mxu0 %v1166
  %4069 = vmatprep.subr.bf16.mxu0 %v1171
  %4070 = vmatpush1.bf16.msra.mxu0 %v1170
  %4071 = vmatprep.subr.bf16.mxu0 %v1175
  %4072 = vmatpush1.bf16.msra.mxu0 %v1174
  %4073 = vmatprep.subr.bf16.mxu0 %v1179
  %4074 = vmatpush1.bf16.msra.mxu0 %v1178
  %4075 = vmatprep.subr.bf16.mxu0 %v1183
  %4076 = vmatpush1.bf16.msra.mxu0 %v1182
  %4077 = vmatprep.subr.bf16.mxu0 %v1187
  %4078 = vmatpush1.bf16.msra.mxu0 %v1186
  %4079 = vmatprep.subr.bf16.mxu0 %v1191
  %4080 = vmatpush1.bf16.msra.mxu0 %v1190
  %4081 = vmatprep.subr.bf16.mxu0 %v1195
  %4082 = vmatpush1.bf16.msra.mxu0 %v1194
  %4083 = vmatprep.subr.bf16.mxu0 %v1199
  %4084 = vmatpush1.bf16.msra.mxu0 %v1198
  %4085 = vmatprep.subr.bf16.mxu0 %v1203
  %4086 = vmatpush1.bf16.msra.mxu0 %v1202
  %4087 = vmatprep.mubr.bf16.mxu0 %v3818
  %4088 = vmatmul.mubr.bf16.gmra.mrb[0].mxu0 %v3817
  %v4089 = vpop.f32.mrb[0].mxu0
  %v4090 = vadd.f32 %v4037, %v4089
  %v4091 = vpop.f32.mrb[0].mxu0
  %v4092 = vadd.f32 %v4039, %v4091
  %v4093 = vpop.f32.mrb[0].mxu0
  %v4094 = vadd.f32 %v4041, %v4093
  %v4095 = vpop.f32.mrb[0].mxu0
  %v4096 = vadd.f32 %v4043, %v4095
  %4097 = vmatprep.mubr.bf16.mxu0 %v3824
  %4098 = vmatmul.mubr.bf16.gmra.mrb[0].mxu0 %v3823
  %v4099 = vpop.f32.mrb[0].mxu0
  %v4100 = vadd.f32 %v4047, %v4099
  %v4101 = vpop.f32.mrb[0].mxu0
  %v4102 = vadd.f32 %v4049, %v4101
  %v4103 = vpop.f32.mrb[0].mxu0
  %v4104 = vadd.f32 %v4051, %v4103
  %v4105 = vpop.f32.mrb[0].mxu0
  %v4106 = vadd.f32 %v4053, %v4105
  %4107 = vdwg.mxu0
  %4108 = vmatprep.subr.bf16.mxu0 %v1207
  %4109 = vmatpush1.bf16.msra.mxu0 %v1206
  %4110 = vmatprep.subr.bf16.mxu0 %v1211
  %4111 = vmatpush1.bf16.msra.mxu0 %v1210
  %4112 = vmatprep.subr.bf16.mxu0 %v1215
  %4113 = vmatpush1.bf16.msra.mxu0 %v1214
  %4114 = vmatprep.subr.bf16.mxu0 %v1219
  %4115 = vmatpush1.bf16.msra.mxu0 %v1218
  %4116 = vmatprep.subr.bf16.mxu0 %v1223
  %4117 = vmatpush1.bf16.msra.mxu0 %v1222
  %4118 = vmatprep.subr.bf16.mxu0 %v1227
  %4119 = vmatpush1.bf16.msra.mxu0 %v1226
  %4120 = vmatprep.subr.bf16.mxu0 %v1231
  %4121 = vmatpush1.bf16.msra.mxu0 %v1230
  %4122 = vmatprep.subr.bf16.mxu0 %v1235
  %4123 = vmatpush1.bf16.msra.mxu0 %v1234
  %4124 = vmatprep.subr.bf16.mxu0 %v1239
  %4125 = vmatpush1.bf16.msra.mxu0 %v1238
  %4126 = vmatprep.subr.bf16.mxu0 %v1243
  %4127 = vmatpush1.bf16.msra.mxu0 %v1242
  %4128 = vmatprep.subr.bf16.mxu0 %v1247
  %4129 = vmatpush1.bf16.msra.mxu0 %v1246
  %4130 = vmatprep.subr.bf16.mxu0 %v1251
  %4131 = vmatpush1.bf16.msra.mxu0 %v1250
  %4132 = vmatprep.subr.bf16.mxu0 %v1255
  %4133 = vmatpush1.bf16.msra.mxu0 %v1254
  %4134 = vmatprep.subr.bf16.mxu0 %v1259
  %4135 = vmatpush1.bf16.msra.mxu0 %v1258
  %4136 = vmatprep.subr.bf16.mxu0 %v1263
  %4137 = vmatpush1.bf16.msra.mxu0 %v1262
  %4138 = vmatprep.subr.bf16.mxu0 %v1267
  %4139 = vmatpush1.bf16.msra.mxu0 %v1266
  %4140 = vmatprep.mubr.bf16.mxu0 %v3820
  %4141 = vmatmul.mubr.bf16.gmra.mrb[0].mxu0 %v3819
  %v4142 = vpop.f32.mrb[0].mxu0
  %v4143 = vadd.f32 %v4090, %v4142
  %v4144 = vpop.f32.mrb[0].mxu0
  %v4145 = vadd.f32 %v4092, %v4144
  %v4146 = vpop.f32.mrb[0].mxu0
  %v4147 = vadd.f32 %v4094, %v4146
  %v4148 = vpop.f32.mrb[0].mxu0
  %v4149 = vadd.f32 %v4096, %v4148
  %4150 = vmatprep.mubr.bf16.mxu0 %v3826
  %4151 = vmatmul.mubr.bf16.gmra.mrb[0].mxu0 %v3825
  %v4152 = vpop.f32.mrb[0].mxu0
  %v4153 = vadd.f32 %v4100, %v4152
  %v4154 = vpop.f32.mrb[0].mxu0
  %v4155 = vadd.f32 %v4102, %v4154
  %v4156 = vpop.f32.mrb[0].mxu0
  %v4157 = vadd.f32 %v4104, %v4156
  %v4158 = vpop.f32.mrb[0].mxu0
  %v4159 = vadd.f32 %v4106, %v4158
  %4160 = vdwg.mxu0
  %v4161 = vpack.c.bf16 %v3292, %v3288
  %v4162 = vpack.c.bf16 %v3294, %v3290
  %v4163 = vpack.c.bf16 %v3451, %v3447
  %v4164 = vpack.c.bf16 %v3453, %v3449
  %v4165 = vpack.c.bf16 %v3302, %v3298
  %v4166 = vpack.c.bf16 %v3304, %v3300
  %v4167 = vpack.c.bf16 %v3461, %v3457
  %v4168 = vpack.c.bf16 %v3463, %v3459
  %v4169 = vmul.f32 %v3585, %v1790
  %v4170 = vmul.f32 %v3587, %v1794
  %v4171 = vmul.f32 %v3691, %v1798
  %v4172 = vmul.f32 %v3693, %v1802
  %v4173 = vmul.f32 %v3797, %v1806
  %v4174 = vmul.f32 %v3799, %v1810
  %v4175 = vmul.f32 %v3589, %v1790
  %v4176 = vmul.f32 %v3591, %v1794
  %v4177 = vmul.f32 %v3695, %v1798
  %v4178 = vmul.f32 %v3697, %v1802
  %v4179 = vmul.f32 %v3801, %v1806
  %v4180 = vmul.f32 %v3803, %v1810
  %v4181 = vmul.f32 %v3595, %v1790
  %v4182 = vmul.f32 %v3597, %v1794
  %v4183 = vmul.f32 %v3701, %v1798
  %v4184 = vmul.f32 %v3703, %v1802
  %v4185 = vmul.f32 %v3807, %v1806
  %v4186 = vmul.f32 %v3809, %v1810
  %v4187 = vmul.f32 %v3599, %v1790
  %v4188 = vmul.f32 %v3601, %v1794
  %v4189 = vmul.f32 %v3705, %v1798
  %v4190 = vmul.f32 %v3707, %v1802
  %v4191 = vmul.f32 %v3811, %v1806
  %v4192 = vmul.f32 %v3813, %v1810
  %4193 = vmatprep.subr.bf16.mxu0 %v2418
  %4194 = vmatpush1.bf16.msra.mxu0 %v2417
  %4195 = vmatprep.subr.bf16.mxu0 %v2424
  %4196 = vmatpush1.bf16.msra.mxu0 %v2423
  %4197 = vmatprep.subr.bf16.mxu0 %v2430
  %4198 = vmatpush1.bf16.msra.mxu0 %v2429
  %4199 = vmatprep.subr.bf16.mxu0 %v2436
  %4200 = vmatpush1.bf16.msra.mxu0 %v2435
  %4201 = vmatprep.subr.bf16.mxu0 %v2442
  %4202 = vmatpush1.bf16.msra.mxu0 %v2441
  %4203 = vmatprep.subr.bf16.mxu0 %v2448
  %4204 = vmatpush1.bf16.msra.mxu0 %v2447
  %4205 = vmatprep.subr.bf16.mxu0 %v2454
  %4206 = vmatpush1.bf16.msra.mxu0 %v2453
  %4207 = vmatprep.subr.bf16.mxu0 %v2460
  %4208 = vmatpush1.bf16.msra.mxu0 %v2459
  %4209 = vmatprep.subr.bf16.mxu0 %v2466
  %4210 = vmatpush1.bf16.msra.mxu0 %v2465
  %4211 = vmatprep.subr.bf16.mxu0 %v2472
  %4212 = vmatpush1.bf16.msra.mxu0 %v2471
  %4213 = vmatprep.subr.bf16.mxu0 %v2478
  %4214 = vmatpush1.bf16.msra.mxu0 %v2477
  %4215 = vmatprep.subr.bf16.mxu0 %v2484
  %4216 = vmatpush1.bf16.msra.mxu0 %v2483
  %4217 = vmatprep.subr.bf16.mxu0 %v2490
  %4218 = vmatpush1.bf16.msra.mxu0 %v2489
  %4219 = vmatprep.subr.bf16.mxu0 %v2496
  %4220 = vmatpush1.bf16.msra.mxu0 %v2495
  %4221 = vmatprep.subr.bf16.mxu0 %v2502
  %4222 = vmatpush1.bf16.msra.mxu0 %v2501
  %4223 = vmatprep.subr.bf16.mxu0 %v2508
  %4224 = vmatpush1.bf16.msra.mxu0 %v2507
  %4225 = vmatprep.mubr.bf16.mxu0 %v4162
  %4226 = vmatmul.mubr.bf16.gmra.mrb[0].mxu0 %v4161
  %v4227 = vpop.f32.mrb[0].mxu0
  %v4228 = vadd.f32 %v4169, %v4227
  %v4229 = vpop.f32.mrb[0].mxu0
  %v4230 = vadd.f32 %v4170, %v4229
  %v4231 = vpop.f32.mrb[0].mxu0
  %v4232 = vadd.f32 %v4175, %v4231
  %v4233 = vpop.f32.mrb[0].mxu0
  %v4234 = vadd.f32 %v4176, %v4233
  %4235 = vmatprep.mubr.bf16.mxu0 %v4166
  %4236 = vmatmul.mubr.bf16.gmra.mrb[0].mxu0 %v4165
  %v4237 = vpop.f32.mrb[0].mxu0
  %v4238 = vadd.f32 %v4181, %v4237
  %v4239 = vpop.f32.mrb[0].mxu0
  %v4240 = vadd.f32 %v4182, %v4239
  %v4241 = vpop.f32.mrb[0].mxu0
  %v4242 = vadd.f32 %v4187, %v4241
  %v4243 = vpop.f32.mrb[0].mxu0
  %v4244 = vadd.f32 %v4188, %v4243
  %4245 = vdwg.mxu0
  %4246 = vmatprep.subr.bf16.mxu0 %v2514
  %4247 = vmatpush1.bf16.msra.mxu0 %v2513
  %4248 = vmatprep.subr.bf16.mxu0 %v2520
  %4249 = vmatpush1.bf16.msra.mxu0 %v2519
  %4250 = vmatprep.subr.bf16.mxu0 %v2526
  %4251 = vmatpush1.bf16.msra.mxu0 %v2525
  %4252 = vmatprep.subr.bf16.mxu0 %v2532
  %4253 = vmatpush1.bf16.msra.mxu0 %v2531
  %4254 = vmatprep.subr.bf16.mxu0 %v2538
  %4255 = vmatpush1.bf16.msra.mxu0 %v2537
  %4256 = vmatprep.subr.bf16.mxu0 %v2544
  %4257 = vmatpush1.bf16.msra.mxu0 %v2543
  %4258 = vmatprep.subr.bf16.mxu0 %v2550
  %4259 = vmatpush1.bf16.msra.mxu0 %v2549
  %4260 = vmatprep.subr.bf16.mxu0 %v2556
  %4261 = vmatpush1.bf16.msra.mxu0 %v2555
  %4262 = vmatprep.subr.bf16.mxu0 %v2562
  %4263 = vmatpush1.bf16.msra.mxu0 %v2561
  %4264 = vmatprep.subr.bf16.mxu0 %v2568
  %4265 = vmatpush1.bf16.msra.mxu0 %v2567
  %4266 = vmatprep.subr.bf16.mxu0 %v2574
  %4267 = vmatpush1.bf16.msra.mxu0 %v2573
  %4268 = vmatprep.subr.bf16.mxu0 %v2580
  %4269 = vmatpush1.bf16.msra.mxu0 %v2579
  %4270 = vmatprep.subr.bf16.mxu0 %v2586
  %4271 = vmatpush1.bf16.msra.mxu0 %v2585
  %4272 = vmatprep.subr.bf16.mxu0 %v2592
  %4273 = vmatpush1.bf16.msra.mxu0 %v2591
  %4274 = vmatprep.subr.bf16.mxu0 %v2598
  %4275 = vmatpush1.bf16.msra.mxu0 %v2597
  %4276 = vmatprep.subr.bf16.mxu0 %v2604
  %4277 = vmatpush1.bf16.msra.mxu0 %v2603
  %4278 = vmatprep.mubr.bf16.mxu0 %v4164
  %4279 = vmatmul.mubr.bf16.gmra.mrb[0].mxu0 %v4163
  %v4280 = vpop.f32.mrb[0].mxu0
  %v4281 = vadd.f32 %v4228, %v4280
  %v4282 = vpop.f32.mrb[0].mxu0
  %v4283 = vadd.f32 %v4230, %v4282
  %v4284 = vpop.f32.mrb[0].mxu0
  %v4285 = vadd.f32 %v4232, %v4284
  %v4286 = vpop.f32.mrb[0].mxu0
  %v4287 = vadd.f32 %v4234, %v4286
  %4288 = vmatprep.mubr.bf16.mxu0 %v4168
  %4289 = vmatmul.mubr.bf16.gmra.mrb[0].mxu0 %v4167
  %v4290 = vpop.f32.mrb[0].mxu0
  %v4291 = vadd.f32 %v4238, %v4290
  %v4292 = vpop.f32.mrb[0].mxu0
  %v4293 = vadd.f32 %v4240, %v4292
  %v4294 = vpop.f32.mrb[0].mxu0
  %v4295 = vadd.f32 %v4242, %v4294
  %v4296 = vpop.f32.mrb[0].mxu0
  %v4297 = vadd.f32 %v4244, %v4296
  %4298 = vdwg.mxu0
  %4299 = vmatprep.subr.bf16.mxu0 %v2420
  %4300 = vmatpush1.bf16.msra.mxu0 %v2419
  %4301 = vmatprep.subr.bf16.mxu0 %v2426
  %4302 = vmatpush1.bf16.msra.mxu0 %v2425
  %4303 = vmatprep.subr.bf16.mxu0 %v2432
  %4304 = vmatpush1.bf16.msra.mxu0 %v2431
  %4305 = vmatprep.subr.bf16.mxu0 %v2438
  %4306 = vmatpush1.bf16.msra.mxu0 %v2437
  %4307 = vmatprep.subr.bf16.mxu0 %v2444
  %4308 = vmatpush1.bf16.msra.mxu0 %v2443
  %4309 = vmatprep.subr.bf16.mxu0 %v2450
  %4310 = vmatpush1.bf16.msra.mxu0 %v2449
  %4311 = vmatprep.subr.bf16.mxu0 %v2456
  %4312 = vmatpush1.bf16.msra.mxu0 %v2455
  %4313 = vmatprep.subr.bf16.mxu0 %v2462
  %4314 = vmatpush1.bf16.msra.mxu0 %v2461
  %4315 = vmatprep.subr.bf16.mxu0 %v2468
  %4316 = vmatpush1.bf16.msra.mxu0 %v2467
  %4317 = vmatprep.subr.bf16.mxu0 %v2474
  %4318 = vmatpush1.bf16.msra.mxu0 %v2473
  %4319 = vmatprep.subr.bf16.mxu0 %v2480
  %4320 = vmatpush1.bf16.msra.mxu0 %v2479
  %4321 = vmatprep.subr.bf16.mxu0 %v2486
  %4322 = vmatpush1.bf16.msra.mxu0 %v2485
  %4323 = vmatprep.subr.bf16.mxu0 %v2492
  %4324 = vmatpush1.bf16.msra.mxu0 %v2491
  %4325 = vmatprep.subr.bf16.mxu0 %v2498
  %4326 = vmatpush1.bf16.msra.mxu0 %v2497
  %4327 = vmatprep.subr.bf16.mxu0 %v2504
  %4328 = vmatpush1.bf16.msra.mxu0 %v2503
  %4329 = vmatprep.subr.bf16.mxu0 %v2510
  %4330 = vmatpush1.bf16.msra.mxu0 %v2509
  %4331 = vmatprep.mubr.bf16.mxu0 %v4162
  %4332 = vmatmul.mubr.bf16.gmra.mrb[0].mxu0 %v4161
  %v4333 = vpop.f32.mrb[0].mxu0
  %v4334 = vadd.f32 %v4171, %v4333
  %v4335 = vpop.f32.mrb[0].mxu0
  %v4336 = vadd.f32 %v4172, %v4335
  %v4337 = vpop.f32.mrb[0].mxu0
  %v4338 = vadd.f32 %v4177, %v4337
  %v4339 = vpop.f32.mrb[0].mxu0
  %v4340 = vadd.f32 %v4178, %v4339
  %4341 = vmatprep.mubr.bf16.mxu0 %v4166
  %4342 = vmatmul.mubr.bf16.gmra.mrb[0].mxu0 %v4165
  %v4343 = vpop.f32.mrb[0].mxu0
  %v4344 = vadd.f32 %v4183, %v4343
  %v4345 = vpop.f32.mrb[0].mxu0
  %v4346 = vadd.f32 %v4184, %v4345
  %v4347 = vpop.f32.mrb[0].mxu0
  %v4348 = vadd.f32 %v4189, %v4347
  %v4349 = vpop.f32.mrb[0].mxu0
  %v4350 = vadd.f32 %v4190, %v4349
  %4351 = vdwg.mxu0
  %4352 = vmatprep.subr.bf16.mxu0 %v2516
  %4353 = vmatpush1.bf16.msra.mxu0 %v2515
  %4354 = vmatprep.subr.bf16.mxu0 %v2522
  %4355 = vmatpush1.bf16.msra.mxu0 %v2521
  %4356 = vmatprep.subr.bf16.mxu0 %v2528
  %4357 = vmatpush1.bf16.msra.mxu0 %v2527
  %4358 = vmatprep.subr.bf16.mxu0 %v2534
  %4359 = vmatpush1.bf16.msra.mxu0 %v2533
  %4360 = vmatprep.subr.bf16.mxu0 %v2540
  %4361 = vmatpush1.bf16.msra.mxu0 %v2539
  %4362 = vmatprep.subr.bf16.mxu0 %v2546
  %4363 = vmatpush1.bf16.msra.mxu0 %v2545
  %4364 = vmatprep.subr.bf16.mxu0 %v2552
  %4365 = vmatpush1.bf16.msra.mxu0 %v2551
  %4366 = vmatprep.subr.bf16.mxu0 %v2558
  %4367 = vmatpush1.bf16.msra.mxu0 %v2557
  %4368 = vmatprep.subr.bf16.mxu0 %v2564
  %4369 = vmatpush1.bf16.msra.mxu0 %v2563
  %4370 = vmatprep.subr.bf16.mxu0 %v2570
  %4371 = vmatpush1.bf16.msra.mxu0 %v2569
  %4372 = vmatprep.subr.bf16.mxu0 %v2576
  %4373 = vmatpush1.bf16.msra.mxu0 %v2575
  %4374 = vmatprep.subr.bf16.mxu0 %v2582
  %4375 = vmatpush1.bf16.msra.mxu0 %v2581
  %4376 = vmatprep.subr.bf16.mxu0 %v2588
  %4377 = vmatpush1.bf16.msra.mxu0 %v2587
  %4378 = vmatprep.subr.bf16.mxu0 %v2594
  %4379 = vmatpush1.bf16.msra.mxu0 %v2593
  %4380 = vmatprep.subr.bf16.mxu0 %v2600
  %4381 = vmatpush1.bf16.msra.mxu0 %v2599
  %4382 = vmatprep.subr.bf16.mxu0 %v2606
  %4383 = vmatpush1.bf16.msra.mxu0 %v2605
  %4384 = vmatprep.mubr.bf16.mxu0 %v4164
  %4385 = vmatmul.mubr.bf16.gmra.mrb[0].mxu0 %v4163
  %v4386 = vpop.f32.mrb[0].mxu0
  %v4387 = vadd.f32 %v4334, %v4386
  %v4388 = vpop.f32.mrb[0].mxu0
  %v4389 = vadd.f32 %v4336, %v4388
  %v4390 = vpop.f32.mrb[0].mxu0
  %v4391 = vadd.f32 %v4338, %v4390
  %v4392 = vpop.f32.mrb[0].mxu0
  %v4393 = vadd.f32 %v4340, %v4392
  %4394 = vmatprep.mubr.bf16.mxu0 %v4168
  %4395 = vmatmul.mubr.bf16.gmra.mrb[0].mxu0 %v4167
  %v4396 = vpop.f32.mrb[0].mxu0
  %v4397 = vadd.f32 %v4344, %v4396
  %v4398 = vpop.f32.mrb[0].mxu0
  %v4399 = vadd.f32 %v4346, %v4398
  %v4400 = vpop.f32.mrb[0].mxu0
  %v4401 = vadd.f32 %v4348, %v4400
  %v4402 = vpop.f32.mrb[0].mxu0
  %v4403 = vadd.f32 %v4350, %v4402
  %4404 = vdwg.mxu0
  %4405 = vmatprep.subr.bf16.mxu0 %v2422
  %4406 = vmatpush1.bf16.msra.mxu0 %v2421
  %4407 = vmatprep.subr.bf16.mxu0 %v2428
  %4408 = vmatpush1.bf16.msra.mxu0 %v2427
  %4409 = vmatprep.subr.bf16.mxu0 %v2434
  %4410 = vmatpush1.bf16.msra.mxu0 %v2433
  %4411 = vmatprep.subr.bf16.mxu0 %v2440
  %4412 = vmatpush1.bf16.msra.mxu0 %v2439
  %4413 = vmatprep.subr.bf16.mxu0 %v2446
  %4414 = vmatpush1.bf16.msra.mxu0 %v2445
  %4415 = vmatprep.subr.bf16.mxu0 %v2452
  %4416 = vmatpush1.bf16.msra.mxu0 %v2451
  %4417 = vmatprep.subr.bf16.mxu0 %v2458
  %4418 = vmatpush1.bf16.msra.mxu0 %v2457
  %4419 = vmatprep.subr.bf16.mxu0 %v2464
  %4420 = vmatpush1.bf16.msra.mxu0 %v2463
  %4421 = vmatprep.subr.bf16.mxu0 %v2470
  %4422 = vmatpush1.bf16.msra.mxu0 %v2469
  %4423 = vmatprep.subr.bf16.mxu0 %v2476
  %4424 = vmatpush1.bf16.msra.mxu0 %v2475
  %4425 = vmatprep.subr.bf16.mxu0 %v2482
  %4426 = vmatpush1.bf16.msra.mxu0 %v2481
  %4427 = vmatprep.subr.bf16.mxu0 %v2488
  %4428 = vmatpush1.bf16.msra.mxu0 %v2487
  %4429 = vmatprep.subr.bf16.mxu0 %v2494
  %4430 = vmatpush1.bf16.msra.mxu0 %v2493
  %4431 = vmatprep.subr.bf16.mxu0 %v2500
  %4432 = vmatpush1.bf16.msra.mxu0 %v2499
  %4433 = vmatprep.subr.bf16.mxu0 %v2506
  %4434 = vmatpush1.bf16.msra.mxu0 %v2505
  %4435 = vmatprep.subr.bf16.mxu0 %v2512
  %4436 = vmatpush1.bf16.msra.mxu0 %v2511
  %4437 = vmatprep.mubr.bf16.mxu0 %v4162
  %4438 = vmatmul.mubr.bf16.gmra.mrb[0].mxu0 %v4161
  %v4439 = vpop.f32.mrb[0].mxu0
  %v4440 = vadd.f32 %v4173, %v4439
  %v4441 = vpop.f32.mrb[0].mxu0
  %v4442 = vadd.f32 %v4174, %v4441
  %v4443 = vpop.f32.mrb[0].mxu0
  %v4444 = vadd.f32 %v4179, %v4443
  %v4445 = vpop.f32.mrb[0].mxu0
  %v4446 = vadd.f32 %v4180, %v4445
  %4447 = vmatprep.mubr.bf16.mxu0 %v4166
  %4448 = vmatmul.mubr.bf16.gmra.mrb[0].mxu0 %v4165
  %v4449 = vpop.f32.mrb[0].mxu0
  %v4450 = vadd.f32 %v4185, %v4449
  %v4451 = vpop.f32.mrb[0].mxu0
  %v4452 = vadd.f32 %v4186, %v4451
  %v4453 = vpop.f32.mrb[0].mxu0
  %v4454 = vadd.f32 %v4191, %v4453
  %v4455 = vpop.f32.mrb[0].mxu0
  %v4456 = vadd.f32 %v4192, %v4455
  %4457 = vdwg.mxu0
  %4458 = vmatprep.subr.bf16.mxu0 %v2518
  %4459 = vmatpush1.bf16.msra.mxu0 %v2517
  %4460 = vmatprep.subr.bf16.mxu0 %v2524
  %4461 = vmatpush1.bf16.msra.mxu0 %v2523
  %4462 = vmatprep.subr.bf16.mxu0 %v2530
  %4463 = vmatpush1.bf16.msra.mxu0 %v2529
  %4464 = vmatprep.subr.bf16.mxu0 %v2536
  %4465 = vmatpush1.bf16.msra.mxu0 %v2535
  %4466 = vmatprep.subr.bf16.mxu0 %v2542
  %4467 = vmatpush1.bf16.msra.mxu0 %v2541
  %4468 = vmatprep.subr.bf16.mxu0 %v2548
  %4469 = vmatpush1.bf16.msra.mxu0 %v2547
  %4470 = vmatprep.subr.bf16.mxu0 %v2554
  %4471 = vmatpush1.bf16.msra.mxu0 %v2553
  %4472 = vmatprep.subr.bf16.mxu0 %v2560
  %4473 = vmatpush1.bf16.msra.mxu0 %v2559
  %4474 = vmatprep.subr.bf16.mxu0 %v2566
  %4475 = vmatpush1.bf16.msra.mxu0 %v2565
  %4476 = vmatprep.subr.bf16.mxu0 %v2572
  %4477 = vmatpush1.bf16.msra.mxu0 %v2571
  %4478 = vmatprep.subr.bf16.mxu0 %v2578
  %4479 = vmatpush1.bf16.msra.mxu0 %v2577
  %4480 = vmatprep.subr.bf16.mxu0 %v2584
  %4481 = vmatpush1.bf16.msra.mxu0 %v2583
  %4482 = vmatprep.subr.bf16.mxu0 %v2590
  %4483 = vmatpush1.bf16.msra.mxu0 %v2589
  %4484 = vmatprep.subr.bf16.mxu0 %v2596
  %4485 = vmatpush1.bf16.msra.mxu0 %v2595
  %4486 = vmatprep.subr.bf16.mxu0 %v2602
  %4487 = vmatpush1.bf16.msra.mxu0 %v2601
  %4488 = vmatprep.subr.bf16.mxu0 %v2608
  %4489 = vmatpush1.bf16.msra.mxu0 %v2607
  %4490 = vmatprep.mubr.bf16.mxu0 %v4164
  %4491 = vmatmul.mubr.bf16.gmra.mrb[0].mxu0 %v4163
  %v4492 = vpop.f32.mrb[0].mxu0
  %v4493 = vadd.f32 %v4440, %v4492
  %v4494 = vpop.f32.mrb[0].mxu0
  %v4495 = vadd.f32 %v4442, %v4494
  %v4496 = vpop.f32.mrb[0].mxu0
  %v4497 = vadd.f32 %v4444, %v4496
  %v4498 = vpop.f32.mrb[0].mxu0
  %v4499 = vadd.f32 %v4446, %v4498
  %4500 = vmatprep.mubr.bf16.mxu0 %v4168
  %4501 = vmatmul.mubr.bf16.gmra.mrb[0].mxu0 %v4167
  %v4502 = vpop.f32.mrb[0].mxu0
  %v4503 = vadd.f32 %v4450, %v4502
  %v4504 = vpop.f32.mrb[0].mxu0
  %v4505 = vadd.f32 %v4452, %v4504
  %v4506 = vpop.f32.mrb[0].mxu0
  %v4507 = vadd.f32 %v4454, %v4506
  %v4508 = vpop.f32.mrb[0].mxu0
  %v4509 = vadd.f32 %v4456, %v4508
  %4510 = vdwg.mxu0
  %4511 = vst [vmem:[%s6] sm:$0xff] %v409
  %4512 = vst [vmem:[%s6 + $0x8] sm:$0xff] %v410
  %4513 = vst [vmem:[%s6 + $0x10] sm:$0xff] %v411
  %4514 = vst [vmem:[%s6 + $0x18] sm:$0xff] %v412
  %4515 = vst [vmem:[%s6 + $0x20] sm:$0xff] %v413
  %4516 = vst [vmem:[%s6 + $0x28] sm:$0xff] %v414
  %4517 = vst [vmem:[%s6 + $0x30] sm:$0xff] %v415
  %4518 = vst [vmem:[%s6 + $0x38] sm:$0xff] %v416
  %4519 = vst [vmem:[%s6 + $0x40] sm:$0xff] %v417
  %4520 = vst [vmem:[%s6 + $0x48] sm:$0xff] %v418
  %4521 = vst [vmem:[%s6 + $0x50] sm:$0xff] %v419
  %4522 = vst [vmem:[%s6 + $0x58] sm:$0xff] %v420
  %4523 = vst [vmem:[%s6 + $0x60] sm:$0xff] %v421
  %4524 = vst [vmem:[%s6 + $0x68] sm:$0xff] %v422
  %4525 = vst [vmem:[%s6 + $0x70] sm:$0xff] %v423
  %4526 = vst [vmem:[%s6 + $0x78] sm:$0xff] %v424
  %4527 = vst [vmem:[%s6 + $0x80] sm:$0xff] %v1601
  %4528 = vst [vmem:[%s6 + $0x88] sm:$0xff] %v1603
  %4529 = vst [vmem:[%s6 + $0x90] sm:$0xff] %v1760
  %4530 = vst [vmem:[%s6 + $0x98] sm:$0xff] %v1762
  %4531 = vst [vmem:[%s6 + $0xa0] sm:$0xff] %v1605
  %4532 = vst [vmem:[%s6 + $0xa8] sm:$0xff] %v1607
  %4533 = vst [vmem:[%s6 + $0xb0] sm:$0xff] %v1764
  %4534 = vst [vmem:[%s6 + $0xb8] sm:$0xff] %v1766
  %4535 = vst [vmem:[%s6 + $0xc0] sm:$0xff] %v1611
  %4536 = vst [vmem:[%s6 + $0xc8] sm:$0xff] %v1613
  %4537 = vst [vmem:[%s6 + $0xd0] sm:$0xff] %v1770
  %4538 = vst [vmem:[%s6 + $0xd8] sm:$0xff] %v1772
  %4539 = vst [vmem:[%s6 + $0xe0] sm:$0xff] %v1615
  %4540 = vst [vmem:[%s6 + $0xe8] sm:$0xff] %v1617
  %4541 = vst [vmem:[%s6 + $0xf0] sm:$0xff] %v1774
  %4542 = vst [vmem:[%s6 + $0xf8] sm:$0xff] %v1776
  %4543 = vst [vmem:[%s6 + $0x100] sm:$0xff] %v3288
  %4544 = vst [vmem:[%s6 + $0x108] sm:$0xff] %v3290
  %4545 = vst [vmem:[%s6 + $0x110] sm:$0xff] %v3447
  %4546 = vst [vmem:[%s6 + $0x118] sm:$0xff] %v3449
  %4547 = vst [vmem:[%s6 + $0x120] sm:$0xff] %v3292
  %4548 = vst [vmem:[%s6 + $0x128] sm:$0xff] %v3294
  %4549 = vst [vmem:[%s6 + $0x130] sm:$0xff] %v3451
  %4550 = vst [vmem:[%s6 + $0x138] sm:$0xff] %v3453
  %4551 = vst [vmem:[%s6 + $0x140] sm:$0xff] %v3298
  %4552 = vst [vmem:[%s6 + $0x148] sm:$0xff] %v3300
  %4553 = vst [vmem:[%s6 + $0x150] sm:$0xff] %v3457
  %4554 = vst [vmem:[%s6 + $0x158] sm:$0xff] %v3459
  %4555 = vst [vmem:[%s6 + $0x160] sm:$0xff] %v3302
  %4556 = vst [vmem:[%s6 + $0x168] sm:$0xff] %v3304
  %4557 = vst [vmem:[%s6 + $0x170] sm:$0xff] %v3461
  %4558 = vst [vmem:[%s6 + $0x178] sm:$0xff] %v3463
  %4559 = vst [vmem:[%s6 + $0x180] sm:$0xff] %v3984
  %4560 = vst [vmem:[%s6 + $0x188] sm:$0xff] %v3986
  %4561 = vst [vmem:[%s6 + $0x190] sm:$0xff] %v4143
  %4562 = vst [vmem:[%s6 + $0x198] sm:$0xff] %v4145
  %4563 = vst [vmem:[%s6 + $0x1a0] sm:$0xff] %v3988
  %4564 = vst [vmem:[%s6 + $0x1a8] sm:$0xff] %v3990
  %4565 = vst [vmem:[%s6 + $0x1b0] sm:$0xff] %v4147
  %4566 = vst [vmem:[%s6 + $0x1b8] sm:$0xff] %v4149
  %4567 = vst [vmem:[%s6 + $0x1c0] sm:$0xff] %v3994
  %4568 = vst [vmem:[%s6 + $0x1c8] sm:$0xff] %v3996
  %4569 = vst [vmem:[%s6 + $0x1d0] sm:$0xff] %v4153
  %4570 = vst [vmem:[%s6 + $0x1d8] sm:$0xff] %v4155
  %4571 = vst [vmem:[%s6 + $0x1e0] sm:$0xff] %v3998
  %4572 = vst [vmem:[%s6 + $0x1e8] sm:$0xff] %v4000
  %4573 = vst [vmem:[%s6 + $0x1f0] sm:$0xff] %v4157
  %4574 = vst [vmem:[%s6 + $0x1f8] sm:$0xff] %v4159
  %4575 = vst [vmem:[%s7] sm:$0xff] %v425
  %4576 = vst [vmem:[%s7 + $0x8] sm:$0xff] %v426
  %4577 = vst [vmem:[%s7 + $0x10] sm:$0xff] %v427
  %4578 = vst [vmem:[%s7 + $0x18] sm:$0xff] %v428
  %4579 = vst [vmem:[%s7 + $0x20] sm:$0xff] %v429
  %4580 = vst [vmem:[%s7 + $0x28] sm:$0xff] %v430
  %4581 = vst [vmem:[%s7 + $0x30] sm:$0xff] %v431
  %4582 = vst [vmem:[%s7 + $0x38] sm:$0xff] %v432
  %4583 = vst [vmem:[%s7 + $0x40] sm:$0xff] %v433
  %4584 = vst [vmem:[%s7 + $0x48] sm:$0xff] %v434
  %4585 = vst [vmem:[%s7 + $0x50] sm:$0xff] %v435
  %4586 = vst [vmem:[%s7 + $0x58] sm:$0xff] %v436
  %4587 = vst [vmem:[%s7 + $0x60] sm:$0xff] %v437
  %4588 = vst [vmem:[%s7 + $0x68] sm:$0xff] %v438
  %4589 = vst [vmem:[%s7 + $0x70] sm:$0xff] %v439
  %4590 = vst [vmem:[%s7 + $0x78] sm:$0xff] %v440
  %4591 = vst [vmem:[%s7 + $0x80] sm:$0xff] %v441
  %4592 = vst [vmem:[%s7 + $0x88] sm:$0xff] %v442
  %4593 = vst [vmem:[%s7 + $0x90] sm:$0xff] %v443
  %4594 = vst [vmem:[%s7 + $0x98] sm:$0xff] %v444
  %4595 = vst [vmem:[%s7 + $0xa0] sm:$0xff] %v445
  %4596 = vst [vmem:[%s7 + $0xa8] sm:$0xff] %v446
  %4597 = vst [vmem:[%s7 + $0xb0] sm:$0xff] %v447
  %4598 = vst [vmem:[%s7 + $0xb8] sm:$0xff] %v448
  %4599 = vst [vmem:[%s7 + $0xc0] sm:$0xff] %v2889
  %4600 = vst [vmem:[%s7 + $0xc8] sm:$0xff] %v2891
  %4601 = vst [vmem:[%s7 + $0xd0] sm:$0xff] %v2995
  %4602 = vst [vmem:[%s7 + $0xd8] sm:$0xff] %v2997
  %4603 = vst [vmem:[%s7 + $0xe0] sm:$0xff] %v3101
  %4604 = vst [vmem:[%s7 + $0xe8] sm:$0xff] %v3103
  %4605 = vst [vmem:[%s7 + $0xf0] sm:$0xff] %v2893
  %4606 = vst [vmem:[%s7 + $0xf8] sm:$0xff] %v2895
  %4607 = vst [vmem:[%s7 + $0x100] sm:$0xff] %v2999
  %4608 = vst [vmem:[%s7 + $0x108] sm:$0xff] %v3001
  %4609 = vst [vmem:[%s7 + $0x110] sm:$0xff] %v3105
  %4610 = vst [vmem:[%s7 + $0x118] sm:$0xff] %v3107
  %4611 = vst [vmem:[%s7 + $0x120] sm:$0xff] %v2899
  %4612 = vst [vmem:[%s7 + $0x128] sm:$0xff] %v2901
  %4613 = vst [vmem:[%s7 + $0x130] sm:$0xff] %v3005
  %4614 = vst [vmem:[%s7 + $0x138] sm:$0xff] %v3007
  %4615 = vst [vmem:[%s7 + $0x140] sm:$0xff] %v3111
  %4616 = vst [vmem:[%s7 + $0x148] sm:$0xff] %v3113
  %4617 = vst [vmem:[%s7 + $0x150] sm:$0xff] %v2903
  %4618 = vst [vmem:[%s7 + $0x158] sm:$0xff] %v2905
  %4619 = vst [vmem:[%s7 + $0x160] sm:$0xff] %v3009
  %4620 = vst [vmem:[%s7 + $0x168] sm:$0xff] %v3011
  %4621 = vst [vmem:[%s7 + $0x170] sm:$0xff] %v3115
  %4622 = vst [vmem:[%s7 + $0x178] sm:$0xff] %v3117
  %4623 = vst [vmem:[%s7 + $0x180] sm:$0xff] %v3585
  %4624 = vst [vmem:[%s7 + $0x188] sm:$0xff] %v3587
  %4625 = vst [vmem:[%s7 + $0x190] sm:$0xff] %v3691
  %4626 = vst [vmem:[%s7 + $0x198] sm:$0xff] %v3693
  %4627 = vst [vmem:[%s7 + $0x1a0] sm:$0xff] %v3797
  %4628 = vst [vmem:[%s7 + $0x1a8] sm:$0xff] %v3799
  %4629 = vst [vmem:[%s7 + $0x1b0] sm:$0xff] %v3589
  %4630 = vst [vmem:[%s7 + $0x1b8] sm:$0xff] %v3591
  %4631 = vst [vmem:[%s7 + $0x1c0] sm:$0xff] %v3695
  %4632 = vst [vmem:[%s7 + $0x1c8] sm:$0xff] %v3697
  %4633 = vst [vmem:[%s7 + $0x1d0] sm:$0xff] %v3801
  %4634 = vst [vmem:[%s7 + $0x1d8] sm:$0xff] %v3803
  %4635 = vst [vmem:[%s7 + $0x1e0] sm:$0xff] %v3595
  %4636 = vst [vmem:[%s7 + $0x1e8] sm:$0xff] %v3597
  %4637 = vst [vmem:[%s7 + $0x1f0] sm:$0xff] %v3701
  %4638 = vst [vmem:[%s7 + $0x1f8] sm:$0xff] %v3703
  %4639 = vst [vmem:[%s7 + $0x200] sm:$0xff] %v3807
  %4640 = vst [vmem:[%s7 + $0x208] sm:$0xff] %v3809
  %4641 = vst [vmem:[%s7 + $0x210] sm:$0xff] %v3599
  %4642 = vst [vmem:[%s7 + $0x218] sm:$0xff] %v3601
  %4643 = vst [vmem:[%s7 + $0x220] sm:$0xff] %v3705
  %4644 = vst [vmem:[%s7 + $0x228] sm:$0xff] %v3707
  %4645 = vst [vmem:[%s7 + $0x230] sm:$0xff] %v3811
  %4646 = vst [vmem:[%s7 + $0x238] sm:$0xff] %v3813
  %4647 = vst [vmem:[%s7 + $0x240] sm:$0xff] %v4281
  %4648 = vst [vmem:[%s7 + $0x248] sm:$0xff] %v4283
  %4649 = vst [vmem:[%s7 + $0x250] sm:$0xff] %v4387
  %4650 = vst [vmem:[%s7 + $0x258] sm:$0xff] %v4389
  %4651 = vst [vmem:[%s7 + $0x260] sm:$0xff] %v4493
  %4652 = vst [vmem:[%s7 + $0x268] sm:$0xff] %v4495
  %4653 = vst [vmem:[%s7 + $0x270] sm:$0xff] %v4285
  %4654 = vst [vmem:[%s7 + $0x278] sm:$0xff] %v4287
  %4655 = vst [vmem:[%s7 + $0x280] sm:$0xff] %v4391
  %4656 = vst [vmem:[%s7 + $0x288] sm:$0xff] %v4393
  %4657 = vst [vmem:[%s7 + $0x290] sm:$0xff] %v4497
  %4658 = vst [vmem:[%s7 + $0x298] sm:$0xff] %v4499
  %4659 = vst [vmem:[%s7 + $0x2a0] sm:$0xff] %v4291
  %4660 = vst [vmem:[%s7 + $0x2a8] sm:$0xff] %v4293
  %4661 = vst [vmem:[%s7 + $0x2b0] sm:$0xff] %v4397
  %4662 = vst [vmem:[%s7 + $0x2b8] sm:$0xff] %v4399
  %4663 = vst [vmem:[%s7 + $0x2c0] sm:$0xff] %v4503
  %4664 = vst [vmem:[%s7 + $0x2c8] sm:$0xff] %v4505
  %4665 = vst [vmem:[%s7 + $0x2d0] sm:$0xff] %v4295
  %4666 = vst [vmem:[%s7 + $0x2d8] sm:$0xff] %v4297
  %4667 = vst [vmem:[%s7 + $0x2e0] sm:$0xff] %v4401
  %4668 = vst [vmem:[%s7 + $0x2e8] sm:$0xff] %v4403
  %4669 = vst [vmem:[%s7 + $0x2f0] sm:$0xff] %v4507
  %4670 = vst [vmem:[%s7 + $0x2f8] sm:$0xff] %v4509
  // Predicated region
  $region26: #{bpr_forward.2} parent=0 // pred_check
    _
  $region27: #{bpr_forward.2} parent=0 // pred_check_branch
    %4672 = sbr.rel (0) target = $region29
  $region28: #{bpr_forward.2} parent=0 // pred_region
    _
  $region29: #{bpr_forward.2} parent=0 // pred_fallthru
    _
  // Predicated region
  $region30: #{bpr_forward.2} parent=0 // pred_check
    _
  $region31: #{bpr_forward.2} parent=0 // pred_check_branch
    %4674 = sbr.rel (0) target = $region33
  $region32: #{bpr_forward.2} parent=0 // pred_region
    _
  $region33: #{bpr_forward.2} parent=0 // pred_fallthru
    _
  // Predicated region
  $region34: #{bpr_forward.2} parent=0 // pred_check
    _
  $region35: #{bpr_forward.2} parent=0 // pred_check_branch
    %4676 = sbr.rel (0) target = $region37
  $region36: #{bpr_forward.2} parent=0 // pred_region
    _
  $region37: #{bpr_forward.2} parent=0 // pred_fallthru
    _
  // Predicated region
  $region38: #{bpr_forward.2} parent=0 // pred_check
    _
  $region39: #{bpr_forward.2} parent=0 // pred_check_branch
    %4678 = sbr.rel (0) target = $region41
  $region40: #{bpr_forward.2} parent=0 // pred_region
    _
  $region41: #{bpr_forward.2} parent=0 // pred_fallthru
    _

</llo_original>
